<compile_context>
chip_gen: v7x
topology: tpu7x:2x2x1
jax: 0.10.0
libtpu: 0.0.40
codegen_flags: <defaults>
</compile_context>

<pallas_src>
import functools

import jax
import jax.numpy as jnp
from jax.experimental import pallas as pl
from jax.experimental.pallas import tpu as pltpu


def _round_up(x, m):
    return (x + m - 1) // m * m


# ----------------------------------------------------------------------------
# Fused kernel: gating + 6 dilated 3x3 convs (relu) + 1x1 conv (sigmoid)
# ----------------------------------------------------------------------------
def _relate_kernel(f_ref, a_ref, w3_ref, b3_ref, w6_ref, b6_ref, o_ref,
                   act0, act1, col, *, C, H, W, WP, DST, dilations):
    Q = o_ref.shape[-1]              # lane-dense flat window length (512)

    # Per-step zero fill of both activation slabs (cheap), so every grid step
    # is self-contained and the batch axis can run "parallel" (v7x megacore).
    act0[...] = jnp.zeros_like(act0)
    act1[...] = jnp.zeros_like(act1)

    acts = (act0, act1)

    # Gating: feats * attn (channel broadcast).  Inputs are zero-padded in the
    # wrapper, so padded lanes inside the window are 0 * 0 = 0.  DST is a
    # multiple of 128 -> plain unmasked lane-dense store.
    act0[:, DST:DST + Q] = f_ref[...] * a_ref[...]

    # Validity mask over the flat Q-window: 1.0 on real output pixels, 0.0 on
    # padded / tail lanes.  Hoisted + broadcast to (C, Q) ONCE (not per layer).
    lane = jax.lax.broadcasted_iota(jnp.int32, (1, Q), 1)
    valid = jnp.where(jnp.logical_and(lane % WP < W, lane < H * WP), 1.0, 0.0)
    valid_c = jnp.broadcast_to(valid.astype(jnp.float32), (C, Q))

    # Six dilated 3x3 convs.  Each: 9 flat static slices -> bf16 im2col buffer
    # -> ONE (C, 9C) x (9C, Q) bf16 MXU matmul with f32 accumulation.
    for l, d in enumerate(dilations):
        src, dst = acts[l % 2], acts[(l + 1) % 2]
        for t in range(9):
            ky, kx = t // 3, t % 3
            off = DST + (ky - 1) * d * WP + (kx - 1) * d
            col[t * C:(t + 1) * C, :] = src[:, off:off + Q].astype(col.dtype)
        acc = jnp.dot(w3_ref[l], col[...], preferred_element_type=jnp.float32)
        acc = jnp.maximum(acc + b3_ref[l], 0.0)
        # Masked write-back: keeps the window's non-pixel lanes at exactly 0,
        # which later dilated taps rely on reading as zero-halo.  Do NOT store
        # unmasked acc here.
        dst[:, DST:DST + Q] = acc * valid_c

    # Final 1x1 conv -> 1 channel + sigmoid.  Tiny (K=C), so keep it on the
    # VPU as a broadcast-multiply + cross-sublane reduce instead of an M=1
    # matmul.  Garbage lanes are stripped by the wrapper.
    src = acts[len(dilations) % 2]
    logits = jnp.sum(src[:, DST:DST + Q] * w6_ref[...], axis=0, keepdims=True)
    logits = logits + b6_ref[...]
    o_ref[...] = 1.0 / (1.0 + jnp.exp(-logits))


# ----------------------------------------------------------------------------
# Wrapper-side layout plumbing + pallas_call glue
# ----------------------------------------------------------------------------
def _channel_major_padded(x, WP, Q):
    """(N, H, W, K) NHWC -> (N, K, Q) channel-major, rows padded to stride WP."""
    N, H, W, K = x.shape
    x = jnp.transpose(x, (0, 3, 1, 2))                        # (N, K, H, W)
    x = jnp.pad(x, ((0, 0), (0, 0), (0, 0), (0, WP - W)))     # pad W -> WP
    x = x.reshape(N, K, H * WP)
    return jnp.pad(x, ((0, 0), (0, 0), (0, Q - H * WP)))      # pad flat -> Q


def _pack_params(params, C):
    """Repack HWIO conv params into the kernel's matmul-friendly layout."""
    # Stacked 3x3 weights in bf16 (MXU operands); biases / 1x1 stay f32.
    w3 = jnp.stack([w.transpose(3, 0, 1, 2).reshape(C, 9 * C)
                    for (w, b, d, act) in params[:-1]]).astype(jnp.bfloat16)
    b3 = jnp.stack([b.reshape(C, 1) for (w, b, d, act) in params[:-1]])  # (6,C,1)
    w6 = params[-1][0].reshape(C, 1)                                     # (C, 1)
    b6 = params[-1][1].reshape(1, 1)                                     # (1, 1)
    dilations = tuple(int(d) for (w, b, d, act) in params[:-1])
    return w3, b3, w6, b6, dilations


def relate_forward(feats, attn, params):
    """Pallas forward.  feats: (N,H,W,C) f32, attn: (N,H,W,1) f32 -> (N,H,W,1)."""
    N, H, W, C = feats.shape
    w3, b3, w6, b6, dilations = _pack_params(params, C)
    max_d = max(dilations)

    # Single shared canvas geometry for all dilations:
    #   WP    : padded row stride; WP - W >= max_d so a dx = -d tap at column
    #           c < d wraps into the previous row's zero padding.
    #   Q     : lane-dense flat window holding all H rows.
    #   DST   : 128-aligned interior origin; the flat slack before/after the
    #           window absorbs the vertical reach of the farthest tap.
    WP = W + max_d                                   # 32
    Q = _round_up(H * WP, 128)                       # 512
    halo = max_d * WP + max_d                        # farthest flat tap reach (528)
    DST = _round_up(halo, 128)                       # 640 (lane-aligned)
    FLAT = _round_up(DST + halo + Q, 128)            # activation slab length (1792)

    feats_p = _channel_major_padded(feats, WP, Q)    # (N, C, Q)
    attn_p = _channel_major_padded(attn, WP, Q)      # (N, 1, Q)

    kernel = functools.partial(_relate_kernel, C=C, H=H, W=W, WP=WP, DST=DST,
                               dilations=dilations)

    # Explicit VMEM budget: 2 f32 act slabs + bf16 im2col + resident weights
    # + double-buffered I/O blocks (~0.5 MiB at C=16, H=W=16).
    vmem_bytes = (4 * 2 * C * FLAT + 2 * 9 * C * Q
                  + 2 * 2 * w3.size + 2 * 4 * (b3.size + w6.size + b6.size)
                  + 4 * 2 * (C + 1 + 1) * Q)
    vmem_limit = int(max(2 * vmem_bytes, 8 * 1024 * 1024))

    out_flat = pl.pallas_call(
        kernel,
        out_shape=jax.ShapeDtypeStruct((N, 1, Q), jnp.float32),
        grid_spec=pltpu.PrefetchScalarGridSpec(
            num_scalar_prefetch=0,
            grid=(N,),
            in_specs=[
                pl.BlockSpec((None, C, Q), lambda n: (n, 0, 0)),   # gated feats
                pl.BlockSpec((None, 1, Q), lambda n: (n, 0, 0)),   # attention
                # Constant-index weight inputs.  (pipeline_mode=pl.Buffered(1)
                # would drop their second buffer; negligible at C=16.)
                pl.BlockSpec(w3.shape, lambda n: (0, 0, 0)),       # stacked 3x3 w (bf16)
                pl.BlockSpec(b3.shape, lambda n: (0, 0, 0)),       # stacked 3x3 b (f32)
                pl.BlockSpec(w6.shape, lambda n: (0, 0)),          # 1x1 weight (C,1)
                pl.BlockSpec(b6.shape, lambda n: (0, 0)),          # 1x1 bias  (1,1)
            ],
            out_specs=pl.BlockSpec((None, 1, Q), lambda n: (n, 0, 0)),
            scratch_shapes=[
                pltpu.VMEM((C, FLAT), jnp.float32),    # activation ping (f32)
                pltpu.VMEM((C, FLAT), jnp.float32),    # activation pong (f32)
                pltpu.VMEM((9 * C, Q), jnp.bfloat16),  # im2col buffer (bf16)
            ],
        ),
        compiler_params=pltpu.CompilerParams(
            dimension_semantics=("parallel",),         # per-step init -> megacore-safe
            vmem_limit_bytes=vmem_limit),
    )(feats_p, attn_p, w3, b3, w6, b6)

    # Strip the padded lanes: (N, 1, Q) -> (N, H, W, 1).  Pure layout plumbing.
    out = out_flat[:, 0, :H * WP].reshape(N, H, WP)[:, :, :W]
    return out[..., None]


# ----------------------------------------------------------------------------
# Parameter init (matches the PyTorch module: kaiming-normal weights)
# ----------------------------------------------------------------------------
def init_params(key, dim):
    # (kernel_size, dilation, out_channels, activation) in application order:
    # conv1, conv2, conv3, conv4, conv7, conv5, conv6
    cfg = [(3, 1, dim, "relu"),
           (3, 2, dim, "relu"),
           (3, 4, dim, "relu"),
           (3, 8, dim, "relu"),
           (3, 16, dim, "relu"),
           (3, 1, dim, "relu"),
           (1, 1, 1, "sigmoid")]
    params = []
    for (k, d, cout, act) in cfg:
        key, kw, kb = jax.random.split(key, 3)
        fan_in = dim * k * k
        std = (2.0 / fan_in) ** 0.5          # kaiming_normal_ (fan_in, gain sqrt(2))
        w = std * jax.random.normal(kw, (k, k, dim, cout), jnp.float32)
        bound = 1.0 / (fan_in ** 0.5)        # PyTorch default conv bias init
        b = jax.random.uniform(kb, (1, cout), jnp.float32, -bound, bound)
        params.append((w, b, d, act))
    return params


# ----------------------------------------------------------------------------
# Pure-JAX reference (f32, HIGHEST precision)
# ----------------------------------------------------------------------------
def relate_reference(feats, attn, params):
    x = feats * attn
    for (w, b, d, act) in params:
        k = w.shape[0]
        pad = d if k == 3 else 0
        y = jax.lax.conv_general_dilated(
            x, w, window_strides=(1, 1),
            padding=[(pad, pad), (pad, pad)],
            rhs_dilation=(d, d),
            dimension_numbers=("NHWC", "HWIO", "NHWC"),
            precision=jax.lax.Precision.HIGHEST) + b[0]
        x = jnp.maximum(y, 0.0) if act == "relu" else 1.0 / (1.0 + jnp.exp(-y))
    return x


# ----------------------------------------------------------------------------
if __name__ == "__main__":
    N, dim, H, W = 2, 16, 16, 16
    key = jax.random.PRNGKey(0)
    k_feat, k_attn, k_par = jax.random.split(key, 3)

    feats = jax.random.normal(k_feat, (N, H, W, dim), jnp.float32)
    attn = jax.nn.sigmoid(jax.random.normal(k_attn, (N, H, W, 1), jnp.float32))
    params = init_params(k_par, dim)

    out = relate_forward(feats, attn, params)
    out = jax.block_until_ready(out)
    assert out.shape == (N, H, W, 1), out.shape      # NHWC == (N,1,H,W) in NCHW

    ref = relate_reference(feats, attn, params)
    err = float(jnp.max(jnp.abs(out - ref)))
    # bf16 MXU operands (weights + im2col) with f32 accumulation, checked
    # against an f32 HIGHEST-precision reference -> loosened tolerance.
    assert err < 3e-2, f"mismatch vs JAX reference: max abs err = {err}"

    print("KERNEL_OK")
</pallas_src>

<mosaic_0001>
module attributes {stable_mosaic.version = 11 : i64} {
  func.func @_relate_kernel(%arg0: i32, %arg1: memref<1x16x512xf32, #tpu.memory_space<vmem>>, %arg2: memref<1x1x512xf32, #tpu.memory_space<vmem>>, %arg3: memref<6x16x144xbf16, #tpu.memory_space<vmem>>, %arg4: memref<6x16x1xf32, #tpu.memory_space<vmem>>, %arg5: memref<16x1xf32, #tpu.memory_space<vmem>>, %arg6: memref<1x1xf32, #tpu.memory_space<vmem>>, %arg7: memref<1x1x512xf32, #tpu.memory_space<vmem>>, %arg8: memref<16x1792xf32, #tpu.memory_space<vmem>>, %arg9: memref<16x1792xf32, #tpu.memory_space<vmem>>, %arg10: memref<144x512xbf16, #tpu.memory_space<vmem>>) attributes {dimension_semantics = [#tpu.dimension_semantics<parallel>], iteration_bounds = array<i64: 2>, scalar_prefetch = 0 : i64, scratch_operands = 3 : i64, tpu.core_type = #tpu.core_type<tc>, window_params = [{transform_indices = @transform_0, window_bounds = array<i64: 1, 16, 512>}, {transform_indices = @transform_1, window_bounds = array<i64: 1, 1, 512>}, {pipeline_mode = #tpu.pipeline_mode<synchronous>, transform_indices = @transform_2, window_bounds = array<i64: 6, 16, 144>}, {pipeline_mode = #tpu.pipeline_mode<synchronous>, transform_indices = @transform_3, window_bounds = array<i64: 6, 16, 1>}, {pipeline_mode = #tpu.pipeline_mode<synchronous>, transform_indices = @transform_4, window_bounds = array<i64: 16, 1>}, {pipeline_mode = #tpu.pipeline_mode<synchronous>, transform_indices = @transform_5, window_bounds = array<i64: 1, 1>}, {transform_indices = @transform_6, window_bounds = array<i64: 1, 1, 512>}]} {
    %cst = arith.constant 0.000000e+00 : f32
    %0 = vector.broadcast %cst : f32 to vector<16x1792xf32>
    %c0 = arith.constant 0 : index
    %c0_0 = arith.constant 0 : index
    %1 = vector.load %arg8[%c0, %c0_0] : memref<16x1792xf32, #tpu.memory_space<vmem>>, vector<16x1792xf32>
    tpu.vector_store %arg8[%c0, %c0_0], %0 {strides = array<i32>} : memref<16x1792xf32, #tpu.memory_space<vmem>>, vector<16x1792xf32>,
    %cst_1 = arith.constant 0.000000e+00 : f32
    %2 = vector.broadcast %cst_1 : f32 to vector<16x1792xf32>
    %c0_2 = arith.constant 0 : index
    %c0_3 = arith.constant 0 : index
    %3 = vector.load %arg9[%c0_2, %c0_3] : memref<16x1792xf32, #tpu.memory_space<vmem>>, vector<16x1792xf32>
    tpu.vector_store %arg9[%c0_2, %c0_3], %2 {strides = array<i32>} : memref<16x1792xf32, #tpu.memory_space<vmem>>, vector<16x1792xf32>,
    %c0_4 = arith.constant 0 : index
    %c0_5 = arith.constant 0 : index
    %c0_6 = arith.constant 0 : index
    %4 = vector.load %arg1[%c0_4, %c0_5, %c0_6] : memref<1x16x512xf32, #tpu.memory_space<vmem>>, vector<1x16x512xf32>
    %5 = vector.shape_cast %4 : vector<1x16x512xf32> to vector<16x512xf32>
    %c0_7 = arith.constant 0 : index
    %c0_8 = arith.constant 0 : index
    %c0_9 = arith.constant 0 : index
    %6 = vector.load %arg2[%c0_7, %c0_8, %c0_9] : memref<1x1x512xf32, #tpu.memory_space<vmem>>, vector<1x1x512xf32>
    %7 = vector.shape_cast %6 : vector<1x1x512xf32> to vector<1x512xf32>
    %8 = vector.broadcast %7 : vector<1x512xf32> to vector<16x512xf32>
    %9 = arith.mulf %5, %8 : vector<16x512xf32>
    %c0_10 = arith.constant 0 : index
    %c640 = arith.constant 640 : index
    %10 = vector.load %arg8[%c0_10, %c640] : memref<16x1792xf32, #tpu.memory_space<vmem>>, vector<16x512xf32>
    tpu.vector_store %arg8[%c0_10, %c640], %9 {strides = array<i32>} : memref<16x1792xf32, #tpu.memory_space<vmem>>, vector<16x512xf32>,
    %11 = tpu.iota {dimensions = array<i32: 1>} : vector<1x512xi32>
    %c32_i32 = arith.constant 32 : i32
    %c0_i32 = arith.constant 0 : i32
    %12 = arith.cmpi eq, %c32_i32, %c0_i32 : i32
    %c1_i32 = arith.constant 1 : i32
    %13 = arith.select %12, %c1_i32, %c32_i32 : i32
    %14 = vector.broadcast %13 : i32 to vector<1x512xi32>
    %15 = arith.remsi %11, %14 : vector<1x512xi32>
    %c0_i32_11 = arith.constant 0 : i32
    %16 = vector.broadcast %c0_i32_11 : i32 to vector<1x512xi32>
    %17 = arith.cmpi ne, %15, %16 : vector<1x512xi32>
    %c0_i32_12 = arith.constant 0 : i32
    %18 = vector.broadcast %c0_i32_12 : i32 to vector<1x512xi32>
    %19 = arith.cmpi slt, %15, %18 : vector<1x512xi32>
    %c0_i32_13 = arith.constant 0 : i32
    %20 = arith.cmpi slt, %13, %c0_i32_13 : i32
    %21 = vector.broadcast %20 : i1 to vector<1x512xi1>
    %22 = vector.broadcast %21 : vector<1x512xi1> to vector<1x512xi1>
    %23 = arith.xori %19, %22 : vector<1x512xi1>
    %24 = arith.andi %23, %17 : vector<1x512xi1>
    %25 = vector.broadcast %13 : i32 to vector<1x512xi32>
    %26 = arith.addi %15, %25 : vector<1x512xi32>
    %27 = arith.select %24, %26, %15 : vector<1x512xi1>, vector<1x512xi32>
    %c16_i32 = arith.constant 16 : i32
    %28 = vector.broadcast %c16_i32 : i32 to vector<1x512xi32>
    %29 = arith.cmpi slt, %27, %28 : vector<1x512xi32>
    %c512_i32 = arith.constant 512 : i32
    %30 = vector.broadcast %c512_i32 : i32 to vector<1x512xi32>
    %31 = arith.cmpi slt, %11, %30 : vector<1x512xi32>
    %32 = arith.andi %29, %31 : vector<1x512xi1>
    %cst_14 = arith.constant 1.000000e+00 : f32
    %cst_15 = arith.constant 0.000000e+00 : f32
    %33 = vector.broadcast %cst_14 : f32 to vector<1x512xf32>
    %34 = vector.broadcast %cst_15 : f32 to vector<1x512xf32>
    %35 = arith.select %32, %33, %34 : vector<1x512xi1>, vector<1x512xf32>
    %36 = vector.shape_cast %35 : vector<1x512xf32> to vector<1x512xf32>
    %37 = vector.broadcast %36 : vector<1x512xf32> to vector<16x512xf32>
    %c0_16 = arith.constant 0 : index
    %c607 = arith.constant 607 : index
    %38 = vector.load %arg8[%c0_16, %c607] : memref<16x1792xf32, #tpu.memory_space<vmem>>, vector<16x512xf32>
    %39 = arith.truncf %38 : vector<16x512xf32> to vector<16x512xbf16>
    %c0_17 = arith.constant 0 : index
    %c0_18 = arith.constant 0 : index
    %40 = vector.load %arg10[%c0_17, %c0_18] : memref<144x512xbf16, #tpu.memory_space<vmem>>, vector<16x512xbf16>
    tpu.vector_store %arg10[%c0_17, %c0_18], %39 {strides = array<i32>} : memref<144x512xbf16, #tpu.memory_space<vmem>>, vector<16x512xbf16>,
    %c0_19 = arith.constant 0 : index
    %c608 = arith.constant 608 : index
    %41 = vector.load %arg8[%c0_19, %c608] : memref<16x1792xf32, #tpu.memory_space<vmem>>, vector<16x512xf32>
    %42 = arith.truncf %41 : vector<16x512xf32> to vector<16x512xbf16>
    %c16 = arith.constant 16 : index
    %c0_20 = arith.constant 0 : index
    %43 = vector.load %arg10[%c16, %c0_20] : memref<144x512xbf16, #tpu.memory_space<vmem>>, vector<16x512xbf16>
    tpu.vector_store %arg10[%c16, %c0_20], %42 {strides = array<i32>} : memref<144x512xbf16, #tpu.memory_space<vmem>>, vector<16x512xbf16>,
    %c0_21 = arith.constant 0 : index
    %c609 = arith.constant 609 : index
    %44 = vector.load %arg8[%c0_21, %c609] : memref<16x1792xf32, #tpu.memory_space<vmem>>, vector<16x512xf32>
    %45 = arith.truncf %44 : vector<16x512xf32> to vector<16x512xbf16>
    %c32 = arith.constant 32 : index
    %c0_22 = arith.constant 0 : index
    %46 = vector.load %arg10[%c32, %c0_22] : memref<144x512xbf16, #tpu.memory_space<vmem>>, vector<16x512xbf16>
    tpu.vector_store %arg10[%c32, %c0_22], %45 {strides = array<i32>} : memref<144x512xbf16, #tpu.memory_space<vmem>>, vector<16x512xbf16>,
    %c0_23 = arith.constant 0 : index
    %c639 = arith.constant 639 : index
    %47 = vector.load %arg8[%c0_23, %c639] : memref<16x1792xf32, #tpu.memory_space<vmem>>, vector<16x512xf32>
    %48 = arith.truncf %47 : vector<16x512xf32> to vector<16x512xbf16>
    %c48 = arith.constant 48 : index
    %c0_24 = arith.constant 0 : index
    %49 = vector.load %arg10[%c48, %c0_24] : memref<144x512xbf16, #tpu.memory_space<vmem>>, vector<16x512xbf16>
    tpu.vector_store %arg10[%c48, %c0_24], %48 {strides = array<i32>} : memref<144x512xbf16, #tpu.memory_space<vmem>>, vector<16x512xbf16>,
    %c0_25 = arith.constant 0 : index
    %c640_26 = arith.constant 640 : index
    %50 = vector.load %arg8[%c0_25, %c640_26] : memref<16x1792xf32, #tpu.memory_space<vmem>>, vector<16x512xf32>
    %51 = arith.truncf %50 : vector<16x512xf32> to vector<16x512xbf16>
    %c64 = arith.constant 64 : index
    %c0_27 = arith.constant 0 : index
    %52 = vector.load %arg10[%c64, %c0_27] : memref<144x512xbf16, #tpu.memory_space<vmem>>, vector<16x512xbf16>
    tpu.vector_store %arg10[%c64, %c0_27], %51 {strides = array<i32>} : memref<144x512xbf16, #tpu.memory_space<vmem>>, vector<16x512xbf16>,
    %c0_28 = arith.constant 0 : index
    %c641 = arith.constant 641 : index
    %53 = vector.load %arg8[%c0_28, %c641] : memref<16x1792xf32, #tpu.memory_space<vmem>>, vector<16x512xf32>
    %54 = arith.truncf %53 : vector<16x512xf32> to vector<16x512xbf16>
    %c80 = arith.constant 80 : index
    %c0_29 = arith.constant 0 : index
    %55 = vector.load %arg10[%c80, %c0_29] : memref<144x512xbf16, #tpu.memory_space<vmem>>, vector<16x512xbf16>
    tpu.vector_store %arg10[%c80, %c0_29], %54 {strides = array<i32>} : memref<144x512xbf16, #tpu.memory_space<vmem>>, vector<16x512xbf16>,
    %c0_30 = arith.constant 0 : index
    %c671 = arith.constant 671 : index
    %56 = vector.load %arg8[%c0_30, %c671] : memref<16x1792xf32, #tpu.memory_space<vmem>>, vector<16x512xf32>
    %57 = arith.truncf %56 : vector<16x512xf32> to vector<16x512xbf16>
    %c96 = arith.constant 96 : index
    %c0_31 = arith.constant 0 : index
    %58 = vector.load %arg10[%c96, %c0_31] : memref<144x512xbf16, #tpu.memory_space<vmem>>, vector<16x512xbf16>
    tpu.vector_store %arg10[%c96, %c0_31], %57 {strides = array<i32>} : memref<144x512xbf16, #tpu.memory_space<vmem>>, vector<16x512xbf16>,
    %c0_32 = arith.constant 0 : index
    %c672 = arith.constant 672 : index
    %59 = vector.load %arg8[%c0_32, %c672] : memref<16x1792xf32, #tpu.memory_space<vmem>>, vector<16x512xf32>
    %60 = arith.truncf %59 : vector<16x512xf32> to vector<16x512xbf16>
    %c112 = arith.constant 112 : index
    %c0_33 = arith.constant 0 : index
    %61 = vector.load %arg10[%c112, %c0_33] : memref<144x512xbf16, #tpu.memory_space<vmem>>, vector<16x512xbf16>
    tpu.vector_store %arg10[%c112, %c0_33], %60 {strides = array<i32>} : memref<144x512xbf16, #tpu.memory_space<vmem>>, vector<16x512xbf16>,
    %c0_34 = arith.constant 0 : index
    %c673 = arith.constant 673 : index
    %62 = vector.load %arg8[%c0_34, %c673] : memref<16x1792xf32, #tpu.memory_space<vmem>>, vector<16x512xf32>
    %63 = arith.truncf %62 : vector<16x512xf32> to vector<16x512xbf16>
    %c128 = arith.constant 128 : index
    %c0_35 = arith.constant 0 : index
    %64 = vector.load %arg10[%c128, %c0_35] : memref<144x512xbf16, #tpu.memory_space<vmem>>, vector<16x512xbf16>
    tpu.vector_store %arg10[%c128, %c0_35], %63 {strides = array<i32>} : memref<144x512xbf16, #tpu.memory_space<vmem>>, vector<16x512xbf16>,
    %c0_36 = arith.constant 0 : index
    %c0_37 = arith.constant 0 : index
    %c0_38 = arith.constant 0 : index
    %65 = vector.load %arg3[%c0_36, %c0_37, %c0_38] : memref<6x16x144xbf16, #tpu.memory_space<vmem>>, vector<1x16x144xbf16>
    %66 = vector.shape_cast %65 : vector<1x16x144xbf16> to vector<16x144xbf16>
    %c0_39 = arith.constant 0 : index
    %c0_40 = arith.constant 0 : index
    %67 = vector.load %arg10[%c0_39, %c0_40] : memref<144x512xbf16, #tpu.memory_space<vmem>>, vector<144x512xbf16>
    %cst_41 = arith.constant dense<0.000000e+00> : vector<16x512xf32>
    %68 = tpu.matmul %66, %67, %cst_41 {dimension_numbers = #tpu.dot_dimension_numbers<[1], [0], [0], [1], [0, 0, 1, 1], [], []>} : vector<16x144xbf16>, vector<144x512xbf16>, vector<16x512xf32> -> vector<16x512xf32>
    %c0_42 = arith.constant 0 : index
    %c0_43 = arith.constant 0 : index
    %c0_44 = arith.constant 0 : index
    %69 = vector.load %arg4[%c0_42, %c0_43, %c0_44] : memref<6x16x1xf32, #tpu.memory_space<vmem>>, vector<1x16x1xf32>
    %70 = vector.shape_cast %69 : vector<1x16x1xf32> to vector<16x1xf32>
    %71 = vector.broadcast %70 : vector<16x1xf32> to vector<16x512xf32>
    %72 = arith.addf %68, %71 : vector<16x512xf32>
    %cst_45 = arith.constant 0.000000e+00 : f32
    %73 = vector.broadcast %cst_45 : f32 to vector<16x512xf32>
    %74 = arith.maximumf %72, %73 : vector<16x512xf32>
    %75 = arith.mulf %74, %37 : vector<16x512xf32>
    %c0_46 = arith.constant 0 : index
    %c640_47 = arith.constant 640 : index
    %76 = vector.load %arg9[%c0_46, %c640_47] : memref<16x1792xf32, #tpu.memory_space<vmem>>, vector<16x512xf32>
    tpu.vector_store %arg9[%c0_46, %c640_47], %75 {strides = array<i32>} : memref<16x1792xf32, #tpu.memory_space<vmem>>, vector<16x512xf32>,
    %c0_48 = arith.constant 0 : index
    %c574 = arith.constant 574 : index
    %77 = vector.load %arg9[%c0_48, %c574] : memref<16x1792xf32, #tpu.memory_space<vmem>>, vector<16x512xf32>
    %78 = arith.truncf %77 : vector<16x512xf32> to vector<16x512xbf16>
    %c0_49 = arith.constant 0 : index
    %c0_50 = arith.constant 0 : index
    %79 = vector.load %arg10[%c0_49, %c0_50] : memref<144x512xbf16, #tpu.memory_space<vmem>>, vector<16x512xbf16>
    tpu.vector_store %arg10[%c0_49, %c0_50], %78 {strides = array<i32>} : memref<144x512xbf16, #tpu.memory_space<vmem>>, vector<16x512xbf16>,
    %c0_51 = arith.constant 0 : index
    %c576 = arith.constant 576 : index
    %80 = vector.load %arg9[%c0_51, %c576] : memref<16x1792xf32, #tpu.memory_space<vmem>>, vector<16x512xf32>
    %81 = arith.truncf %80 : vector<16x512xf32> to vector<16x512xbf16>
    %c16_52 = arith.constant 16 : index
    %c0_53 = arith.constant 0 : index
    %82 = vector.load %arg10[%c16_52, %c0_53] : memref<144x512xbf16, #tpu.memory_space<vmem>>, vector<16x512xbf16>
    tpu.vector_store %arg10[%c16_52, %c0_53], %81 {strides = array<i32>} : memref<144x512xbf16, #tpu.memory_space<vmem>>, vector<16x512xbf16>,
    %c0_54 = arith.constant 0 : index
    %c578 = arith.constant 578 : index
    %83 = vector.load %arg9[%c0_54, %c578] : memref<16x1792xf32, #tpu.memory_space<vmem>>, vector<16x512xf32>
    %84 = arith.truncf %83 : vector<16x512xf32> to vector<16x512xbf16>
    %c32_55 = arith.constant 32 : index
    %c0_56 = arith.constant 0 : index
    %85 = vector.load %arg10[%c32_55, %c0_56] : memref<144x512xbf16, #tpu.memory_space<vmem>>, vector<16x512xbf16>
    tpu.vector_store %arg10[%c32_55, %c0_56], %84 {strides = array<i32>} : memref<144x512xbf16, #tpu.memory_space<vmem>>, vector<16x512xbf16>,
    %c0_57 = arith.constant 0 : index
    %c638 = arith.constant 638 : index
    %86 = vector.load %arg9[%c0_57, %c638] : memref<16x1792xf32, #tpu.memory_space<vmem>>, vector<16x512xf32>
    %87 = arith.truncf %86 : vector<16x512xf32> to vector<16x512xbf16>
    %c48_58 = arith.constant 48 : index
    %c0_59 = arith.constant 0 : index
    %88 = vector.load %arg10[%c48_58, %c0_59] : memref<144x512xbf16, #tpu.memory_space<vmem>>, vector<16x512xbf16>
    tpu.vector_store %arg10[%c48_58, %c0_59], %87 {strides = array<i32>} : memref<144x512xbf16, #tpu.memory_space<vmem>>, vector<16x512xbf16>,
    %c0_60 = arith.constant 0 : index
    %c640_61 = arith.constant 640 : index
    %89 = vector.load %arg9[%c0_60, %c640_61] : memref<16x1792xf32, #tpu.memory_space<vmem>>, vector<16x512xf32>
    %90 = arith.truncf %89 : vector<16x512xf32> to vector<16x512xbf16>
    %c64_62 = arith.constant 64 : index
    %c0_63 = arith.constant 0 : index
    %91 = vector.load %arg10[%c64_62, %c0_63] : memref<144x512xbf16, #tpu.memory_space<vmem>>, vector<16x512xbf16>
    tpu.vector_store %arg10[%c64_62, %c0_63], %90 {strides = array<i32>} : memref<144x512xbf16, #tpu.memory_space<vmem>>, vector<16x512xbf16>,
    %c0_64 = arith.constant 0 : index
    %c642 = arith.constant 642 : index
    %92 = vector.load %arg9[%c0_64, %c642] : memref<16x1792xf32, #tpu.memory_space<vmem>>, vector<16x512xf32>
    %93 = arith.truncf %92 : vector<16x512xf32> to vector<16x512xbf16>
    %c80_65 = arith.constant 80 : index
    %c0_66 = arith.constant 0 : index
    %94 = vector.load %arg10[%c80_65, %c0_66] : memref<144x512xbf16, #tpu.memory_space<vmem>>, vector<16x512xbf16>
    tpu.vector_store %arg10[%c80_65, %c0_66], %93 {strides = array<i32>} : memref<144x512xbf16, #tpu.memory_space<vmem>>, vector<16x512xbf16>,
    %c0_67 = arith.constant 0 : index
    %c702 = arith.constant 702 : index
    %95 = vector.load %arg9[%c0_67, %c702] : memref<16x1792xf32, #tpu.memory_space<vmem>>, vector<16x512xf32>
    %96 = arith.truncf %95 : vector<16x512xf32> to vector<16x512xbf16>
    %c96_68 = arith.constant 96 : index
    %c0_69 = arith.constant 0 : index
    %97 = vector.load %arg10[%c96_68, %c0_69] : memref<144x512xbf16, #tpu.memory_space<vmem>>, vector<16x512xbf16>
    tpu.vector_store %arg10[%c96_68, %c0_69], %96 {strides = array<i32>} : memref<144x512xbf16, #tpu.memory_space<vmem>>, vector<16x512xbf16>,
    %c0_70 = arith.constant 0 : index
    %c704 = arith.constant 704 : index
    %98 = vector.load %arg9[%c0_70, %c704] : memref<16x1792xf32, #tpu.memory_space<vmem>>, vector<16x512xf32>
    %99 = arith.truncf %98 : vector<16x512xf32> to vector<16x512xbf16>
    %c112_71 = arith.constant 112 : index
    %c0_72 = arith.constant 0 : index
    %100 = vector.load %arg10[%c112_71, %c0_72] : memref<144x512xbf16, #tpu.memory_space<vmem>>, vector<16x512xbf16>
    tpu.vector_store %arg10[%c112_71, %c0_72], %99 {strides = array<i32>} : memref<144x512xbf16, #tpu.memory_space<vmem>>, vector<16x512xbf16>,
    %c0_73 = arith.constant 0 : index
    %c706 = arith.constant 706 : index
    %101 = vector.load %arg9[%c0_73, %c706] : memref<16x1792xf32, #tpu.memory_space<vmem>>, vector<16x512xf32>
    %102 = arith.truncf %101 : vector<16x512xf32> to vector<16x512xbf16>
    %c128_74 = arith.constant 128 : index
    %c0_75 = arith.constant 0 : index
    %103 = vector.load %arg10[%c128_74, %c0_75] : memref<144x512xbf16, #tpu.memory_space<vmem>>, vector<16x512xbf16>
    tpu.vector_store %arg10[%c128_74, %c0_75], %102 {strides = array<i32>} : memref<144x512xbf16, #tpu.memory_space<vmem>>, vector<16x512xbf16>,
    %c1 = arith.constant 1 : index
    %c0_76 = arith.constant 0 : index
    %c0_77 = arith.constant 0 : index
    %104 = vector.load %arg3[%c1, %c0_76, %c0_77] : memref<6x16x144xbf16, #tpu.memory_space<vmem>>, vector<1x16x144xbf16>
    %105 = vector.shape_cast %104 : vector<1x16x144xbf16> to vector<16x144xbf16>
    %c0_78 = arith.constant 0 : index
    %c0_79 = arith.constant 0 : index
    %106 = vector.load %arg10[%c0_78, %c0_79] : memref<144x512xbf16, #tpu.memory_space<vmem>>, vector<144x512xbf16>
    %cst_80 = arith.constant dense<0.000000e+00> : vector<16x512xf32>
    %107 = tpu.matmul %105, %106, %cst_80 {dimension_numbers = #tpu.dot_dimension_numbers<[1], [0], [0], [1], [0, 0, 1, 1], [], []>} : vector<16x144xbf16>, vector<144x512xbf16>, vector<16x512xf32> -> vector<16x512xf32>
    %c1_81 = arith.constant 1 : index
    %c0_82 = arith.constant 0 : index
    %c0_83 = arith.constant 0 : index
    %108 = vector.load %arg4[%c1_81, %c0_82, %c0_83] : memref<6x16x1xf32, #tpu.memory_space<vmem>>, vector<1x16x1xf32>
    %109 = vector.shape_cast %108 : vector<1x16x1xf32> to vector<16x1xf32>
    %110 = vector.broadcast %109 : vector<16x1xf32> to vector<16x512xf32>
    %111 = arith.addf %107, %110 : vector<16x512xf32>
    %cst_84 = arith.constant 0.000000e+00 : f32
    %112 = vector.broadcast %cst_84 : f32 to vector<16x512xf32>
    %113 = arith.maximumf %111, %112 : vector<16x512xf32>
    %114 = arith.mulf %113, %37 : vector<16x512xf32>
    %c0_85 = arith.constant 0 : index
    %c640_86 = arith.constant 640 : index
    %115 = vector.load %arg8[%c0_85, %c640_86] : memref<16x1792xf32, #tpu.memory_space<vmem>>, vector<16x512xf32>
    tpu.vector_store %arg8[%c0_85, %c640_86], %114 {strides = array<i32>} : memref<16x1792xf32, #tpu.memory_space<vmem>>, vector<16x512xf32>,
    %c0_87 = arith.constant 0 : index
    %c508 = arith.constant 508 : index
    %116 = vector.load %arg8[%c0_87, %c508] : memref<16x1792xf32, #tpu.memory_space<vmem>>, vector<16x512xf32>
    %117 = arith.truncf %116 : vector<16x512xf32> to vector<16x512xbf16>
    %c0_88 = arith.constant 0 : index
    %c0_89 = arith.constant 0 : index
    %118 = vector.load %arg10[%c0_88, %c0_89] : memref<144x512xbf16, #tpu.memory_space<vmem>>, vector<16x512xbf16>
    tpu.vector_store %arg10[%c0_88, %c0_89], %117 {strides = array<i32>} : memref<144x512xbf16, #tpu.memory_space<vmem>>, vector<16x512xbf16>,
    %c0_90 = arith.constant 0 : index
    %c512 = arith.constant 512 : index
    %119 = vector.load %arg8[%c0_90, %c512] : memref<16x1792xf32, #tpu.memory_space<vmem>>, vector<16x512xf32>
    %120 = arith.truncf %119 : vector<16x512xf32> to vector<16x512xbf16>
    %c16_91 = arith.constant 16 : index
    %c0_92 = arith.constant 0 : index
    %121 = vector.load %arg10[%c16_91, %c0_92] : memref<144x512xbf16, #tpu.memory_space<vmem>>, vector<16x512xbf16>
    tpu.vector_store %arg10[%c16_91, %c0_92], %120 {strides = array<i32>} : memref<144x512xbf16, #tpu.memory_space<vmem>>, vector<16x512xbf16>,
    %c0_93 = arith.constant 0 : index
    %c516 = arith.constant 516 : index
    %122 = vector.load %arg8[%c0_93, %c516] : memref<16x1792xf32, #tpu.memory_space<vmem>>, vector<16x512xf32>
    %123 = arith.truncf %122 : vector<16x512xf32> to vector<16x512xbf16>
    %c32_94 = arith.constant 32 : index
    %c0_95 = arith.constant 0 : index
    %124 = vector.load %arg10[%c32_94, %c0_95] : memref<144x512xbf16, #tpu.memory_space<vmem>>, vector<16x512xbf16>
    tpu.vector_store %arg10[%c32_94, %c0_95], %123 {strides = array<i32>} : memref<144x512xbf16, #tpu.memory_space<vmem>>, vector<16x512xbf16>,
    %c0_96 = arith.constant 0 : index
    %c636 = arith.constant 636 : index
    %125 = vector.load %arg8[%c0_96, %c636] : memref<16x1792xf32, #tpu.memory_space<vmem>>, vector<16x512xf32>
    %126 = arith.truncf %125 : vector<16x512xf32> to vector<16x512xbf16>
    %c48_97 = arith.constant 48 : index
    %c0_98 = arith.constant 0 : index
    %127 = vector.load %arg10[%c48_97, %c0_98] : memref<144x512xbf16, #tpu.memory_space<vmem>>, vector<16x512xbf16>
    tpu.vector_store %arg10[%c48_97, %c0_98], %126 {strides = array<i32>} : memref<144x512xbf16, #tpu.memory_space<vmem>>, vector<16x512xbf16>,
    %c0_99 = arith.constant 0 : index
    %c640_100 = arith.constant 640 : index
    %128 = vector.load %arg8[%c0_99, %c640_100] : memref<16x1792xf32, #tpu.memory_space<vmem>>, vector<16x512xf32>
    %129 = arith.truncf %128 : vector<16x512xf32> to vector<16x512xbf16>
    %c64_101 = arith.constant 64 : index
    %c0_102 = arith.constant 0 : index
    %130 = vector.load %arg10[%c64_101, %c0_102] : memref<144x512xbf16, #tpu.memory_space<vmem>>, vector<16x512xbf16>
    tpu.vector_store %arg10[%c64_101, %c0_102], %129 {strides = array<i32>} : memref<144x512xbf16, #tpu.memory_space<vmem>>, vector<16x512xbf16>,
    %c0_103 = arith.constant 0 : index
    %c644 = arith.constant 644 : index
    %131 = vector.load %arg8[%c0_103, %c644] : memref<16x1792xf32, #tpu.memory_space<vmem>>, vector<16x512xf32>
    %132 = arith.truncf %131 : vector<16x512xf32> to vector<16x512xbf16>
    %c80_104 = arith.constant 80 : index
    %c0_105 = arith.constant 0 : index
    %133 = vector.load %arg10[%c80_104, %c0_105] : memref<144x512xbf16, #tpu.memory_space<vmem>>, vector<16x512xbf16>
    tpu.vector_store %arg10[%c80_104, %c0_105], %132 {strides = array<i32>} : memref<144x512xbf16, #tpu.memory_space<vmem>>, vector<16x512xbf16>,
    %c0_106 = arith.constant 0 : index
    %c764 = arith.constant 764 : index
    %134 = vector.load %arg8[%c0_106, %c764] : memref<16x1792xf32, #tpu.memory_space<vmem>>, vector<16x512xf32>
    %135 = arith.truncf %134 : vector<16x512xf32> to vector<16x512xbf16>
    %c96_107 = arith.constant 96 : index
    %c0_108 = arith.constant 0 : index
    %136 = vector.load %arg10[%c96_107, %c0_108] : memref<144x512xbf16, #tpu.memory_space<vmem>>, vector<16x512xbf16>
    tpu.vector_store %arg10[%c96_107, %c0_108], %135 {strides = array<i32>} : memref<144x512xbf16, #tpu.memory_space<vmem>>, vector<16x512xbf16>,
    %c0_109 = arith.constant 0 : index
    %c768 = arith.constant 768 : index
    %137 = vector.load %arg8[%c0_109, %c768] : memref<16x1792xf32, #tpu.memory_space<vmem>>, vector<16x512xf32>
    %138 = arith.truncf %137 : vector<16x512xf32> to vector<16x512xbf16>
    %c112_110 = arith.constant 112 : index
    %c0_111 = arith.constant 0 : index
    %139 = vector.load %arg10[%c112_110, %c0_111] : memref<144x512xbf16, #tpu.memory_space<vmem>>, vector<16x512xbf16>
    tpu.vector_store %arg10[%c112_110, %c0_111], %138 {strides = array<i32>} : memref<144x512xbf16, #tpu.memory_space<vmem>>, vector<16x512xbf16>,
    %c0_112 = arith.constant 0 : index
    %c772 = arith.constant 772 : index
    %140 = vector.load %arg8[%c0_112, %c772] : memref<16x1792xf32, #tpu.memory_space<vmem>>, vector<16x512xf32>
    %141 = arith.truncf %140 : vector<16x512xf32> to vector<16x512xbf16>
    %c128_113 = arith.constant 128 : index
    %c0_114 = arith.constant 0 : index
    %142 = vector.load %arg10[%c128_113, %c0_114] : memref<144x512xbf16, #tpu.memory_space<vmem>>, vector<16x512xbf16>
    tpu.vector_store %arg10[%c128_113, %c0_114], %141 {strides = array<i32>} : memref<144x512xbf16, #tpu.memory_space<vmem>>, vector<16x512xbf16>,
    %c2 = arith.constant 2 : index
    %c0_115 = arith.constant 0 : index
    %c0_116 = arith.constant 0 : index
    %143 = vector.load %arg3[%c2, %c0_115, %c0_116] : memref<6x16x144xbf16, #tpu.memory_space<vmem>>, vector<1x16x144xbf16>
    %144 = vector.shape_cast %143 : vector<1x16x144xbf16> to vector<16x144xbf16>
    %c0_117 = arith.constant 0 : index
    %c0_118 = arith.constant 0 : index
    %145 = vector.load %arg10[%c0_117, %c0_118] : memref<144x512xbf16, #tpu.memory_space<vmem>>, vector<144x512xbf16>
    %cst_119 = arith.constant dense<0.000000e+00> : vector<16x512xf32>
    %146 = tpu.matmul %144, %145, %cst_119 {dimension_numbers = #tpu.dot_dimension_numbers<[1], [0], [0], [1], [0, 0, 1, 1], [], []>} : vector<16x144xbf16>, vector<144x512xbf16>, vector<16x512xf32> -> vector<16x512xf32>
    %c2_120 = arith.constant 2 : index
    %c0_121 = arith.constant 0 : index
    %c0_122 = arith.constant 0 : index
    %147 = vector.load %arg4[%c2_120, %c0_121, %c0_122] : memref<6x16x1xf32, #tpu.memory_space<vmem>>, vector<1x16x1xf32>
    %148 = vector.shape_cast %147 : vector<1x16x1xf32> to vector<16x1xf32>
    %149 = vector.broadcast %148 : vector<16x1xf32> to vector<16x512xf32>
    %150 = arith.addf %146, %149 : vector<16x512xf32>
    %cst_123 = arith.constant 0.000000e+00 : f32
    %151 = vector.broadcast %cst_123 : f32 to vector<16x512xf32>
    %152 = arith.maximumf %150, %151 : vector<16x512xf32>
    %153 = arith.mulf %152, %37 : vector<16x512xf32>
    %c0_124 = arith.constant 0 : index
    %c640_125 = arith.constant 640 : index
    %154 = vector.load %arg9[%c0_124, %c640_125] : memref<16x1792xf32, #tpu.memory_space<vmem>>, vector<16x512xf32>
    tpu.vector_store %arg9[%c0_124, %c640_125], %153 {strides = array<i32>} : memref<16x1792xf32, #tpu.memory_space<vmem>>, vector<16x512xf32>,
    %c0_126 = arith.constant 0 : index
    %c376 = arith.constant 376 : index
    %155 = vector.load %arg9[%c0_126, %c376] : memref<16x1792xf32, #tpu.memory_space<vmem>>, vector<16x512xf32>
    %156 = arith.truncf %155 : vector<16x512xf32> to vector<16x512xbf16>
    %c0_127 = arith.constant 0 : index
    %c0_128 = arith.constant 0 : index
    %157 = vector.load %arg10[%c0_127, %c0_128] : memref<144x512xbf16, #tpu.memory_space<vmem>>, vector<16x512xbf16>
    tpu.vector_store %arg10[%c0_127, %c0_128], %156 {strides = array<i32>} : memref<144x512xbf16, #tpu.memory_space<vmem>>, vector<16x512xbf16>,
    %c0_129 = arith.constant 0 : index
    %c384 = arith.constant 384 : index
    %158 = vector.load %arg9[%c0_129, %c384] : memref<16x1792xf32, #tpu.memory_space<vmem>>, vector<16x512xf32>
    %159 = arith.truncf %158 : vector<16x512xf32> to vector<16x512xbf16>
    %c16_130 = arith.constant 16 : index
    %c0_131 = arith.constant 0 : index
    %160 = vector.load %arg10[%c16_130, %c0_131] : memref<144x512xbf16, #tpu.memory_space<vmem>>, vector<16x512xbf16>
    tpu.vector_store %arg10[%c16_130, %c0_131], %159 {strides = array<i32>} : memref<144x512xbf16, #tpu.memory_space<vmem>>, vector<16x512xbf16>,
    %c0_132 = arith.constant 0 : index
    %c392 = arith.constant 392 : index
    %161 = vector.load %arg9[%c0_132, %c392] : memref<16x1792xf32, #tpu.memory_space<vmem>>, vector<16x512xf32>
    %162 = arith.truncf %161 : vector<16x512xf32> to vector<16x512xbf16>
    %c32_133 = arith.constant 32 : index
    %c0_134 = arith.constant 0 : index
    %163 = vector.load %arg10[%c32_133, %c0_134] : memref<144x512xbf16, #tpu.memory_space<vmem>>, vector<16x512xbf16>
    tpu.vector_store %arg10[%c32_133, %c0_134], %162 {strides = array<i32>} : memref<144x512xbf16, #tpu.memory_space<vmem>>, vector<16x512xbf16>,
    %c0_135 = arith.constant 0 : index
    %c632 = arith.constant 632 : index
    %164 = vector.load %arg9[%c0_135, %c632] : memref<16x1792xf32, #tpu.memory_space<vmem>>, vector<16x512xf32>
    %165 = arith.truncf %164 : vector<16x512xf32> to vector<16x512xbf16>
    %c48_136 = arith.constant 48 : index
    %c0_137 = arith.constant 0 : index
    %166 = vector.load %arg10[%c48_136, %c0_137] : memref<144x512xbf16, #tpu.memory_space<vmem>>, vector<16x512xbf16>
    tpu.vector_store %arg10[%c48_136, %c0_137], %165 {strides = array<i32>} : memref<144x512xbf16, #tpu.memory_space<vmem>>, vector<16x512xbf16>,
    %c0_138 = arith.constant 0 : index
    %c640_139 = arith.constant 640 : index
    %167 = vector.load %arg9[%c0_138, %c640_139] : memref<16x1792xf32, #tpu.memory_space<vmem>>, vector<16x512xf32>
    %168 = arith.truncf %167 : vector<16x512xf32> to vector<16x512xbf16>
    %c64_140 = arith.constant 64 : index
    %c0_141 = arith.constant 0 : index
    %169 = vector.load %arg10[%c64_140, %c0_141] : memref<144x512xbf16, #tpu.memory_space<vmem>>, vector<16x512xbf16>
    tpu.vector_store %arg10[%c64_140, %c0_141], %168 {strides = array<i32>} : memref<144x512xbf16, #tpu.memory_space<vmem>>, vector<16x512xbf16>,
    %c0_142 = arith.constant 0 : index
    %c648 = arith.constant 648 : index
    %170 = vector.load %arg9[%c0_142, %c648] : memref<16x1792xf32, #tpu.memory_space<vmem>>, vector<16x512xf32>
    %171 = arith.truncf %170 : vector<16x512xf32> to vector<16x512xbf16>
    %c80_143 = arith.constant 80 : index
    %c0_144 = arith.constant 0 : index
    %172 = vector.load %arg10[%c80_143, %c0_144] : memref<144x512xbf16, #tpu.memory_space<vmem>>, vector<16x512xbf16>
    tpu.vector_store %arg10[%c80_143, %c0_144], %171 {strides = array<i32>} : memref<144x512xbf16, #tpu.memory_space<vmem>>, vector<16x512xbf16>,
    %c0_145 = arith.constant 0 : index
    %c888 = arith.constant 888 : index
    %173 = vector.load %arg9[%c0_145, %c888] : memref<16x1792xf32, #tpu.memory_space<vmem>>, vector<16x512xf32>
    %174 = arith.truncf %173 : vector<16x512xf32> to vector<16x512xbf16>
    %c96_146 = arith.constant 96 : index
    %c0_147 = arith.constant 0 : index
    %175 = vector.load %arg10[%c96_146, %c0_147] : memref<144x512xbf16, #tpu.memory_space<vmem>>, vector<16x512xbf16>
    tpu.vector_store %arg10[%c96_146, %c0_147], %174 {strides = array<i32>} : memref<144x512xbf16, #tpu.memory_space<vmem>>, vector<16x512xbf16>,
    %c0_148 = arith.constant 0 : index
    %c896 = arith.constant 896 : index
    %176 = vector.load %arg9[%c0_148, %c896] : memref<16x1792xf32, #tpu.memory_space<vmem>>, vector<16x512xf32>
    %177 = arith.truncf %176 : vector<16x512xf32> to vector<16x512xbf16>
    %c112_149 = arith.constant 112 : index
    %c0_150 = arith.constant 0 : index
    %178 = vector.load %arg10[%c112_149, %c0_150] : memref<144x512xbf16, #tpu.memory_space<vmem>>, vector<16x512xbf16>
    tpu.vector_store %arg10[%c112_149, %c0_150], %177 {strides = array<i32>} : memref<144x512xbf16, #tpu.memory_space<vmem>>, vector<16x512xbf16>,
    %c0_151 = arith.constant 0 : index
    %c904 = arith.constant 904 : index
    %179 = vector.load %arg9[%c0_151, %c904] : memref<16x1792xf32, #tpu.memory_space<vmem>>, vector<16x512xf32>
    %180 = arith.truncf %179 : vector<16x512xf32> to vector<16x512xbf16>
    %c128_152 = arith.constant 128 : index
    %c0_153 = arith.constant 0 : index
    %181 = vector.load %arg10[%c128_152, %c0_153] : memref<144x512xbf16, #tpu.memory_space<vmem>>, vector<16x512xbf16>
    tpu.vector_store %arg10[%c128_152, %c0_153], %180 {strides = array<i32>} : memref<144x512xbf16, #tpu.memory_space<vmem>>, vector<16x512xbf16>,
    %c3 = arith.constant 3 : index
    %c0_154 = arith.constant 0 : index
    %c0_155 = arith.constant 0 : index
    %182 = vector.load %arg3[%c3, %c0_154, %c0_155] : memref<6x16x144xbf16, #tpu.memory_space<vmem>>, vector<1x16x144xbf16>
    %183 = vector.shape_cast %182 : vector<1x16x144xbf16> to vector<16x144xbf16>
    %c0_156 = arith.constant 0 : index
    %c0_157 = arith.constant 0 : index
    %184 = vector.load %arg10[%c0_156, %c0_157] : memref<144x512xbf16, #tpu.memory_space<vmem>>, vector<144x512xbf16>
    %cst_158 = arith.constant dense<0.000000e+00> : vector<16x512xf32>
    %185 = tpu.matmul %183, %184, %cst_158 {dimension_numbers = #tpu.dot_dimension_numbers<[1], [0], [0], [1], [0, 0, 1, 1], [], []>} : vector<16x144xbf16>, vector<144x512xbf16>, vector<16x512xf32> -> vector<16x512xf32>
    %c3_159 = arith.constant 3 : index
    %c0_160 = arith.constant 0 : index
    %c0_161 = arith.constant 0 : index
    %186 = vector.load %arg4[%c3_159, %c0_160, %c0_161] : memref<6x16x1xf32, #tpu.memory_space<vmem>>, vector<1x16x1xf32>
    %187 = vector.shape_cast %186 : vector<1x16x1xf32> to vector<16x1xf32>
    %188 = vector.broadcast %187 : vector<16x1xf32> to vector<16x512xf32>
    %189 = arith.addf %185, %188 : vector<16x512xf32>
    %cst_162 = arith.constant 0.000000e+00 : f32
    %190 = vector.broadcast %cst_162 : f32 to vector<16x512xf32>
    %191 = arith.maximumf %189, %190 : vector<16x512xf32>
    %192 = arith.mulf %191, %37 : vector<16x512xf32>
    %c0_163 = arith.constant 0 : index
    %c640_164 = arith.constant 640 : index
    %193 = vector.load %arg8[%c0_163, %c640_164] : memref<16x1792xf32, #tpu.memory_space<vmem>>, vector<16x512xf32>
    tpu.vector_store %arg8[%c0_163, %c640_164], %192 {strides = array<i32>} : memref<16x1792xf32, #tpu.memory_space<vmem>>, vector<16x512xf32>,
    %c0_165 = arith.constant 0 : index
    %c112_166 = arith.constant 112 : index
    %194 = vector.load %arg8[%c0_165, %c112_166] : memref<16x1792xf32, #tpu.memory_space<vmem>>, vector<16x512xf32>
    %195 = arith.truncf %194 : vector<16x512xf32> to vector<16x512xbf16>
    %c0_167 = arith.constant 0 : index
    %c0_168 = arith.constant 0 : index
    %196 = vector.load %arg10[%c0_167, %c0_168] : memref<144x512xbf16, #tpu.memory_space<vmem>>, vector<16x512xbf16>
    tpu.vector_store %arg10[%c0_167, %c0_168], %195 {strides = array<i32>} : memref<144x512xbf16, #tpu.memory_space<vmem>>, vector<16x512xbf16>,
    %c0_169 = arith.constant 0 : index
    %c128_170 = arith.constant 128 : index
    %197 = vector.load %arg8[%c0_169, %c128_170] : memref<16x1792xf32, #tpu.memory_space<vmem>>, vector<16x512xf32>
    %198 = arith.truncf %197 : vector<16x512xf32> to vector<16x512xbf16>
    %c16_171 = arith.constant 16 : index
    %c0_172 = arith.constant 0 : index
    %199 = vector.load %arg10[%c16_171, %c0_172] : memref<144x512xbf16, #tpu.memory_space<vmem>>, vector<16x512xbf16>
    tpu.vector_store %arg10[%c16_171, %c0_172], %198 {strides = array<i32>} : memref<144x512xbf16, #tpu.memory_space<vmem>>, vector<16x512xbf16>,
    %c0_173 = arith.constant 0 : index
    %c144 = arith.constant 144 : index
    %200 = vector.load %arg8[%c0_173, %c144] : memref<16x1792xf32, #tpu.memory_space<vmem>>, vector<16x512xf32>
    %201 = arith.truncf %200 : vector<16x512xf32> to vector<16x512xbf16>
    %c32_174 = arith.constant 32 : index
    %c0_175 = arith.constant 0 : index
    %202 = vector.load %arg10[%c32_174, %c0_175] : memref<144x512xbf16, #tpu.memory_space<vmem>>, vector<16x512xbf16>
    tpu.vector_store %arg10[%c32_174, %c0_175], %201 {strides = array<i32>} : memref<144x512xbf16, #tpu.memory_space<vmem>>, vector<16x512xbf16>,
    %c0_176 = arith.constant 0 : index
    %c624 = arith.constant 624 : index
    %203 = vector.load %arg8[%c0_176, %c624] : memref<16x1792xf32, #tpu.memory_space<vmem>>, vector<16x512xf32>
    %204 = arith.truncf %203 : vector<16x512xf32> to vector<16x512xbf16>
    %c48_177 = arith.constant 48 : index
    %c0_178 = arith.constant 0 : index
    %205 = vector.load %arg10[%c48_177, %c0_178] : memref<144x512xbf16, #tpu.memory_space<vmem>>, vector<16x512xbf16>
    tpu.vector_store %arg10[%c48_177, %c0_178], %204 {strides = array<i32>} : memref<144x512xbf16, #tpu.memory_space<vmem>>, vector<16x512xbf16>,
    %c0_179 = arith.constant 0 : index
    %c640_180 = arith.constant 640 : index
    %206 = vector.load %arg8[%c0_179, %c640_180] : memref<16x1792xf32, #tpu.memory_space<vmem>>, vector<16x512xf32>
    %207 = arith.truncf %206 : vector<16x512xf32> to vector<16x512xbf16>
    %c64_181 = arith.constant 64 : index
    %c0_182 = arith.constant 0 : index
    %208 = vector.load %arg10[%c64_181, %c0_182] : memref<144x512xbf16, #tpu.memory_space<vmem>>, vector<16x512xbf16>
    tpu.vector_store %arg10[%c64_181, %c0_182], %207 {strides = array<i32>} : memref<144x512xbf16, #tpu.memory_space<vmem>>, vector<16x512xbf16>,
    %c0_183 = arith.constant 0 : index
    %c656 = arith.constant 656 : index
    %209 = vector.load %arg8[%c0_183, %c656] : memref<16x1792xf32, #tpu.memory_space<vmem>>, vector<16x512xf32>
    %210 = arith.truncf %209 : vector<16x512xf32> to vector<16x512xbf16>
    %c80_184 = arith.constant 80 : index
    %c0_185 = arith.constant 0 : index
    %211 = vector.load %arg10[%c80_184, %c0_185] : memref<144x512xbf16, #tpu.memory_space<vmem>>, vector<16x512xbf16>
    tpu.vector_store %arg10[%c80_184, %c0_185], %210 {strides = array<i32>} : memref<144x512xbf16, #tpu.memory_space<vmem>>, vector<16x512xbf16>,
    %c0_186 = arith.constant 0 : index
    %c1136 = arith.constant 1136 : index
    %212 = vector.load %arg8[%c0_186, %c1136] : memref<16x1792xf32, #tpu.memory_space<vmem>>, vector<16x512xf32>
    %213 = arith.truncf %212 : vector<16x512xf32> to vector<16x512xbf16>
    %c96_187 = arith.constant 96 : index
    %c0_188 = arith.constant 0 : index
    %214 = vector.load %arg10[%c96_187, %c0_188] : memref<144x512xbf16, #tpu.memory_space<vmem>>, vector<16x512xbf16>
    tpu.vector_store %arg10[%c96_187, %c0_188], %213 {strides = array<i32>} : memref<144x512xbf16, #tpu.memory_space<vmem>>, vector<16x512xbf16>,
    %c0_189 = arith.constant 0 : index
    %c1152 = arith.constant 1152 : index
    %215 = vector.load %arg8[%c0_189, %c1152] : memref<16x1792xf32, #tpu.memory_space<vmem>>, vector<16x512xf32>
    %216 = arith.truncf %215 : vector<16x512xf32> to vector<16x512xbf16>
    %c112_190 = arith.constant 112 : index
    %c0_191 = arith.constant 0 : index
    %217 = vector.load %arg10[%c112_190, %c0_191] : memref<144x512xbf16, #tpu.memory_space<vmem>>, vector<16x512xbf16>
    tpu.vector_store %arg10[%c112_190, %c0_191], %216 {strides = array<i32>} : memref<144x512xbf16, #tpu.memory_space<vmem>>, vector<16x512xbf16>,
    %c0_192 = arith.constant 0 : index
    %c1168 = arith.constant 1168 : index
    %218 = vector.load %arg8[%c0_192, %c1168] : memref<16x1792xf32, #tpu.memory_space<vmem>>, vector<16x512xf32>
    %219 = arith.truncf %218 : vector<16x512xf32> to vector<16x512xbf16>
    %c128_193 = arith.constant 128 : index
    %c0_194 = arith.constant 0 : index
    %220 = vector.load %arg10[%c128_193, %c0_194] : memref<144x512xbf16, #tpu.memory_space<vmem>>, vector<16x512xbf16>
    tpu.vector_store %arg10[%c128_193, %c0_194], %219 {strides = array<i32>} : memref<144x512xbf16, #tpu.memory_space<vmem>>, vector<16x512xbf16>,
    %c4 = arith.constant 4 : index
    %c0_195 = arith.constant 0 : index
    %c0_196 = arith.constant 0 : index
    %221 = vector.load %arg3[%c4, %c0_195, %c0_196] : memref<6x16x144xbf16, #tpu.memory_space<vmem>>, vector<1x16x144xbf16>
    %222 = vector.shape_cast %221 : vector<1x16x144xbf16> to vector<16x144xbf16>
    %c0_197 = arith.constant 0 : index
    %c0_198 = arith.constant 0 : index
    %223 = vector.load %arg10[%c0_197, %c0_198] : memref<144x512xbf16, #tpu.memory_space<vmem>>, vector<144x512xbf16>
    %cst_199 = arith.constant dense<0.000000e+00> : vector<16x512xf32>
    %224 = tpu.matmul %222, %223, %cst_199 {dimension_numbers = #tpu.dot_dimension_numbers<[1], [0], [0], [1], [0, 0, 1, 1], [], []>} : vector<16x144xbf16>, vector<144x512xbf16>, vector<16x512xf32> -> vector<16x512xf32>
    %c4_200 = arith.constant 4 : index
    %c0_201 = arith.constant 0 : index
    %c0_202 = arith.constant 0 : index
    %225 = vector.load %arg4[%c4_200, %c0_201, %c0_202] : memref<6x16x1xf32, #tpu.memory_space<vmem>>, vector<1x16x1xf32>
    %226 = vector.shape_cast %225 : vector<1x16x1xf32> to vector<16x1xf32>
    %227 = vector.broadcast %226 : vector<16x1xf32> to vector<16x512xf32>
    %228 = arith.addf %224, %227 : vector<16x512xf32>
    %cst_203 = arith.constant 0.000000e+00 : f32
    %229 = vector.broadcast %cst_203 : f32 to vector<16x512xf32>
    %230 = arith.maximumf %228, %229 : vector<16x512xf32>
    %231 = arith.mulf %230, %37 : vector<16x512xf32>
    %c0_204 = arith.constant 0 : index
    %c640_205 = arith.constant 640 : index
    %232 = vector.load %arg9[%c0_204, %c640_205] : memref<16x1792xf32, #tpu.memory_space<vmem>>, vector<16x512xf32>
    tpu.vector_store %arg9[%c0_204, %c640_205], %231 {strides = array<i32>} : memref<16x1792xf32, #tpu.memory_space<vmem>>, vector<16x512xf32>,
    %c0_206 = arith.constant 0 : index
    %c607_207 = arith.constant 607 : index
    %233 = vector.load %arg9[%c0_206, %c607_207] : memref<16x1792xf32, #tpu.memory_space<vmem>>, vector<16x512xf32>
    %234 = arith.truncf %233 : vector<16x512xf32> to vector<16x512xbf16>
    %c0_208 = arith.constant 0 : index
    %c0_209 = arith.constant 0 : index
    %235 = vector.load %arg10[%c0_208, %c0_209] : memref<144x512xbf16, #tpu.memory_space<vmem>>, vector<16x512xbf16>
    tpu.vector_store %arg10[%c0_208, %c0_209], %234 {strides = array<i32>} : memref<144x512xbf16, #tpu.memory_space<vmem>>, vector<16x512xbf16>,
    %c0_210 = arith.constant 0 : index
    %c608_211 = arith.constant 608 : index
    %236 = vector.load %arg9[%c0_210, %c608_211] : memref<16x1792xf32, #tpu.memory_space<vmem>>, vector<16x512xf32>
    %237 = arith.truncf %236 : vector<16x512xf32> to vector<16x512xbf16>
    %c16_212 = arith.constant 16 : index
    %c0_213 = arith.constant 0 : index
    %238 = vector.load %arg10[%c16_212, %c0_213] : memref<144x512xbf16, #tpu.memory_space<vmem>>, vector<16x512xbf16>
    tpu.vector_store %arg10[%c16_212, %c0_213], %237 {strides = array<i32>} : memref<144x512xbf16, #tpu.memory_space<vmem>>, vector<16x512xbf16>,
    %c0_214 = arith.constant 0 : index
    %c609_215 = arith.constant 609 : index
    %239 = vector.load %arg9[%c0_214, %c609_215] : memref<16x1792xf32, #tpu.memory_space<vmem>>, vector<16x512xf32>
    %240 = arith.truncf %239 : vector<16x512xf32> to vector<16x512xbf16>
    %c32_216 = arith.constant 32 : index
    %c0_217 = arith.constant 0 : index
    %241 = vector.load %arg10[%c32_216, %c0_217] : memref<144x512xbf16, #tpu.memory_space<vmem>>, vector<16x512xbf16>
    tpu.vector_store %arg10[%c32_216, %c0_217], %240 {strides = array<i32>} : memref<144x512xbf16, #tpu.memory_space<vmem>>, vector<16x512xbf16>,
    %c0_218 = arith.constant 0 : index
    %c639_219 = arith.constant 639 : index
    %242 = vector.load %arg9[%c0_218, %c639_219] : memref<16x1792xf32, #tpu.memory_space<vmem>>, vector<16x512xf32>
    %243 = arith.truncf %242 : vector<16x512xf32> to vector<16x512xbf16>
    %c48_220 = arith.constant 48 : index
    %c0_221 = arith.constant 0 : index
    %244 = vector.load %arg10[%c48_220, %c0_221] : memref<144x512xbf16, #tpu.memory_space<vmem>>, vector<16x512xbf16>
    tpu.vector_store %arg10[%c48_220, %c0_221], %243 {strides = array<i32>} : memref<144x512xbf16, #tpu.memory_space<vmem>>, vector<16x512xbf16>,
    %c0_222 = arith.constant 0 : index
    %c640_223 = arith.constant 640 : index
    %245 = vector.load %arg9[%c0_222, %c640_223] : memref<16x1792xf32, #tpu.memory_space<vmem>>, vector<16x512xf32>
    %246 = arith.truncf %245 : vector<16x512xf32> to vector<16x512xbf16>
    %c64_224 = arith.constant 64 : index
    %c0_225 = arith.constant 0 : index
    %247 = vector.load %arg10[%c64_224, %c0_225] : memref<144x512xbf16, #tpu.memory_space<vmem>>, vector<16x512xbf16>
    tpu.vector_store %arg10[%c64_224, %c0_225], %246 {strides = array<i32>} : memref<144x512xbf16, #tpu.memory_space<vmem>>, vector<16x512xbf16>,
    %c0_226 = arith.constant 0 : index
    %c641_227 = arith.constant 641 : index
    %248 = vector.load %arg9[%c0_226, %c641_227] : memref<16x1792xf32, #tpu.memory_space<vmem>>, vector<16x512xf32>
    %249 = arith.truncf %248 : vector<16x512xf32> to vector<16x512xbf16>
    %c80_228 = arith.constant 80 : index
    %c0_229 = arith.constant 0 : index
    %250 = vector.load %arg10[%c80_228, %c0_229] : memref<144x512xbf16, #tpu.memory_space<vmem>>, vector<16x512xbf16>
    tpu.vector_store %arg10[%c80_228, %c0_229], %249 {strides = array<i32>} : memref<144x512xbf16, #tpu.memory_space<vmem>>, vector<16x512xbf16>,
    %c0_230 = arith.constant 0 : index
    %c671_231 = arith.constant 671 : index
    %251 = vector.load %arg9[%c0_230, %c671_231] : memref<16x1792xf32, #tpu.memory_space<vmem>>, vector<16x512xf32>
    %252 = arith.truncf %251 : vector<16x512xf32> to vector<16x512xbf16>
    %c96_232 = arith.constant 96 : index
    %c0_233 = arith.constant 0 : index
    %253 = vector.load %arg10[%c96_232, %c0_233] : memref<144x512xbf16, #tpu.memory_space<vmem>>, vector<16x512xbf16>
    tpu.vector_store %arg10[%c96_232, %c0_233], %252 {strides = array<i32>} : memref<144x512xbf16, #tpu.memory_space<vmem>>, vector<16x512xbf16>,
    %c0_234 = arith.constant 0 : index
    %c672_235 = arith.constant 672 : index
    %254 = vector.load %arg9[%c0_234, %c672_235] : memref<16x1792xf32, #tpu.memory_space<vmem>>, vector<16x512xf32>
    %255 = arith.truncf %254 : vector<16x512xf32> to vector<16x512xbf16>
    %c112_236 = arith.constant 112 : index
    %c0_237 = arith.constant 0 : index
    %256 = vector.load %arg10[%c112_236, %c0_237] : memref<144x512xbf16, #tpu.memory_space<vmem>>, vector<16x512xbf16>
    tpu.vector_store %arg10[%c112_236, %c0_237], %255 {strides = array<i32>} : memref<144x512xbf16, #tpu.memory_space<vmem>>, vector<16x512xbf16>,
    %c0_238 = arith.constant 0 : index
    %c673_239 = arith.constant 673 : index
    %257 = vector.load %arg9[%c0_238, %c673_239] : memref<16x1792xf32, #tpu.memory_space<vmem>>, vector<16x512xf32>
    %258 = arith.truncf %257 : vector<16x512xf32> to vector<16x512xbf16>
    %c128_240 = arith.constant 128 : index
    %c0_241 = arith.constant 0 : index
    %259 = vector.load %arg10[%c128_240, %c0_241] : memref<144x512xbf16, #tpu.memory_space<vmem>>, vector<16x512xbf16>
    tpu.vector_store %arg10[%c128_240, %c0_241], %258 {strides = array<i32>} : memref<144x512xbf16, #tpu.memory_space<vmem>>, vector<16x512xbf16>,
    %c5 = arith.constant 5 : index
    %c0_242 = arith.constant 0 : index
    %c0_243 = arith.constant 0 : index
    %260 = vector.load %arg3[%c5, %c0_242, %c0_243] : memref<6x16x144xbf16, #tpu.memory_space<vmem>>, vector<1x16x144xbf16>
    %261 = vector.shape_cast %260 : vector<1x16x144xbf16> to vector<16x144xbf16>
    %c0_244 = arith.constant 0 : index
    %c0_245 = arith.constant 0 : index
    %262 = vector.load %arg10[%c0_244, %c0_245] : memref<144x512xbf16, #tpu.memory_space<vmem>>, vector<144x512xbf16>
    %cst_246 = arith.constant dense<0.000000e+00> : vector<16x512xf32>
    %263 = tpu.matmul %261, %262, %cst_246 {dimension_numbers = #tpu.dot_dimension_numbers<[1], [0], [0], [1], [0, 0, 1, 1], [], []>} : vector<16x144xbf16>, vector<144x512xbf16>, vector<16x512xf32> -> vector<16x512xf32>
    %c5_247 = arith.constant 5 : index
    %c0_248 = arith.constant 0 : index
    %c0_249 = arith.constant 0 : index
    %264 = vector.load %arg4[%c5_247, %c0_248, %c0_249] : memref<6x16x1xf32, #tpu.memory_space<vmem>>, vector<1x16x1xf32>
    %265 = vector.shape_cast %264 : vector<1x16x1xf32> to vector<16x1xf32>
    %266 = vector.broadcast %265 : vector<16x1xf32> to vector<16x512xf32>
    %267 = arith.addf %263, %266 : vector<16x512xf32>
    %cst_250 = arith.constant 0.000000e+00 : f32
    %268 = vector.broadcast %cst_250 : f32 to vector<16x512xf32>
    %269 = arith.maximumf %267, %268 : vector<16x512xf32>
    %270 = arith.mulf %269, %37 : vector<16x512xf32>
    %c0_251 = arith.constant 0 : index
    %c640_252 = arith.constant 640 : index
    %271 = vector.load %arg8[%c0_251, %c640_252] : memref<16x1792xf32, #tpu.memory_space<vmem>>, vector<16x512xf32>
    tpu.vector_store %arg8[%c0_251, %c640_252], %270 {strides = array<i32>} : memref<16x1792xf32, #tpu.memory_space<vmem>>, vector<16x512xf32>,
    %c0_253 = arith.constant 0 : index
    %c640_254 = arith.constant 640 : index
    %272 = vector.load %arg8[%c0_253, %c640_254] : memref<16x1792xf32, #tpu.memory_space<vmem>>, vector<16x512xf32>
    %c0_255 = arith.constant 0 : index
    %c0_256 = arith.constant 0 : index
    %273 = vector.load %arg5[%c0_255, %c0_256] : memref<16x1xf32, #tpu.memory_space<vmem>>, vector<16x1xf32>
    %274 = vector.broadcast %273 : vector<16x1xf32> to vector<16x512xf32>
    %275 = arith.mulf %272, %274 : vector<16x512xf32>
    %cst_257 = arith.constant dense<0.000000e+00> : vector<512xf32>
    %276 = vector.multi_reduction <add>, %275, %cst_257 [0] : vector<16x512xf32> to vector<512xf32>
    %277 = vector.shape_cast %276 : vector<512xf32> to vector<1x512xf32>
    %c0_258 = arith.constant 0 : index
    %c0_259 = arith.constant 0 : index
    %278 = vector.load %arg6[%c0_258, %c0_259] : memref<1x1xf32, #tpu.memory_space<vmem>>, vector<1x1xf32>
    %279 = vector.broadcast %278 : vector<1x1xf32> to vector<1x512xf32>
    %280 = arith.addf %277, %279 : vector<1x512xf32>
    %cst_260 = arith.constant 0.000000e+00 : f32
    %281 = vector.broadcast %cst_260 : f32 to vector<1x512xf32>
    %282 = arith.subf %281, %280 : vector<1x512xf32>
    %283 = math.exp %282 : vector<1x512xf32>
    %cst_261 = arith.constant 1.000000e+00 : f32
    %284 = vector.broadcast %cst_261 : f32 to vector<1x512xf32>
    %285 = arith.addf %284, %283 : vector<1x512xf32>
    %cst_262 = arith.constant 1.000000e+00 : f32
    %286 = vector.broadcast %cst_262 : f32 to vector<1x512xf32>
    %287 = arith.divf %286, %285 : vector<1x512xf32>
    %c0_263 = arith.constant 0 : index
    %c0_264 = arith.constant 0 : index
    %c0_265 = arith.constant 0 : index
    %288 = vector.load %arg7[%c0_263, %c0_264, %c0_265] : memref<1x1x512xf32, #tpu.memory_space<vmem>>, vector<1x1x512xf32>
    %289 = vector.shape_cast %288 : vector<1x1x512xf32> to vector<1x512xf32>
    %290 = vector.shape_cast %287 : vector<1x512xf32> to vector<1x1x512xf32>
    tpu.vector_store %arg7[%c0_263, %c0_264, %c0_265], %290 {strides = array<i32>} : memref<1x1x512xf32, #tpu.memory_space<vmem>>, vector<1x1x512xf32>,
    return
  }
  func.func @transform_0(%arg0: i32) -> (i32, i32, i32) {
    %c0_i32 = arith.constant 0 : i32
    %c0_i32_0 = arith.constant 0 : i32
    %c0_i32_1 = arith.constant 0 : i32
    return %arg0, %c0_i32, %c0_i32_0 : i32, i32, i32
  }
  func.func @transform_1(%arg0: i32) -> (i32, i32, i32) {
    %c0_i32 = arith.constant 0 : i32
    %c0_i32_0 = arith.constant 0 : i32
    %c0_i32_1 = arith.constant 0 : i32
    return %arg0, %c0_i32, %c0_i32_0 : i32, i32, i32
  }
  func.func @transform_2(%arg0: i32) -> (i32, i32, i32) {
    %c0_i32 = arith.constant 0 : i32
    %c0_i32_0 = arith.constant 0 : i32
    %c0_i32_1 = arith.constant 0 : i32
    %c0_i32_2 = arith.constant 0 : i32
    return %c0_i32, %c0_i32_0, %c0_i32_1 : i32, i32, i32
  }
  func.func @transform_3(%arg0: i32) -> (i32, i32, i32) {
    %c0_i32 = arith.constant 0 : i32
    %c0_i32_0 = arith.constant 0 : i32
    %c0_i32_1 = arith.constant 0 : i32
    %c0_i32_2 = arith.constant 0 : i32
    return %c0_i32, %c0_i32_0, %c0_i32_1 : i32, i32, i32
  }
  func.func @transform_4(%arg0: i32) -> (i32, i32) {
    %c0_i32 = arith.constant 0 : i32
    %c0_i32_0 = arith.constant 0 : i32
    %c0_i32_1 = arith.constant 0 : i32
    return %c0_i32, %c0_i32_0 : i32, i32
  }
  func.func @transform_5(%arg0: i32) -> (i32, i32) {
    %c0_i32 = arith.constant 0 : i32
    %c0_i32_0 = arith.constant 0 : i32
    %c0_i32_1 = arith.constant 0 : i32
    return %c0_i32, %c0_i32_0 : i32, i32
  }
  func.func @transform_6(%arg0: i32) -> (i32, i32, i32) {
    %c0_i32 = arith.constant 0 : i32
    %c0_i32_0 = arith.constant 0 : i32
    %c0_i32_1 = arith.constant 0 : i32
    return %arg0, %c0_i32, %c0_i32_0 : i32, i32, i32
  }
}

</mosaic_0001>

<llo_original>
// kernel: tpu_custom_call.1
$region0: #{tpu_custom_call.1}
  #allocation0 [shape = 'u32[]', space=smem, size = 0x4, offset = 0x4, fixed_abs, tag = 'smem constant byte address 0x4 - core index']
  #allocation1 [shape = 'u32[144,128]{1,0:T(1,128)}', space=vmem, size = 0x12000, scoped, tag = 'internal scratch']
  #allocation2 [shape = 'f32[16,1792]{1,0:T(8,128)}', space=vmem, size = 0x1c000, scoped, tag = 'scratch operand']
  #allocation3 [shape = 'f32[16,1792]{1,0:T(8,128)}', space=vmem, size = 0x1c000, scoped, tag = 'scratch operand']
  #allocation4 [shape = 'bf16[144,512]{1,0:T(16,128)(2,1)}', space=vmem, size = 0x24000, scoped, tag = 'scratch operand']
  #allocation5 [shape = 'f32[1,1]{1,0:T(1,128)S(1)}', space=vmem, size = 0x200, scoped, tag = 'scoped memory for tpu_custom_call.1']
  %s0 = inlined_call_operand.hbm [shape: f32[2,16,512], index: 0, kind: input, shape index: {}]
  %s1 = inlined_call_operand.vmem [shape: f32[2,1,512], index: 1, kind: input, shape index: {}]
  %s2 = inlined_call_operand.vmem [shape: bf16[6,16,144], index: 2, kind: input, shape index: {}]
  %s3 = inlined_call_operand.vmem [shape: f32[6,16,1], index: 3, kind: input, shape index: {}]
  %s4 = inlined_call_operand.vmem [shape: f32[16,1], index: 4, kind: input, shape index: {}]
  %s5 = inlined_call_operand.<no memory space> [shape: f32[1,1], index: 5, kind: input, shape index: {}]
  %s6 = inlined_call_operand.hbm [shape: f32[2,1,512], index: 6, kind: output, shape index: {}]
  %s7 = sld [smem:[#allocation0]]
  $region61: #{tpu_custom_call.1} parent=0
    _
  %s9 = ssub.s32 1, %s7
  %s10 = scalar_select 0, %s9, %s7
  %v11 = vstv %s5
  %12 = vst [vmem:[#allocation5] sm:$0x1] %v11
  $region1: #{tpu_custom_call.1} parent=0
    #allocation6 [shape = 'u8[65536]{0}', space=vmem, size = 0x10000, scoped, tag = 'input window, operand 0']
    #allocation7 [shape = 's32[2]{0}', space=sflag, size = 0x8, scoped, tag = 'scoped memory for tpu_custom_call.1']
    #allocation8 [shape = 's32[2]{0}', space=sflag, size = 0x8, scoped, tag = 'scoped memory for tpu_custom_call.1']
    #allocation9 [shape = 'u8[4096]{0}', space=vmem, size = 0x1000, scoped, tag = 'output window, operand 0']
    %13 = vsyncpa [#allocation7], 0
    %s14 = scalar_lea.sflag [#allocation7], 1
    %15 = vsyncpa %s14, 0
    %16 = vsyncpa [#allocation8], 0
    %s17 = scalar_lea.sflag [#allocation8], 1
    %18 = vsyncpa %s17, 0
    loop: start=0, step=1, limit=4
    $region2: #{tpu_custom_call.1} parent=1 // loop_pre_header
      _
    $region3: #{tpu_custom_call.1} parent=1 // loop_header
      %s20 = sphi 0, %s24
      %p21 = scmp.ge.s32.totalorder %s20, 4
      %s30 = sphi 0, %s32
      %s33 = sphi 0, %s30
      %s34 = sphi 0, %s33
      %s50 = sphi 0, %s34
      %s56 = sphi 0, %s58
      %s59 = sphi 0, %s56
      %s60 = sphi 0, %s59
      %s76 = sphi 0, %s60
      %s80 = sphi 0, %s80
      %s82 = sphi 0, %s80
      %s83 = sphi 0, %s82
      %s97 = sphi 0, %s83
      %s101 = sphi 0, %s101
      %s103 = sphi 0, %s101
      %s104 = sphi 0, %s103
      %s118 = sphi 0, %s104
      %s122 = sphi 0, %s122
      %s124 = sphi 0, %s122
      %s125 = sphi 0, %s124
      %s139 = sphi 0, %s125
      %s143 = sphi 0, %s143
      %s145 = sphi 0, %s143
      %s146 = sphi 0, %s145
      %s160 = sphi 0, %s146
      %s166 = sphi 0, %s168
      %s169 = sphi 0, %s166
      %s170 = sphi 0, %s169
      %s186 = sphi 0, %s170
    $region4: #{tpu_custom_call.1} parent=1 // loop_header_branch
      %23 = sbr.rel (%p21) target = $region8
    $region5: #{tpu_custom_call.1} parent=1 // loop_body
      %s25 = ssub.s32 %s20, 1
      %s26 = ssub.s32 %s20, 2
      %s27 = sadd.s32 %s20, 1
      %s28 = ssub.s32 %s20, %s27
      %p29 = scmp.eq.s32.totalorder %s28, 0
      %s31 = sadd.s32 %s30, 1
      %s32 = scalar_select %p29, %s30, %s31
      %p35 = pneg %p29
      %p36 = scmp.eq.s32.totalorder %s20, 1
      %p37 = por %p35, %p36
      %p38 = scmp.ne.s32.totalorder %s30, %s33
      %p39 = scmp.eq.s32.totalorder %s20, 0
      %p40 = por %p38, %p39
      %p41 = scmp.ne.s32.totalorder %s30, %s33
      %p42 = scmp.eq.s32.totalorder %s25, 1
      %p43 = por %p41, %p42
      %p44 = scmp.ne.s32.totalorder %s33, %s34
      %p45 = scmp.eq.s32.totalorder %s25, 0
      %p46 = por %p44, %p45
      %p47 = scmp.ne.s32.totalorder %s33, %s34
      %p48 = scmp.eq.s32.totalorder %s26, 1
      %p49 = por %p47, %p48
      %p51 = scmp.ne.s32.totalorder %s34, %s50
      %p52 = scmp.eq.s32.totalorder %s26, 0
      %p53 = por %p51, %p52
      %s54 = ssub.s32 %s20, %s27
      %p55 = scmp.eq.s32.totalorder %s54, 0
      %s57 = sadd.s32 %s56, 1
      %s58 = scalar_select %p55, %s56, %s57
      %p61 = pneg %p55
      %p62 = scmp.eq.s32.totalorder %s20, 1
      %p63 = por %p61, %p62
      %p64 = scmp.ne.s32.totalorder %s56, %s59
      %p65 = scmp.eq.s32.totalorder %s20, 0
      %p66 = por %p64, %p65
      %p67 = scmp.ne.s32.totalorder %s56, %s59
      %p68 = scmp.eq.s32.totalorder %s25, 1
      %p69 = por %p67, %p68
      %p70 = scmp.ne.s32.totalorder %s59, %s60
      %p71 = scmp.eq.s32.totalorder %s25, 0
      %p72 = por %p70, %p71
      %p73 = scmp.ne.s32.totalorder %s59, %s60
      %p74 = scmp.eq.s32.totalorder %s26, 1
      %p75 = por %p73, %p74
      %p77 = scmp.ne.s32.totalorder %s60, %s76
      %p78 = scmp.eq.s32.totalorder %s26, 0
      %p79 = por %p77, %p78
      %s81 = sadd.s32 %s80, 1
      %p84 = scmp.eq.s32.totalorder %s20, 1
      %p85 = scmp.ne.s32.totalorder %s80, %s82
      %p86 = scmp.eq.s32.totalorder %s20, 0
      %p87 = por %p85, %p86
      %p88 = scmp.ne.s32.totalorder %s80, %s82
      %p89 = scmp.eq.s32.totalorder %s25, 1
      %p90 = por %p88, %p89
      %p91 = scmp.ne.s32.totalorder %s82, %s83
      %p92 = scmp.eq.s32.totalorder %s25, 0
      %p93 = por %p91, %p92
      %p94 = scmp.ne.s32.totalorder %s82, %s83
      %p95 = scmp.eq.s32.totalorder %s26, 1
      %p96 = por %p94, %p95
      %p98 = scmp.ne.s32.totalorder %s83, %s97
      %p99 = scmp.eq.s32.totalorder %s26, 0
      %p100 = por %p98, %p99
      %s102 = sadd.s32 %s101, 1
      %p105 = scmp.eq.s32.totalorder %s20, 1
      %p106 = scmp.ne.s32.totalorder %s101, %s103
      %p107 = scmp.eq.s32.totalorder %s20, 0
      %p108 = por %p106, %p107
      %p109 = scmp.ne.s32.totalorder %s101, %s103
      %p110 = scmp.eq.s32.totalorder %s25, 1
      %p111 = por %p109, %p110
      %p112 = scmp.ne.s32.totalorder %s103, %s104
      %p113 = scmp.eq.s32.totalorder %s25, 0
      %p114 = por %p112, %p113
      %p115 = scmp.ne.s32.totalorder %s103, %s104
      %p116 = scmp.eq.s32.totalorder %s26, 1
      %p117 = por %p115, %p116
      %p119 = scmp.ne.s32.totalorder %s104, %s118
      %p120 = scmp.eq.s32.totalorder %s26, 0
      %p121 = por %p119, %p120
      %s123 = sadd.s32 %s122, 1
      %p126 = scmp.eq.s32.totalorder %s20, 1
      %p127 = scmp.ne.s32.totalorder %s122, %s124
      %p128 = scmp.eq.s32.totalorder %s20, 0
      %p129 = por %p127, %p128
      %p130 = scmp.ne.s32.totalorder %s122, %s124
      %p131 = scmp.eq.s32.totalorder %s25, 1
      %p132 = por %p130, %p131
      %p133 = scmp.ne.s32.totalorder %s124, %s125
      %p134 = scmp.eq.s32.totalorder %s25, 0
      %p135 = por %p133, %p134
      %p136 = scmp.ne.s32.totalorder %s124, %s125
      %p137 = scmp.eq.s32.totalorder %s26, 1
      %p138 = por %p136, %p137
      %p140 = scmp.ne.s32.totalorder %s125, %s139
      %p141 = scmp.eq.s32.totalorder %s26, 0
      %p142 = por %p140, %p141
      %s144 = sadd.s32 %s143, 1
      %p147 = scmp.eq.s32.totalorder %s20, 1
      %p148 = scmp.ne.s32.totalorder %s143, %s145
      %p149 = scmp.eq.s32.totalorder %s20, 0
      %p150 = por %p148, %p149
      %p151 = scmp.ne.s32.totalorder %s143, %s145
      %p152 = scmp.eq.s32.totalorder %s25, 1
      %p153 = por %p151, %p152
      %p154 = scmp.ne.s32.totalorder %s145, %s146
      %p155 = scmp.eq.s32.totalorder %s25, 0
      %p156 = por %p154, %p155
      %p157 = scmp.ne.s32.totalorder %s145, %s146
      %p158 = scmp.eq.s32.totalorder %s26, 1
      %p159 = por %p157, %p158
      %p161 = scmp.ne.s32.totalorder %s146, %s160
      %p162 = scmp.eq.s32.totalorder %s26, 0
      %p163 = por %p161, %p162
      %s164 = ssub.s32 %s20, %s27
      %p165 = scmp.eq.s32.totalorder %s164, 0
      %s167 = sadd.s32 %s166, 1
      %s168 = scalar_select %p165, %s166, %s167
      %p171 = pneg %p165
      %p172 = scmp.eq.s32.totalorder %s20, 1
      %p173 = por %p171, %p172
      %p174 = scmp.ne.s32.totalorder %s166, %s169
      %p175 = scmp.eq.s32.totalorder %s20, 0
      %p176 = por %p174, %p175
      %p177 = scmp.ne.s32.totalorder %s166, %s169
      %p178 = scmp.eq.s32.totalorder %s25, 1
      %p179 = por %p177, %p178
      %p180 = scmp.ne.s32.totalorder %s169, %s170
      %p181 = scmp.eq.s32.totalorder %s25, 0
      %p182 = por %p180, %p181
      %p183 = scmp.ne.s32.totalorder %s169, %s170
      %p184 = scmp.eq.s32.totalorder %s26, 1
      %p185 = por %p183, %p184
      %p187 = scmp.ne.s32.totalorder %s170, %s186
      %p188 = scmp.eq.s32.totalorder %s26, 0
      %p189 = por %p187, %p188
      %p190 = scmp.le.s32.totalorder 1, %s20
      %p191 = scmp.lt.s32.totalorder %s20, 3
      %p192 = pnand %p190, %p191
      %p193 = pneg %p192
      // Predicated region
      $region9: #{tpu_custom_call.1} parent=5 // pred_check
        _
      $region10: #{tpu_custom_call.1} parent=5 // pred_check_branch
        %195 = sbr.rel (%p192) target = $region12
      $region11: #{tpu_custom_call.1} parent=5 // pred_region
        %s196 = ssub.s32 %s20, 1
        // Predicated region
        $region13: #{tpu_custom_call.1} parent=11 // pred_check
          %p197 = pneg %p93
        $region14: #{tpu_custom_call.1} parent=11 // pred_check_branch
          %199 = sbr.rel (%p197) target = $region16
        $region15: #{tpu_custom_call.1} parent=11 // pred_region
          _
        $region16: #{tpu_custom_call.1} parent=11 // pred_fallthru
          _
        // Predicated region
        $region17: #{tpu_custom_call.1} parent=11 // pred_check
          %p200 = pneg %p114
        $region18: #{tpu_custom_call.1} parent=11 // pred_check_branch
          %202 = sbr.rel (%p200) target = $region20
        $region19: #{tpu_custom_call.1} parent=11 // pred_region
          _
        $region20: #{tpu_custom_call.1} parent=11 // pred_fallthru
          _
        // Predicated region
        $region21: #{tpu_custom_call.1} parent=11 // pred_check
          %p203 = pneg %p135
        $region22: #{tpu_custom_call.1} parent=11 // pred_check_branch
          %205 = sbr.rel (%p203) target = $region24
        $region23: #{tpu_custom_call.1} parent=11 // pred_region
          _
        $region24: #{tpu_custom_call.1} parent=11 // pred_fallthru
          _
        // Predicated region
        $region25: #{tpu_custom_call.1} parent=11 // pred_check
          %p206 = pneg %p156
        $region26: #{tpu_custom_call.1} parent=11 // pred_check_branch
          %208 = sbr.rel (%p206) target = $region28
        $region27: #{tpu_custom_call.1} parent=11 // pred_region
          _
        $region28: #{tpu_custom_call.1} parent=11 // pred_fallthru
          _
      $region12: #{tpu_custom_call.1} parent=5 // pred_fallthru
        _
      %p209 = scmp.lt.s32.totalorder %s20, 2
      // Predicated region
      $region29: #{tpu_custom_call.1} parent=5 // pred_check
        %p210 = pneg %p209
      $region30: #{tpu_custom_call.1} parent=5 // pred_check_branch
        %212 = sbr.rel (%p210) target = $region32
      $region31: #{tpu_custom_call.1} parent=5 // pred_region
        // Predicated region
        $region33: #{tpu_custom_call.1} parent=31 // pred_check
          %p213 = pneg %p40
        $region34: #{tpu_custom_call.1} parent=31 // pred_check_branch
          %215 = sbr.rel (%p213) target = $region36
        $region35: #{tpu_custom_call.1} parent=31 // pred_region
          %s216 = sand.u32 %s30, 1
          %s217 = scalar_lea.sflag [#allocation7], %s216
          %s218 = sand.u32 %s30, 1
          %s219 = smul.addr %s218, 64
          %s220 = scalar_lea.vmem [#allocation6], %s219
          %s222 = ssub.s32 1024, 1024
          %223 = vsyncadd %s217, %s222
          %s224 = smul.addr %s20, 8
          %s225 = smul.addr %s224, 128
          %s226 = scalar_lea.hbm %s0, %s225
          %s227 = sshll.u32 %s220, 4
          %s228 = int_to_ptr.vmem [resolvable:$true] %s227
          %233 = dma.hbm_to_vmem [thread:$0]  %s226, 1024, %s228, %s217, 512, 512, 32
        $region36: #{tpu_custom_call.1} parent=31 // pred_fallthru
          _
        // Predicated region
        $region37: #{tpu_custom_call.1} parent=31 // pred_check
          %p234 = pneg %p66
        $region38: #{tpu_custom_call.1} parent=31 // pred_check_branch
          %236 = sbr.rel (%p234) target = $region40
        $region39: #{tpu_custom_call.1} parent=31 // pred_region
          %p237 = scmp.lt.s32.totalorder %s20, 1
          %s238 = scalar_select %p237, %s20, 1
          %s239 = smul.addr %s238, 4
          %s240 = scalar_lea.vmem %s1, %s239
        $region40: #{tpu_custom_call.1} parent=31 // pred_fallthru
          _
      $region32: #{tpu_custom_call.1} parent=5 // pred_fallthru
        _
      %p241 = scmp.le.s32.totalorder 1, %s20
      %p242 = scmp.lt.s32.totalorder %s20, 3
      %p243 = pnand %p241, %p242
      %p244 = pneg %p243
      // Predicated region
      $region41: #{tpu_custom_call.1} parent=5 // pred_check
        _
      $region42: #{tpu_custom_call.1} parent=5 // pred_check_branch
        %246 = sbr.rel (%p243) target = $region44
      $region43: #{tpu_custom_call.1} parent=5 // pred_region
        %s247 = ssub.s32 %s20, 1
        %s248 = sand.u32 %s33, 1
        %s249 = scalar_lea.sflag [#allocation7], %s248
        %s250 = sand.u32 %s33, 1
        %s251 = smul.addr %s250, 64
        %s252 = scalar_lea.vmem [#allocation6], %s251
        // Predicated region
        $region45: #{tpu_custom_call.1} parent=43 // pred_check
          %p253 = pneg %p46
        $region46: #{tpu_custom_call.1} parent=43 // pred_check_branch
          %255 = sbr.rel (%p253) target = $region48
        $region47: #{tpu_custom_call.1} parent=43 // pred_region
          %256 = dma.done %s249, 1024
        $region48: #{tpu_custom_call.1} parent=43 // pred_fallthru
          _
        %s257 = sand.u32 %s33, 1
        %s258 = scalar_lea.sflag [#allocation7], %s257
        %s259 = sand.u32 %s33, 1
        %s260 = smul.addr %s259, 64
        %s261 = scalar_lea.vmem [#allocation6], %s260
        %p262 = pneg %p46
        %p263 = pneg %p43
        %p264 = scmp.lt.s32.totalorder %s25, 1
        %s265 = scalar_select %p264, %s25, 1
        %s266 = smul.addr %s265, 4
        %s267 = scalar_lea.vmem %s1, %s266
        %p268 = pneg %p72
        %p269 = pneg %p69
        %p270 = pneg %p93
        %p271 = pneg %p90
        %p272 = pneg %p114
        %p273 = pneg %p111
        %p274 = pneg %p135
        %p275 = pneg %p132
        %p276 = pneg %p156
        %p277 = pneg %p153
        %p278 = pneg %p182
        %p279 = pneg %p179
        %s280 = sand.u32 %s169, 1
        %s281 = scalar_lea.sflag [#allocation8], %s280
        %s282 = sand.u32 %s169, 1
        %s283 = smul.addr %s282, 4
        %s284 = scalar_lea.vmem [#allocation9], %s283
        %p285 = scmp.lt.s32.totalorder %s25, 1
        %s286 = scalar_select %p285, %s25, 1
        %s287 = smul.addr %s286, 4
        %s288 = scalar_lea.vmem %s1, %s287
        %290 = vst [vmem:[#allocation2] sm:$0xff] 0.0
        %291 = vst [vmem:[#allocation2 + $0x8] sm:$0xff] 0.0
        %292 = vst [vmem:[#allocation2 + $0x10] sm:$0xff] 0.0
        %293 = vst [vmem:[#allocation2 + $0x18] sm:$0xff] 0.0
        %294 = vst [vmem:[#allocation2 + $0x20] sm:$0xff] 0.0
        %295 = vst [vmem:[#allocation2 + $0x28] sm:$0xff] 0.0
        %296 = vst [vmem:[#allocation2 + $0x30] sm:$0xff] 0.0
        %297 = vst [vmem:[#allocation2 + $0x38] sm:$0xff] 0.0
        %298 = vst [vmem:[#allocation2 + $0x40] sm:$0xff] 0.0
        %299 = vst [vmem:[#allocation2 + $0x48] sm:$0xff] 0.0
        %300 = vst [vmem:[#allocation2 + $0x50] sm:$0xff] 0.0
        %301 = vst [vmem:[#allocation2 + $0x58] sm:$0xff] 0.0
        %302 = vst [vmem:[#allocation2 + $0x60] sm:$0xff] 0.0
        %303 = vst [vmem:[#allocation2 + $0x68] sm:$0xff] 0.0
        %304 = vst [vmem:[#allocation2 + $0x70] sm:$0xff] 0.0
        %305 = vst [vmem:[#allocation2 + $0x78] sm:$0xff] 0.0
        %306 = vst [vmem:[#allocation2 + $0x80] sm:$0xff] 0.0
        %307 = vst [vmem:[#allocation2 + $0x88] sm:$0xff] 0.0
        %308 = vst [vmem:[#allocation2 + $0x90] sm:$0xff] 0.0
        %309 = vst [vmem:[#allocation2 + $0x98] sm:$0xff] 0.0
        %310 = vst [vmem:[#allocation2 + $0xa0] sm:$0xff] 0.0
        %311 = vst [vmem:[#allocation2 + $0xa8] sm:$0xff] 0.0
        %312 = vst [vmem:[#allocation2 + $0xb0] sm:$0xff] 0.0
        %313 = vst [vmem:[#allocation2 + $0xb8] sm:$0xff] 0.0
        %314 = vst [vmem:[#allocation2 + $0xc0] sm:$0xff] 0.0
        %315 = vst [vmem:[#allocation2 + $0xc8] sm:$0xff] 0.0
        %316 = vst [vmem:[#allocation2 + $0xd0] sm:$0xff] 0.0
        %317 = vst [vmem:[#allocation2 + $0xd8] sm:$0xff] 0.0
        %318 = vst [vmem:[#allocation3] sm:$0xff] 0.0
        %319 = vst [vmem:[#allocation3 + $0x8] sm:$0xff] 0.0
        %320 = vst [vmem:[#allocation3 + $0x10] sm:$0xff] 0.0
        %321 = vst [vmem:[#allocation3 + $0x18] sm:$0xff] 0.0
        %322 = vst [vmem:[#allocation3 + $0x20] sm:$0xff] 0.0
        %323 = vst [vmem:[#allocation3 + $0x28] sm:$0xff] 0.0
        %324 = vst [vmem:[#allocation3 + $0x30] sm:$0xff] 0.0
        %325 = vst [vmem:[#allocation3 + $0x38] sm:$0xff] 0.0
        %326 = vst [vmem:[#allocation3 + $0x40] sm:$0xff] 0.0
        %327 = vst [vmem:[#allocation3 + $0x48] sm:$0xff] 0.0
        %328 = vst [vmem:[#allocation3 + $0x50] sm:$0xff] 0.0
        %329 = vst [vmem:[#allocation3 + $0x58] sm:$0xff] 0.0
        %330 = vst [vmem:[#allocation3 + $0x60] sm:$0xff] 0.0
        %331 = vst [vmem:[#allocation3 + $0x68] sm:$0xff] 0.0
        %332 = vst [vmem:[#allocation3 + $0x70] sm:$0xff] 0.0
        %333 = vst [vmem:[#allocation3 + $0x78] sm:$0xff] 0.0
        %334 = vst [vmem:[#allocation3 + $0x80] sm:$0xff] 0.0
        %335 = vst [vmem:[#allocation3 + $0x88] sm:$0xff] 0.0
        %336 = vst [vmem:[#allocation3 + $0x90] sm:$0xff] 0.0
        %337 = vst [vmem:[#allocation3 + $0x98] sm:$0xff] 0.0
        %338 = vst [vmem:[#allocation3 + $0xa0] sm:$0xff] 0.0
        %339 = vst [vmem:[#allocation3 + $0xa8] sm:$0xff] 0.0
        %340 = vst [vmem:[#allocation3 + $0xb0] sm:$0xff] 0.0
        %341 = vst [vmem:[#allocation3 + $0xb8] sm:$0xff] 0.0
        %342 = vst [vmem:[#allocation3 + $0xc0] sm:$0xff] 0.0
        %343 = vst [vmem:[#allocation3 + $0xc8] sm:$0xff] 0.0
        %344 = vst [vmem:[#allocation3 + $0xd0] sm:$0xff] 0.0
        %345 = vst [vmem:[#allocation3 + $0xd8] sm:$0xff] 0.0
        %v346 = vld [vmem:[%s252] sm:$0xff]
        %v347 = vld [vmem:[%s252 + $0x8] sm:$0xff]
        %v348 = vld [vmem:[%s252 + $0x10] sm:$0xff]
        %v349 = vld [vmem:[%s252 + $0x18] sm:$0xff]
        %v350 = vld [vmem:[%s252 + $0x20] sm:$0xff]
        %v351 = vld [vmem:[%s252 + $0x28] sm:$0xff]
        %v352 = vld [vmem:[%s252 + $0x30] sm:$0xff]
        %v353 = vld [vmem:[%s252 + $0x38] sm:$0xff]
        %v354 = vld [vmem:[%s288] sm:$0xf]
        %v356 = vlaneseq
        %v357 = vshrl.u32 %v356, 7
        %v358 = vsub.s32 0, %v357
        %v359 = vrot.slane %v354, %v358
        %v360 = vlaneseq
        %v361 = vshrl.u32 %v360, 7
        %v362 = vsub.s32 1, %v361
        %v363 = vrot.slane %v354, %v362
        %v364 = vlaneseq
        %v365 = vshrl.u32 %v364, 7
        %v366 = vsub.s32 2, %v365
        %v367 = vrot.slane %v354, %v366
        %v368 = vlaneseq
        %v369 = vshrl.u32 %v368, 7
        %v370 = vsub.s32 3, %v369
        %v371 = vrot.slane %v354, %v370
        %v376 = vmul.f32 %v346, %v359
        %v377 = vmul.f32 %v347, %v363
        %v378 = vmul.f32 %v348, %v367
        %v379 = vmul.f32 %v349, %v371
        %v380 = vmul.f32 %v350, %v359
        %v381 = vmul.f32 %v351, %v363
        %v382 = vmul.f32 %v352, %v367
        %v383 = vmul.f32 %v353, %v371
        %384 = vst [vmem:[#allocation2 + $0x28] sm:$0xff] %v376
        %385 = vst [vmem:[#allocation2 + $0x30] sm:$0xff] %v377
        %386 = vst [vmem:[#allocation2 + $0x38] sm:$0xff] %v378
        %387 = vst [vmem:[#allocation2 + $0x40] sm:$0xff] %v379
        %388 = vst [vmem:[#allocation2 + $0x98] sm:$0xff] %v380
        %389 = vst [vmem:[#allocation2 + $0xa0] sm:$0xff] %v381
        %390 = vst [vmem:[#allocation2 + $0xa8] sm:$0xff] %v382
        %391 = vst [vmem:[#allocation2 + $0xb0] sm:$0xff] %v383
        %v392 = vlaneseq
        %v393 = vand.u32 %v392, 127
        %v394 = vadd.s32 %v393, 128
        %v395 = vadd.s32 %v393, 256
        %v396 = vadd.s32 %v393, 384
        %vm397 = vcmp.lt.s32.totalorder %v393, 0
        %v398 = vsub.s32 0, %v393
        %v399 = vsel %vm397, %v398, %v393
        %v400 = vshrl.u32 %v399, 5
        %v401 = vand.u32 %v399, 31
        %v402 = vsub.s32 0, %v401
        %v403 = vsel %vm397, %v402, %v401
        %vm404 = vcmp.lt.s32.totalorder %v394, 0
        %v405 = vsub.s32 0, %v394
        %v406 = vsel %vm404, %v405, %v394
        %v407 = vshrl.u32 %v406, 5
        %v408 = vand.u32 %v406, 31
        %v409 = vsub.s32 0, %v408
        %v410 = vsel %vm404, %v409, %v408
        %vm411 = vcmp.lt.s32.totalorder %v395, 0
        %v412 = vsub.s32 0, %v395
        %v413 = vsel %vm411, %v412, %v395
        %v414 = vshrl.u32 %v413, 5
        %v415 = vand.u32 %v413, 31
        %v416 = vsub.s32 0, %v415
        %v417 = vsel %vm411, %v416, %v415
        %vm418 = vcmp.lt.s32.totalorder %v396, 0
        %v419 = vsub.s32 0, %v396
        %v420 = vsel %vm418, %v419, %v396
        %v421 = vshrl.u32 %v420, 5
        %v422 = vand.u32 %v420, 31
        %v423 = vsub.s32 0, %v422
        %v424 = vsel %vm418, %v423, %v422
        %vm425 = vcmp.ne.s32.totalorder %v403, 0
        %vm426 = vcmp.ne.s32.totalorder %v410, 0
        %vm427 = vcmp.ne.s32.totalorder %v417, 0
        %vm428 = vcmp.ne.s32.totalorder %v424, 0
        %vm429 = vcmp.lt.s32.totalorder %v403, 0
        %vm430 = vcmp.lt.s32.totalorder %v410, 0
        %vm431 = vcmp.lt.s32.totalorder %v417, 0
        %vm432 = vcmp.lt.s32.totalorder %v424, 0
        %vm433 = vmand %vm429, %vm425
        %vm434 = vmand %vm430, %vm426
        %vm435 = vmand %vm431, %vm427
        %vm436 = vmand %vm432, %vm428
        %v437 = vadd.s32 %v403, 32
        %v438 = vadd.s32 %v410, 32
        %v439 = vadd.s32 %v417, 32
        %v440 = vadd.s32 %v424, 32
        %v441 = vsel %vm433, %v437, %v403
        %v442 = vsel %vm434, %v438, %v410
        %v443 = vsel %vm435, %v439, %v417
        %v444 = vsel %vm436, %v440, %v424
        %vm445 = vcmp.lt.s32.totalorder %v441, 16
        %vm446 = vcmp.lt.s32.totalorder %v442, 16
        %vm447 = vcmp.lt.s32.totalorder %v443, 16
        %vm448 = vcmp.lt.s32.totalorder %v444, 16
        %vm449 = vcmp.lt.s32.totalorder %v393, 512
        %vm450 = vcmp.lt.s32.totalorder %v394, 512
        %vm451 = vcmp.lt.s32.totalorder %v395, 512
        %vm452 = vcmp.lt.s32.totalorder %v396, 512
        %vm453 = vmand %vm445, %vm449
        %vm454 = vmand %vm446, %vm450
        %vm455 = vmand %vm447, %vm451
        %vm456 = vmand %vm448, %vm452
        %v457 = vsel %vm453, 1.0, 0.0
        %v458 = vsel %vm454, 1.0, 0.0
        %v459 = vsel %vm455, 1.0, 0.0
        %v460 = vsel %vm456, 1.0, 0.0
        %v461 = vld [vmem:[#allocation2 + $0x20] sm:$0xff]
        %v462 = vld [vmem:[#allocation2 + $0x28] sm:$0xff]
        %v463 = vld [vmem:[#allocation2 + $0x30] sm:$0xff]
        %v464 = vld [vmem:[#allocation2 + $0x38] sm:$0xff]
        %v465 = vld [vmem:[#allocation2 + $0x40] sm:$0xff]
        %v466 = vld [vmem:[#allocation2 + $0x90] sm:$0xff]
        %v467 = vld [vmem:[#allocation2 + $0x98] sm:$0xff]
        %v468 = vld [vmem:[#allocation2 + $0xa0] sm:$0xff]
        %v469 = vld [vmem:[#allocation2 + $0xa8] sm:$0xff]
        %v470 = vld [vmem:[#allocation2 + $0xb0] sm:$0xff]
        %v471 = vpack.c.bf16 %v466, %v461
        %v472 = vpack.c.bf16 %v467, %v462
        %v473 = vpack.c.bf16 %v468, %v463
        %v474 = vpack.c.bf16 %v469, %v464
        %v475 = vpack.c.bf16 %v470, %v465
        %481 = vrot.lane.b32.xlu0 %v471, 33
        %v482 = vpop.permute.xlu0 %481
        %483 = vrot.lane.b32.xlu0 %v472, 33
        %v484 = vpop.permute.xlu0 %483
        %485 = vrot.lane.b32.xlu0 %v473, 33
        %v486 = vpop.permute.xlu0 %485
        %487 = vrot.lane.b32.xlu0 %v474, 33
        %v488 = vpop.permute.xlu0 %487
        %489 = vrot.lane.b32.xlu0 %v475, 33
        %v490 = vpop.permute.xlu0 %489
        %vm491 = vcmask 269312
        %v492 = vsel %vm491, %v482, %v484
        %v493 = vsel %vm491, %v484, %v486
        %v494 = vsel %vm491, %v486, %v488
        %v495 = vsel %vm491, %v488, %v490
        %500 = vst [vmem:[#allocation4] sm:$0xff] %v492
        %501 = vst [vmem:[#allocation4 + $0x8] sm:$0xff] %v493
        %502 = vst [vmem:[#allocation4 + $0x10] sm:$0xff] %v494
        %503 = vst [vmem:[#allocation4 + $0x18] sm:$0xff] %v495
        %v504 = vld [vmem:[#allocation2 + $0x20] sm:$0xff]
        %v505 = vld [vmem:[#allocation2 + $0x28] sm:$0xff]
        %v506 = vld [vmem:[#allocation2 + $0x30] sm:$0xff]
        %v507 = vld [vmem:[#allocation2 + $0x38] sm:$0xff]
        %v508 = vld [vmem:[#allocation2 + $0x40] sm:$0xff]
        %v509 = vld [vmem:[#allocation2 + $0x90] sm:$0xff]
        %v510 = vld [vmem:[#allocation2 + $0x98] sm:$0xff]
        %v511 = vld [vmem:[#allocation2 + $0xa0] sm:$0xff]
        %v512 = vld [vmem:[#allocation2 + $0xa8] sm:$0xff]
        %v513 = vld [vmem:[#allocation2 + $0xb0] sm:$0xff]
        %v514 = vpack.c.bf16 %v509, %v504
        %v515 = vpack.c.bf16 %v510, %v505
        %v516 = vpack.c.bf16 %v511, %v506
        %v517 = vpack.c.bf16 %v512, %v507
        %v518 = vpack.c.bf16 %v513, %v508
        %524 = vrot.lane.b32.xlu0 %v514, 32
        %v525 = vpop.permute.xlu0 %524
        %526 = vrot.lane.b32.xlu0 %v515, 32
        %v527 = vpop.permute.xlu0 %526
        %528 = vrot.lane.b32.xlu0 %v516, 32
        %v529 = vpop.permute.xlu0 %528
        %530 = vrot.lane.b32.xlu0 %v517, 32
        %v531 = vpop.permute.xlu0 %530
        %532 = vrot.lane.b32.xlu0 %v518, 32
        %v533 = vpop.permute.xlu0 %532
        %vm534 = vcmask 261120
        %v535 = vsel %vm534, %v525, %v527
        %v536 = vsel %vm534, %v527, %v529
        %v537 = vsel %vm534, %v529, %v531
        %v538 = vsel %vm534, %v531, %v533
        %543 = vst [vmem:[#allocation4 + $0x20] sm:$0xff] %v535
        %544 = vst [vmem:[#allocation4 + $0x28] sm:$0xff] %v536
        %545 = vst [vmem:[#allocation4 + $0x30] sm:$0xff] %v537
        %546 = vst [vmem:[#allocation4 + $0x38] sm:$0xff] %v538
        %v547 = vld [vmem:[#allocation2 + $0x20] sm:$0xff]
        %v548 = vld [vmem:[#allocation2 + $0x28] sm:$0xff]
        %v549 = vld [vmem:[#allocation2 + $0x30] sm:$0xff]
        %v550 = vld [vmem:[#allocation2 + $0x38] sm:$0xff]
        %v551 = vld [vmem:[#allocation2 + $0x40] sm:$0xff]
        %v552 = vld [vmem:[#allocation2 + $0x90] sm:$0xff]
        %v553 = vld [vmem:[#allocation2 + $0x98] sm:$0xff]
        %v554 = vld [vmem:[#allocation2 + $0xa0] sm:$0xff]
        %v555 = vld [vmem:[#allocation2 + $0xa8] sm:$0xff]
        %v556 = vld [vmem:[#allocation2 + $0xb0] sm:$0xff]
        %v557 = vpack.c.bf16 %v552, %v547
        %v558 = vpack.c.bf16 %v553, %v548
        %v559 = vpack.c.bf16 %v554, %v549
        %v560 = vpack.c.bf16 %v555, %v550
        %v561 = vpack.c.bf16 %v556, %v551
        %567 = vrot.lane.b32.xlu0 %v557, 31
        %v568 = vpop.permute.xlu0 %567
        %569 = vrot.lane.b32.xlu0 %v558, 31
        %v570 = vpop.permute.xlu0 %569
        %571 = vrot.lane.b32.xlu0 %v559, 31
        %v572 = vpop.permute.xlu0 %571
        %573 = vrot.lane.b32.xlu0 %v560, 31
        %v574 = vpop.permute.xlu0 %573
        %575 = vrot.lane.b32.xlu0 %v561, 31
        %v576 = vpop.permute.xlu0 %575
        %vm577 = vcmask 252928
        %v578 = vsel %vm577, %v568, %v570
        %v579 = vsel %vm577, %v570, %v572
        %v580 = vsel %vm577, %v572, %v574
        %v581 = vsel %vm577, %v574, %v576
        %586 = vst [vmem:[#allocation4 + $0x40] sm:$0xff] %v578
        %587 = vst [vmem:[#allocation4 + $0x48] sm:$0xff] %v579
        %588 = vst [vmem:[#allocation4 + $0x50] sm:$0xff] %v580
        %589 = vst [vmem:[#allocation4 + $0x58] sm:$0xff] %v581
        %v590 = vld [vmem:[#allocation2 + $0x20] sm:$0xff]
        %v591 = vld [vmem:[#allocation2 + $0x28] sm:$0xff]
        %v592 = vld [vmem:[#allocation2 + $0x30] sm:$0xff]
        %v593 = vld [vmem:[#allocation2 + $0x38] sm:$0xff]
        %v594 = vld [vmem:[#allocation2 + $0x40] sm:$0xff]
        %v595 = vld [vmem:[#allocation2 + $0x90] sm:$0xff]
        %v596 = vld [vmem:[#allocation2 + $0x98] sm:$0xff]
        %v597 = vld [vmem:[#allocation2 + $0xa0] sm:$0xff]
        %v598 = vld [vmem:[#allocation2 + $0xa8] sm:$0xff]
        %v599 = vld [vmem:[#allocation2 + $0xb0] sm:$0xff]
        %v600 = vpack.c.bf16 %v595, %v590
        %v601 = vpack.c.bf16 %v596, %v591
        %v602 = vpack.c.bf16 %v597, %v592
        %v603 = vpack.c.bf16 %v598, %v593
        %v604 = vpack.c.bf16 %v599, %v594
        %610 = vrot.lane.b32.xlu0 %v600, 1
        %v611 = vpop.permute.xlu0 %610
        %612 = vrot.lane.b32.xlu0 %v601, 1
        %v613 = vpop.permute.xlu0 %612
        %614 = vrot.lane.b32.xlu0 %v602, 1
        %v615 = vpop.permute.xlu0 %614
        %616 = vrot.lane.b32.xlu0 %v603, 1
        %v617 = vpop.permute.xlu0 %616
        %618 = vrot.lane.b32.xlu0 %v604, 1
        %v619 = vpop.permute.xlu0 %618
        %vm620 = vcmask 7168
        %v621 = vsel %vm620, %v611, %v613
        %v622 = vsel %vm620, %v613, %v615
        %v623 = vsel %vm620, %v615, %v617
        %v624 = vsel %vm620, %v617, %v619
        %629 = vst [vmem:[#allocation4 + $0x60] sm:$0xff] %v621
        %630 = vst [vmem:[#allocation4 + $0x68] sm:$0xff] %v622
        %631 = vst [vmem:[#allocation4 + $0x70] sm:$0xff] %v623
        %632 = vst [vmem:[#allocation4 + $0x78] sm:$0xff] %v624
        %v633 = vld [vmem:[#allocation2 + $0x28] sm:$0xff]
        %v634 = vld [vmem:[#allocation2 + $0x30] sm:$0xff]
        %v635 = vld [vmem:[#allocation2 + $0x38] sm:$0xff]
        %v636 = vld [vmem:[#allocation2 + $0x40] sm:$0xff]
        %v637 = vld [vmem:[#allocation2 + $0x98] sm:$0xff]
        %v638 = vld [vmem:[#allocation2 + $0xa0] sm:$0xff]
        %v639 = vld [vmem:[#allocation2 + $0xa8] sm:$0xff]
        %v640 = vld [vmem:[#allocation2 + $0xb0] sm:$0xff]
        %v641 = vpack.c.bf16 %v637, %v633
        %v642 = vpack.c.bf16 %v638, %v634
        %v643 = vpack.c.bf16 %v639, %v635
        %v644 = vpack.c.bf16 %v640, %v636
        %645 = vst [vmem:[#allocation4 + $0x80] sm:$0xff] %v641
        %646 = vst [vmem:[#allocation4 + $0x88] sm:$0xff] %v642
        %647 = vst [vmem:[#allocation4 + $0x90] sm:$0xff] %v643
        %648 = vst [vmem:[#allocation4 + $0x98] sm:$0xff] %v644
        %v649 = vld [vmem:[#allocation2 + $0x28] sm:$0xff]
        %v650 = vld [vmem:[#allocation2 + $0x30] sm:$0xff]
        %v651 = vld [vmem:[#allocation2 + $0x38] sm:$0xff]
        %v652 = vld [vmem:[#allocation2 + $0x40] sm:$0xff]
        %v653 = vld [vmem:[#allocation2 + $0x48] sm:$0xff]
        %v654 = vld [vmem:[#allocation2 + $0x98] sm:$0xff]
        %v655 = vld [vmem:[#allocation2 + $0xa0] sm:$0xff]
        %v656 = vld [vmem:[#allocation2 + $0xa8] sm:$0xff]
        %v657 = vld [vmem:[#allocation2 + $0xb0] sm:$0xff]
        %v658 = vld [vmem:[#allocation2 + $0xb8] sm:$0xff]
        %v659 = vpack.c.bf16 %v654, %v649
        %v660 = vpack.c.bf16 %v655, %v650
        %v661 = vpack.c.bf16 %v656, %v651
        %v662 = vpack.c.bf16 %v657, %v652
        %v663 = vpack.c.bf16 %v658, %v653
        %669 = vrot.lane.b32.xlu0 %v659, 127
        %v670 = vpop.permute.xlu0 %669
        %671 = vrot.lane.b32.xlu0 %v660, 127
        %v672 = vpop.permute.xlu0 %671
        %673 = vrot.lane.b32.xlu0 %v661, 127
        %v674 = vpop.permute.xlu0 %673
        %675 = vrot.lane.b32.xlu0 %v662, 127
        %v676 = vpop.permute.xlu0 %675
        %677 = vrot.lane.b32.xlu0 %v663, 127
        %v678 = vpop.permute.xlu0 %677
        %vm679 = vcmask 1039360
        %v680 = vsel %vm679, %v670, %v672
        %v681 = vsel %vm679, %v672, %v674
        %v682 = vsel %vm679, %v674, %v676
        %v683 = vsel %vm679, %v676, %v678
        %688 = vst [vmem:[#allocation4 + $0xa0] sm:$0xff] %v680
        %689 = vst [vmem:[#allocation4 + $0xa8] sm:$0xff] %v681
        %690 = vst [vmem:[#allocation4 + $0xb0] sm:$0xff] %v682
        %691 = vst [vmem:[#allocation4 + $0xb8] sm:$0xff] %v683
        %v692 = vld [vmem:[#allocation2 + $0x28] sm:$0xff]
        %v693 = vld [vmem:[#allocation2 + $0x30] sm:$0xff]
        %v694 = vld [vmem:[#allocation2 + $0x38] sm:$0xff]
        %v695 = vld [vmem:[#allocation2 + $0x40] sm:$0xff]
        %v696 = vld [vmem:[#allocation2 + $0x48] sm:$0xff]
        %v697 = vld [vmem:[#allocation2 + $0x98] sm:$0xff]
        %v698 = vld [vmem:[#allocation2 + $0xa0] sm:$0xff]
        %v699 = vld [vmem:[#allocation2 + $0xa8] sm:$0xff]
        %v700 = vld [vmem:[#allocation2 + $0xb0] sm:$0xff]
        %v701 = vld [vmem:[#allocation2 + $0xb8] sm:$0xff]
        %v702 = vpack.c.bf16 %v697, %v692
        %v703 = vpack.c.bf16 %v698, %v693
        %v704 = vpack.c.bf16 %v699, %v694
        %v705 = vpack.c.bf16 %v700, %v695
        %v706 = vpack.c.bf16 %v701, %v696
        %712 = vrot.lane.b32.xlu0 %v702, 97
        %v713 = vpop.permute.xlu0 %712
        %714 = vrot.lane.b32.xlu0 %v703, 97
        %v715 = vpop.permute.xlu0 %714
        %716 = vrot.lane.b32.xlu0 %v704, 97
        %v717 = vpop.permute.xlu0 %716
        %718 = vrot.lane.b32.xlu0 %v705, 97
        %v719 = vpop.permute.xlu0 %718
        %720 = vrot.lane.b32.xlu0 %v706, 97
        %v721 = vpop.permute.xlu0 %720
        %vm722 = vcmask 793600
        %v723 = vsel %vm722, %v713, %v715
        %v724 = vsel %vm722, %v715, %v717
        %v725 = vsel %vm722, %v717, %v719
        %v726 = vsel %vm722, %v719, %v721
        %731 = vst [vmem:[#allocation4 + $0xc0] sm:$0xff] %v723
        %732 = vst [vmem:[#allocation4 + $0xc8] sm:$0xff] %v724
        %733 = vst [vmem:[#allocation4 + $0xd0] sm:$0xff] %v725
        %734 = vst [vmem:[#allocation4 + $0xd8] sm:$0xff] %v726
        %v735 = vld [vmem:[#allocation2 + $0x28] sm:$0xff]
        %v736 = vld [vmem:[#allocation2 + $0x30] sm:$0xff]
        %v737 = vld [vmem:[#allocation2 + $0x38] sm:$0xff]
        %v738 = vld [vmem:[#allocation2 + $0x40] sm:$0xff]
        %v739 = vld [vmem:[#allocation2 + $0x48] sm:$0xff]
        %v740 = vld [vmem:[#allocation2 + $0x98] sm:$0xff]
        %v741 = vld [vmem:[#allocation2 + $0xa0] sm:$0xff]
        %v742 = vld [vmem:[#allocation2 + $0xa8] sm:$0xff]
        %v743 = vld [vmem:[#allocation2 + $0xb0] sm:$0xff]
        %v744 = vld [vmem:[#allocation2 + $0xb8] sm:$0xff]
        %v745 = vpack.c.bf16 %v740, %v735
        %v746 = vpack.c.bf16 %v741, %v736
        %v747 = vpack.c.bf16 %v742, %v737
        %v748 = vpack.c.bf16 %v743, %v738
        %v749 = vpack.c.bf16 %v744, %v739
        %755 = vrot.lane.b32.xlu0 %v745, 96
        %v756 = vpop.permute.xlu0 %755
        %757 = vrot.lane.b32.xlu0 %v746, 96
        %v758 = vpop.permute.xlu0 %757
        %759 = vrot.lane.b32.xlu0 %v747, 96
        %v760 = vpop.permute.xlu0 %759
        %761 = vrot.lane.b32.xlu0 %v748, 96
        %v762 = vpop.permute.xlu0 %761
        %763 = vrot.lane.b32.xlu0 %v749, 96
        %v764 = vpop.permute.xlu0 %763
        %vm765 = vcmask 785408
        %v766 = vsel %vm765, %v756, %v758
        %v767 = vsel %vm765, %v758, %v760
        %v768 = vsel %vm765, %v760, %v762
        %v769 = vsel %vm765, %v762, %v764
        %774 = vst [vmem:[#allocation4 + $0xe0] sm:$0xff] %v766
        %775 = vst [vmem:[#allocation4 + $0xe8] sm:$0xff] %v767
        %776 = vst [vmem:[#allocation4 + $0xf0] sm:$0xff] %v768
        %777 = vst [vmem:[#allocation4 + $0xf8] sm:$0xff] %v769
        %v778 = vld [vmem:[#allocation2 + $0x28] sm:$0xff]
        %v779 = vld [vmem:[#allocation2 + $0x30] sm:$0xff]
        %v780 = vld [vmem:[#allocation2 + $0x38] sm:$0xff]
        %v781 = vld [vmem:[#allocation2 + $0x40] sm:$0xff]
        %v782 = vld [vmem:[#allocation2 + $0x48] sm:$0xff]
        %v783 = vld [vmem:[#allocation2 + $0x98] sm:$0xff]
        %v784 = vld [vmem:[#allocation2 + $0xa0] sm:$0xff]
        %v785 = vld [vmem:[#allocation2 + $0xa8] sm:$0xff]
        %v786 = vld [vmem:[#allocation2 + $0xb0] sm:$0xff]
        %v787 = vld [vmem:[#allocation2 + $0xb8] sm:$0xff]
        %v788 = vpack.c.bf16 %v783, %v778
        %v789 = vpack.c.bf16 %v784, %v779
        %v790 = vpack.c.bf16 %v785, %v780
        %v791 = vpack.c.bf16 %v786, %v781
        %v792 = vpack.c.bf16 %v787, %v782
        %798 = vrot.lane.b32.xlu0 %v788, 95
        %v799 = vpop.permute.xlu0 %798
        %800 = vrot.lane.b32.xlu0 %v789, 95
        %v801 = vpop.permute.xlu0 %800
        %802 = vrot.lane.b32.xlu0 %v790, 95
        %v803 = vpop.permute.xlu0 %802
        %804 = vrot.lane.b32.xlu0 %v791, 95
        %v805 = vpop.permute.xlu0 %804
        %806 = vrot.lane.b32.xlu0 %v792, 95
        %v807 = vpop.permute.xlu0 %806
        %vm808 = vcmask 777216
        %v809 = vsel %vm808, %v799, %v801
        %v810 = vsel %vm808, %v801, %v803
        %v811 = vsel %vm808, %v803, %v805
        %v812 = vsel %vm808, %v805, %v807
        %817 = vst [vmem:[#allocation4 + $0x100] sm:$0xff] %v809
        %818 = vst [vmem:[#allocation4 + $0x108] sm:$0xff] %v810
        %819 = vst [vmem:[#allocation4 + $0x110] sm:$0xff] %v811
        %820 = vst [vmem:[#allocation4 + $0x118] sm:$0xff] %v812
        %v821 = vld [vmem:[%s2] sm:$0xff]
        %v822 = vld [vmem:[%s2 + $0x8] sm:$0xff]
        %v823 = vld [vmem:[#allocation4] sm:$0xff]
        %v824 = vld [vmem:[#allocation4 + $0x8] sm:$0xff]
        %v825 = vld [vmem:[#allocation4 + $0x10] sm:$0xff]
        %v826 = vld [vmem:[#allocation4 + $0x18] sm:$0xff]
        %v827 = vld [vmem:[#allocation4 + $0x20] sm:$0xff]
        %v828 = vld [vmem:[#allocation4 + $0x28] sm:$0xff]
        %v829 = vld [vmem:[#allocation4 + $0x30] sm:$0xff]
        %v830 = vld [vmem:[#allocation4 + $0x38] sm:$0xff]
        %v831 = vld [vmem:[#allocation4 + $0x40] sm:$0xff]
        %v832 = vld [vmem:[#allocation4 + $0x48] sm:$0xff]
        %v833 = vld [vmem:[#allocation4 + $0x50] sm:$0xff]
        %v834 = vld [vmem:[#allocation4 + $0x58] sm:$0xff]
        %v835 = vld [vmem:[#allocation4 + $0x60] sm:$0xff]
        %v836 = vld [vmem:[#allocation4 + $0x68] sm:$0xff]
        %v837 = vld [vmem:[#allocation4 + $0x70] sm:$0xff]
        %v838 = vld [vmem:[#allocation4 + $0x78] sm:$0xff]
        %v839 = vld [vmem:[#allocation4 + $0x80] sm:$0xff]
        %v840 = vld [vmem:[#allocation4 + $0x88] sm:$0xff]
        %v841 = vld [vmem:[#allocation4 + $0x90] sm:$0xff]
        %v842 = vld [vmem:[#allocation4 + $0x98] sm:$0xff]
        %v843 = vld [vmem:[#allocation4 + $0xa0] sm:$0xff]
        %v844 = vld [vmem:[#allocation4 + $0xa8] sm:$0xff]
        %v845 = vld [vmem:[#allocation4 + $0xb0] sm:$0xff]
        %v846 = vld [vmem:[#allocation4 + $0xb8] sm:$0xff]
        %v847 = vld [vmem:[#allocation4 + $0xc0] sm:$0xff]
        %v848 = vld [vmem:[#allocation4 + $0xc8] sm:$0xff]
        %v849 = vld [vmem:[#allocation4 + $0xd0] sm:$0xff]
        %v850 = vld [vmem:[#allocation4 + $0xd8] sm:$0xff]
        %v851 = vld [vmem:[#allocation4 + $0xe0] sm:$0xff]
        %v852 = vld [vmem:[#allocation4 + $0xe8] sm:$0xff]
        %v853 = vld [vmem:[#allocation4 + $0xf0] sm:$0xff]
        %v854 = vld [vmem:[#allocation4 + $0xf8] sm:$0xff]
        %v855 = vld [vmem:[#allocation4 + $0x100] sm:$0xff]
        %v856 = vld [vmem:[#allocation4 + $0x108] sm:$0xff]
        %v857 = vld [vmem:[#allocation4 + $0x110] sm:$0xff]
        %v858 = vld [vmem:[#allocation4 + $0x118] sm:$0xff]
        %v859 = vld [vmem:[%s3] sm:$0xff]
        %v860 = vld [vmem:[%s3 + $0x8] sm:$0xff]
        %862 = vset.pattern.permute.xlu0 0
        %863 = vperm.xlu0 %862, %v859
        %v864 = vpop.permute.xlu0 %863
        %867 = vset.pattern.permute.xlu0 0
        %868 = vperm.xlu0 %867, %v860
        %v869 = vpop.permute.xlu0 %868
        %v873 = vunpack.c.l.b16 %v821
        %v874 = vunpack.c.h.b16 %v821
        %v875 = vunpack.c.l.b16 %v822
        %v876 = vunpack.c.h.b16 %v822
        %v877 = vpack.c.b16 %v875, %v873
        %v878 = vpack.c.b16 %v876, %v874
        %vm880 = vcmask 130048
        %v882 = vsel %vm880, %v878, 0
        %884 = vmatprep.subr.bf16.mxu0 %v824
        %885 = vmatpush1.bf16.msra.mxu0 %v823
        %886 = vmatprep.subr.bf16.mxu0 %v828
        %887 = vmatpush1.bf16.msra.mxu0 %v827
        %888 = vmatprep.subr.bf16.mxu0 %v832
        %889 = vmatpush1.bf16.msra.mxu0 %v831
        %890 = vmatprep.subr.bf16.mxu0 %v836
        %891 = vmatpush1.bf16.msra.mxu0 %v835
        %892 = vmatprep.subr.bf16.mxu0 %v840
        %893 = vmatpush1.bf16.msra.mxu0 %v839
        %894 = vmatprep.subr.bf16.mxu0 %v844
        %895 = vmatpush1.bf16.msra.mxu0 %v843
        %896 = vmatprep.subr.bf16.mxu0 %v848
        %897 = vmatpush1.bf16.msra.mxu0 %v847
        %898 = vmatprep.subr.bf16.mxu0 %v852
        %899 = vmatpush1.bf16.msra.mxu0 %v851
        %900 = vmatprep.subr.bf16.mxu0 %v856
        %901 = vmatpush1.bf16.msra.mxu0 %v855
        %902 = vmatprep.subr.bf16.mxu0 0
        %903 = vmatpush1.bf16.msra.mxu0 0
        %904 = vmatprep.subr.bf16.mxu0 0
        %905 = vmatpush1.bf16.msra.mxu0 0
        %906 = vmatprep.subr.bf16.mxu0 0
        %907 = vmatpush1.bf16.msra.mxu0 0
        %908 = vmatprep.subr.bf16.mxu0 0
        %909 = vmatpush1.bf16.msra.mxu0 0
        %910 = vmatprep.subr.bf16.mxu0 0
        %911 = vmatpush1.bf16.msra.mxu0 0
        %912 = vmatprep.subr.bf16.mxu0 0
        %913 = vmatpush1.bf16.msra.mxu0 0
        %914 = vmatprep.subr.bf16.mxu0 0
        %915 = vmatpush1.bf16.msra.mxu0 0
        %916 = vmatprep.mubr.bf16.mxu0 %v882
        %917 = vmatmul.mubr.bf16.gmra.mrb[0].mxu0 %v877
        %v918 = vpop.f32.mrb[0].mxu0
        %v919 = vadd.f32 %v864, %v918
        %v920 = vpop.f32.mrb[0].mxu0
        %v921 = vadd.f32 %v864, %v920
        %v922 = vpop.f32.mrb[0].mxu0
        %v923 = vadd.f32 %v869, %v922
        %v924 = vpop.f32.mrb[0].mxu0
        %v925 = vadd.f32 %v869, %v924
        %926 = vdwg.mxu0
        %927 = vmatprep.subr.bf16.mxu0 %v826
        %928 = vmatpush1.bf16.msra.mxu0 %v825
        %929 = vmatprep.subr.bf16.mxu0 %v830
        %930 = vmatpush1.bf16.msra.mxu0 %v829
        %931 = vmatprep.subr.bf16.mxu0 %v834
        %932 = vmatpush1.bf16.msra.mxu0 %v833
        %933 = vmatprep.subr.bf16.mxu0 %v838
        %934 = vmatpush1.bf16.msra.mxu0 %v837
        %935 = vmatprep.subr.bf16.mxu0 %v842
        %936 = vmatpush1.bf16.msra.mxu0 %v841
        %937 = vmatprep.subr.bf16.mxu0 %v846
        %938 = vmatpush1.bf16.msra.mxu0 %v845
        %939 = vmatprep.subr.bf16.mxu0 %v850
        %940 = vmatpush1.bf16.msra.mxu0 %v849
        %941 = vmatprep.subr.bf16.mxu0 %v854
        %942 = vmatpush1.bf16.msra.mxu0 %v853
        %943 = vmatprep.subr.bf16.mxu0 %v858
        %944 = vmatpush1.bf16.msra.mxu0 %v857
        %945 = vmatprep.subr.bf16.mxu0 0
        %946 = vmatpush1.bf16.msra.mxu0 0
        %947 = vmatprep.subr.bf16.mxu0 0
        %948 = vmatpush1.bf16.msra.mxu0 0
        %949 = vmatprep.subr.bf16.mxu0 0
        %950 = vmatpush1.bf16.msra.mxu0 0
        %951 = vmatprep.subr.bf16.mxu0 0
        %952 = vmatpush1.bf16.msra.mxu0 0
        %953 = vmatprep.subr.bf16.mxu0 0
        %954 = vmatpush1.bf16.msra.mxu0 0
        %955 = vmatprep.subr.bf16.mxu0 0
        %956 = vmatpush1.bf16.msra.mxu0 0
        %957 = vmatprep.subr.bf16.mxu0 0
        %958 = vmatpush1.bf16.msra.mxu0 0
        %959 = vmatprep.mubr.bf16.mxu0 %v882
        %960 = vmatmul.mubr.bf16.gmra.mrb[0].mxu0 %v877
        %v961 = vpop.f32.mrb[0].mxu0
        %v962 = vadd.f32 %v864, %v961
        %v963 = vpop.f32.mrb[0].mxu0
        %v964 = vadd.f32 %v864, %v963
        %v965 = vpop.f32.mrb[0].mxu0
        %v966 = vadd.f32 %v869, %v965
        %v967 = vpop.f32.mrb[0].mxu0
        %v968 = vadd.f32 %v869, %v967
        %969 = vdwg.mxu0
        %v970 = vmax.f32 %v919, 0.0
        %v971 = vmax.f32 %v921, 0.0
        %v972 = vmax.f32 %v962, 0.0
        %v973 = vmax.f32 %v964, 0.0
        %v974 = vmax.f32 %v923, 0.0
        %v975 = vmax.f32 %v925, 0.0
        %v976 = vmax.f32 %v966, 0.0
        %v977 = vmax.f32 %v968, 0.0
        %v978 = vmul.f32 %v970, %v457
        %v979 = vmul.f32 %v971, %v458
        %v980 = vmul.f32 %v972, %v459
        %v981 = vmul.f32 %v973, %v460
        %v982 = vmul.f32 %v974, %v457
        %v983 = vmul.f32 %v975, %v458
        %v984 = vmul.f32 %v976, %v459
        %v985 = vmul.f32 %v977, %v460
        %986 = vst [vmem:[#allocation3 + $0x28] sm:$0xff] %v978
        %987 = vst [vmem:[#allocation3 + $0x30] sm:$0xff] %v979
        %988 = vst [vmem:[#allocation3 + $0x38] sm:$0xff] %v980
        %989 = vst [vmem:[#allocation3 + $0x40] sm:$0xff] %v981
        %990 = vst [vmem:[#allocation3 + $0x98] sm:$0xff] %v982
        %991 = vst [vmem:[#allocation3 + $0xa0] sm:$0xff] %v983
        %992 = vst [vmem:[#allocation3 + $0xa8] sm:$0xff] %v984
        %993 = vst [vmem:[#allocation3 + $0xb0] sm:$0xff] %v985
        %v994 = vld [vmem:[#allocation3 + $0x20] sm:$0xff]
        %v995 = vld [vmem:[#allocation3 + $0x28] sm:$0xff]
        %v996 = vld [vmem:[#allocation3 + $0x30] sm:$0xff]
        %v997 = vld [vmem:[#allocation3 + $0x38] sm:$0xff]
        %v998 = vld [vmem:[#allocation3 + $0x40] sm:$0xff]
        %v999 = vld [vmem:[#allocation3 + $0x90] sm:$0xff]
        %v1000 = vld [vmem:[#allocation3 + $0x98] sm:$0xff]
        %v1001 = vld [vmem:[#allocation3 + $0xa0] sm:$0xff]
        %v1002 = vld [vmem:[#allocation3 + $0xa8] sm:$0xff]
        %v1003 = vld [vmem:[#allocation3 + $0xb0] sm:$0xff]
        %v1004 = vpack.c.bf16 %v999, %v994
        %v1005 = vpack.c.bf16 %v1000, %v995
        %v1006 = vpack.c.bf16 %v1001, %v996
        %v1007 = vpack.c.bf16 %v1002, %v997
        %v1008 = vpack.c.bf16 %v1003, %v998
        %1014 = vrot.lane.b32.xlu0 %v1004, 66
        %v1015 = vpop.permute.xlu0 %1014
        %1016 = vrot.lane.b32.xlu0 %v1005, 66
        %v1017 = vpop.permute.xlu0 %1016
        %1018 = vrot.lane.b32.xlu0 %v1006, 66
        %v1019 = vpop.permute.xlu0 %1018
        %1020 = vrot.lane.b32.xlu0 %v1007, 66
        %v1021 = vpop.permute.xlu0 %1020
        %1022 = vrot.lane.b32.xlu0 %v1008, 66
        %v1023 = vpop.permute.xlu0 %1022
        %vm1024 = vcmask 539648
        %v1025 = vsel %vm1024, %v1015, %v1017
        %v1026 = vsel %vm1024, %v1017, %v1019
        %v1027 = vsel %vm1024, %v1019, %v1021
        %v1028 = vsel %vm1024, %v1021, %v1023
        %1033 = vst [vmem:[#allocation4] sm:$0xff] %v1025
        %1034 = vst [vmem:[#allocation4 + $0x8] sm:$0xff] %v1026
        %1035 = vst [vmem:[#allocation4 + $0x10] sm:$0xff] %v1027
        %1036 = vst [vmem:[#allocation4 + $0x18] sm:$0xff] %v1028
        %v1037 = vld [vmem:[#allocation3 + $0x20] sm:$0xff]
        %v1038 = vld [vmem:[#allocation3 + $0x28] sm:$0xff]
        %v1039 = vld [vmem:[#allocation3 + $0x30] sm:$0xff]
        %v1040 = vld [vmem:[#allocation3 + $0x38] sm:$0xff]
        %v1041 = vld [vmem:[#allocation3 + $0x40] sm:$0xff]
        %v1042 = vld [vmem:[#allocation3 + $0x90] sm:$0xff]
        %v1043 = vld [vmem:[#allocation3 + $0x98] sm:$0xff]
        %v1044 = vld [vmem:[#allocation3 + $0xa0] sm:$0xff]
        %v1045 = vld [vmem:[#allocation3 + $0xa8] sm:$0xff]
        %v1046 = vld [vmem:[#allocation3 + $0xb0] sm:$0xff]
        %v1047 = vpack.c.bf16 %v1042, %v1037
        %v1048 = vpack.c.bf16 %v1043, %v1038
        %v1049 = vpack.c.bf16 %v1044, %v1039
        %v1050 = vpack.c.bf16 %v1045, %v1040
        %v1051 = vpack.c.bf16 %v1046, %v1041
        %1057 = vrot.lane.b32.xlu0 %v1047, 64
        %v1058 = vpop.permute.xlu0 %1057
        %1059 = vrot.lane.b32.xlu0 %v1048, 64
        %v1060 = vpop.permute.xlu0 %1059
        %1061 = vrot.lane.b32.xlu0 %v1049, 64
        %v1062 = vpop.permute.xlu0 %1061
        %1063 = vrot.lane.b32.xlu0 %v1050, 64
        %v1064 = vpop.permute.xlu0 %1063
        %1065 = vrot.lane.b32.xlu0 %v1051, 64
        %v1066 = vpop.permute.xlu0 %1065
        %vm1067 = vcmask 523264
        %v1068 = vsel %vm1067, %v1058, %v1060
        %v1069 = vsel %vm1067, %v1060, %v1062
        %v1070 = vsel %vm1067, %v1062, %v1064
        %v1071 = vsel %vm1067, %v1064, %v1066
        %1076 = vst [vmem:[#allocation4 + $0x20] sm:$0xff] %v1068
        %1077 = vst [vmem:[#allocation4 + $0x28] sm:$0xff] %v1069
        %1078 = vst [vmem:[#allocation4 + $0x30] sm:$0xff] %v1070
        %1079 = vst [vmem:[#allocation4 + $0x38] sm:$0xff] %v1071
        %v1080 = vld [vmem:[#allocation3 + $0x20] sm:$0xff]
        %v1081 = vld [vmem:[#allocation3 + $0x28] sm:$0xff]
        %v1082 = vld [vmem:[#allocation3 + $0x30] sm:$0xff]
        %v1083 = vld [vmem:[#allocation3 + $0x38] sm:$0xff]
        %v1084 = vld [vmem:[#allocation3 + $0x40] sm:$0xff]
        %v1085 = vld [vmem:[#allocation3 + $0x90] sm:$0xff]
        %v1086 = vld [vmem:[#allocation3 + $0x98] sm:$0xff]
        %v1087 = vld [vmem:[#allocation3 + $0xa0] sm:$0xff]
        %v1088 = vld [vmem:[#allocation3 + $0xa8] sm:$0xff]
        %v1089 = vld [vmem:[#allocation3 + $0xb0] sm:$0xff]
        %v1090 = vpack.c.bf16 %v1085, %v1080
        %v1091 = vpack.c.bf16 %v1086, %v1081
        %v1092 = vpack.c.bf16 %v1087, %v1082
        %v1093 = vpack.c.bf16 %v1088, %v1083
        %v1094 = vpack.c.bf16 %v1089, %v1084
        %1100 = vrot.lane.b32.xlu0 %v1090, 62
        %v1101 = vpop.permute.xlu0 %1100
        %1102 = vrot.lane.b32.xlu0 %v1091, 62
        %v1103 = vpop.permute.xlu0 %1102
        %1104 = vrot.lane.b32.xlu0 %v1092, 62
        %v1105 = vpop.permute.xlu0 %1104
        %1106 = vrot.lane.b32.xlu0 %v1093, 62
        %v1107 = vpop.permute.xlu0 %1106
        %1108 = vrot.lane.b32.xlu0 %v1094, 62
        %v1109 = vpop.permute.xlu0 %1108
        %vm1110 = vcmask 506880
        %v1111 = vsel %vm1110, %v1101, %v1103
        %v1112 = vsel %vm1110, %v1103, %v1105
        %v1113 = vsel %vm1110, %v1105, %v1107
        %v1114 = vsel %vm1110, %v1107, %v1109
        %1119 = vst [vmem:[#allocation4 + $0x40] sm:$0xff] %v1111
        %1120 = vst [vmem:[#allocation4 + $0x48] sm:$0xff] %v1112
        %1121 = vst [vmem:[#allocation4 + $0x50] sm:$0xff] %v1113
        %1122 = vst [vmem:[#allocation4 + $0x58] sm:$0xff] %v1114
        %v1123 = vld [vmem:[#allocation3 + $0x20] sm:$0xff]
        %v1124 = vld [vmem:[#allocation3 + $0x28] sm:$0xff]
        %v1125 = vld [vmem:[#allocation3 + $0x30] sm:$0xff]
        %v1126 = vld [vmem:[#allocation3 + $0x38] sm:$0xff]
        %v1127 = vld [vmem:[#allocation3 + $0x40] sm:$0xff]
        %v1128 = vld [vmem:[#allocation3 + $0x90] sm:$0xff]
        %v1129 = vld [vmem:[#allocation3 + $0x98] sm:$0xff]
        %v1130 = vld [vmem:[#allocation3 + $0xa0] sm:$0xff]
        %v1131 = vld [vmem:[#allocation3 + $0xa8] sm:$0xff]
        %v1132 = vld [vmem:[#allocation3 + $0xb0] sm:$0xff]
        %v1133 = vpack.c.bf16 %v1128, %v1123
        %v1134 = vpack.c.bf16 %v1129, %v1124
        %v1135 = vpack.c.bf16 %v1130, %v1125
        %v1136 = vpack.c.bf16 %v1131, %v1126
        %v1137 = vpack.c.bf16 %v1132, %v1127
        %1143 = vrot.lane.b32.xlu0 %v1133, 2
        %v1144 = vpop.permute.xlu0 %1143
        %1145 = vrot.lane.b32.xlu0 %v1134, 2
        %v1146 = vpop.permute.xlu0 %1145
        %1147 = vrot.lane.b32.xlu0 %v1135, 2
        %v1148 = vpop.permute.xlu0 %1147
        %1149 = vrot.lane.b32.xlu0 %v1136, 2
        %v1150 = vpop.permute.xlu0 %1149
        %1151 = vrot.lane.b32.xlu0 %v1137, 2
        %v1152 = vpop.permute.xlu0 %1151
        %vm1153 = vcmask 15360
        %v1154 = vsel %vm1153, %v1144, %v1146
        %v1155 = vsel %vm1153, %v1146, %v1148
        %v1156 = vsel %vm1153, %v1148, %v1150
        %v1157 = vsel %vm1153, %v1150, %v1152
        %1162 = vst [vmem:[#allocation4 + $0x60] sm:$0xff] %v1154
        %1163 = vst [vmem:[#allocation4 + $0x68] sm:$0xff] %v1155
        %1164 = vst [vmem:[#allocation4 + $0x70] sm:$0xff] %v1156
        %1165 = vst [vmem:[#allocation4 + $0x78] sm:$0xff] %v1157
        %v1166 = vld [vmem:[#allocation3 + $0x28] sm:$0xff]
        %v1167 = vld [vmem:[#allocation3 + $0x30] sm:$0xff]
        %v1168 = vld [vmem:[#allocation3 + $0x38] sm:$0xff]
        %v1169 = vld [vmem:[#allocation3 + $0x40] sm:$0xff]
        %v1170 = vld [vmem:[#allocation3 + $0x98] sm:$0xff]
        %v1171 = vld [vmem:[#allocation3 + $0xa0] sm:$0xff]
        %v1172 = vld [vmem:[#allocation3 + $0xa8] sm:$0xff]
        %v1173 = vld [vmem:[#allocation3 + $0xb0] sm:$0xff]
        %v1174 = vpack.c.bf16 %v1170, %v1166
        %v1175 = vpack.c.bf16 %v1171, %v1167
        %v1176 = vpack.c.bf16 %v1172, %v1168
        %v1177 = vpack.c.bf16 %v1173, %v1169
        %1178 = vst [vmem:[#allocation4 + $0x80] sm:$0xff] %v1174
        %1179 = vst [vmem:[#allocation4 + $0x88] sm:$0xff] %v1175
        %1180 = vst [vmem:[#allocation4 + $0x90] sm:$0xff] %v1176
        %1181 = vst [vmem:[#allocation4 + $0x98] sm:$0xff] %v1177
        %v1182 = vld [vmem:[#allocation3 + $0x28] sm:$0xff]
        %v1183 = vld [vmem:[#allocation3 + $0x30] sm:$0xff]
        %v1184 = vld [vmem:[#allocation3 + $0x38] sm:$0xff]
        %v1185 = vld [vmem:[#allocation3 + $0x40] sm:$0xff]
        %v1186 = vld [vmem:[#allocation3 + $0x48] sm:$0xff]
        %v1187 = vld [vmem:[#allocation3 + $0x98] sm:$0xff]
        %v1188 = vld [vmem:[#allocation3 + $0xa0] sm:$0xff]
        %v1189 = vld [vmem:[#allocation3 + $0xa8] sm:$0xff]
        %v1190 = vld [vmem:[#allocation3 + $0xb0] sm:$0xff]
        %v1191 = vld [vmem:[#allocation3 + $0xb8] sm:$0xff]
        %v1192 = vpack.c.bf16 %v1187, %v1182
        %v1193 = vpack.c.bf16 %v1188, %v1183
        %v1194 = vpack.c.bf16 %v1189, %v1184
        %v1195 = vpack.c.bf16 %v1190, %v1185
        %v1196 = vpack.c.bf16 %v1191, %v1186
        %1202 = vrot.lane.b32.xlu0 %v1192, 126
        %v1203 = vpop.permute.xlu0 %1202
        %1204 = vrot.lane.b32.xlu0 %v1193, 126
        %v1205 = vpop.permute.xlu0 %1204
        %1206 = vrot.lane.b32.xlu0 %v1194, 126
        %v1207 = vpop.permute.xlu0 %1206
        %1208 = vrot.lane.b32.xlu0 %v1195, 126
        %v1209 = vpop.permute.xlu0 %1208
        %1210 = vrot.lane.b32.xlu0 %v1196, 126
        %v1211 = vpop.permute.xlu0 %1210
        %vm1212 = vcmask 1031168
        %v1213 = vsel %vm1212, %v1203, %v1205
        %v1214 = vsel %vm1212, %v1205, %v1207
        %v1215 = vsel %vm1212, %v1207, %v1209
        %v1216 = vsel %vm1212, %v1209, %v1211
        %1221 = vst [vmem:[#allocation4 + $0xa0] sm:$0xff] %v1213
        %1222 = vst [vmem:[#allocation4 + $0xa8] sm:$0xff] %v1214
        %1223 = vst [vmem:[#allocation4 + $0xb0] sm:$0xff] %v1215
        %1224 = vst [vmem:[#allocation4 + $0xb8] sm:$0xff] %v1216
        %v1225 = vld [vmem:[#allocation3 + $0x28] sm:$0xff]
        %v1226 = vld [vmem:[#allocation3 + $0x30] sm:$0xff]
        %v1227 = vld [vmem:[#allocation3 + $0x38] sm:$0xff]
        %v1228 = vld [vmem:[#allocation3 + $0x40] sm:$0xff]
        %v1229 = vld [vmem:[#allocation3 + $0x48] sm:$0xff]
        %v1230 = vld [vmem:[#allocation3 + $0x98] sm:$0xff]
        %v1231 = vld [vmem:[#allocation3 + $0xa0] sm:$0xff]
        %v1232 = vld [vmem:[#allocation3 + $0xa8] sm:$0xff]
        %v1233 = vld [vmem:[#allocation3 + $0xb0] sm:$0xff]
        %v1234 = vld [vmem:[#allocation3 + $0xb8] sm:$0xff]
        %v1235 = vpack.c.bf16 %v1230, %v1225
        %v1236 = vpack.c.bf16 %v1231, %v1226
        %v1237 = vpack.c.bf16 %v1232, %v1227
        %v1238 = vpack.c.bf16 %v1233, %v1228
        %v1239 = vpack.c.bf16 %v1234, %v1229
        %1245 = vrot.lane.b32.xlu0 %v1235, 66
        %v1246 = vpop.permute.xlu0 %1245
        %1247 = vrot.lane.b32.xlu0 %v1236, 66
        %v1248 = vpop.permute.xlu0 %1247
        %1249 = vrot.lane.b32.xlu0 %v1237, 66
        %v1250 = vpop.permute.xlu0 %1249
        %1251 = vrot.lane.b32.xlu0 %v1238, 66
        %v1252 = vpop.permute.xlu0 %1251
        %1253 = vrot.lane.b32.xlu0 %v1239, 66
        %v1254 = vpop.permute.xlu0 %1253
        %v1255 = vsel %vm1024, %v1246, %v1248
        %v1256 = vsel %vm1024, %v1248, %v1250
        %v1257 = vsel %vm1024, %v1250, %v1252
        %v1258 = vsel %vm1024, %v1252, %v1254
        %1263 = vst [vmem:[#allocation4 + $0xc0] sm:$0xff] %v1255
        %1264 = vst [vmem:[#allocation4 + $0xc8] sm:$0xff] %v1256
        %1265 = vst [vmem:[#allocation4 + $0xd0] sm:$0xff] %v1257
        %1266 = vst [vmem:[#allocation4 + $0xd8] sm:$0xff] %v1258
        %v1267 = vld [vmem:[#allocation3 + $0x28] sm:$0xff]
        %v1268 = vld [vmem:[#allocation3 + $0x30] sm:$0xff]
        %v1269 = vld [vmem:[#allocation3 + $0x38] sm:$0xff]
        %v1270 = vld [vmem:[#allocation3 + $0x40] sm:$0xff]
        %v1271 = vld [vmem:[#allocation3 + $0x48] sm:$0xff]
        %v1272 = vld [vmem:[#allocation3 + $0x98] sm:$0xff]
        %v1273 = vld [vmem:[#allocation3 + $0xa0] sm:$0xff]
        %v1274 = vld [vmem:[#allocation3 + $0xa8] sm:$0xff]
        %v1275 = vld [vmem:[#allocation3 + $0xb0] sm:$0xff]
        %v1276 = vld [vmem:[#allocation3 + $0xb8] sm:$0xff]
        %v1277 = vpack.c.bf16 %v1272, %v1267
        %v1278 = vpack.c.bf16 %v1273, %v1268
        %v1279 = vpack.c.bf16 %v1274, %v1269
        %v1280 = vpack.c.bf16 %v1275, %v1270
        %v1281 = vpack.c.bf16 %v1276, %v1271
        %1287 = vrot.lane.b32.xlu0 %v1277, 64
        %v1288 = vpop.permute.xlu0 %1287
        %1289 = vrot.lane.b32.xlu0 %v1278, 64
        %v1290 = vpop.permute.xlu0 %1289
        %1291 = vrot.lane.b32.xlu0 %v1279, 64
        %v1292 = vpop.permute.xlu0 %1291
        %1293 = vrot.lane.b32.xlu0 %v1280, 64
        %v1294 = vpop.permute.xlu0 %1293
        %1295 = vrot.lane.b32.xlu0 %v1281, 64
        %v1296 = vpop.permute.xlu0 %1295
        %v1297 = vsel %vm1067, %v1288, %v1290
        %v1298 = vsel %vm1067, %v1290, %v1292
        %v1299 = vsel %vm1067, %v1292, %v1294
        %v1300 = vsel %vm1067, %v1294, %v1296
        %1305 = vst [vmem:[#allocation4 + $0xe0] sm:$0xff] %v1297
        %1306 = vst [vmem:[#allocation4 + $0xe8] sm:$0xff] %v1298
        %1307 = vst [vmem:[#allocation4 + $0xf0] sm:$0xff] %v1299
        %1308 = vst [vmem:[#allocation4 + $0xf8] sm:$0xff] %v1300
        %v1309 = vld [vmem:[#allocation3 + $0x28] sm:$0xff]
        %v1310 = vld [vmem:[#allocation3 + $0x30] sm:$0xff]
        %v1311 = vld [vmem:[#allocation3 + $0x38] sm:$0xff]
        %v1312 = vld [vmem:[#allocation3 + $0x40] sm:$0xff]
        %v1313 = vld [vmem:[#allocation3 + $0x48] sm:$0xff]
        %v1314 = vld [vmem:[#allocation3 + $0x98] sm:$0xff]
        %v1315 = vld [vmem:[#allocation3 + $0xa0] sm:$0xff]
        %v1316 = vld [vmem:[#allocation3 + $0xa8] sm:$0xff]
        %v1317 = vld [vmem:[#allocation3 + $0xb0] sm:$0xff]
        %v1318 = vld [vmem:[#allocation3 + $0xb8] sm:$0xff]
        %v1319 = vpack.c.bf16 %v1314, %v1309
        %v1320 = vpack.c.bf16 %v1315, %v1310
        %v1321 = vpack.c.bf16 %v1316, %v1311
        %v1322 = vpack.c.bf16 %v1317, %v1312
        %v1323 = vpack.c.bf16 %v1318, %v1313
        %1329 = vrot.lane.b32.xlu0 %v1319, 62
        %v1330 = vpop.permute.xlu0 %1329
        %1331 = vrot.lane.b32.xlu0 %v1320, 62
        %v1332 = vpop.permute.xlu0 %1331
        %1333 = vrot.lane.b32.xlu0 %v1321, 62
        %v1334 = vpop.permute.xlu0 %1333
        %1335 = vrot.lane.b32.xlu0 %v1322, 62
        %v1336 = vpop.permute.xlu0 %1335
        %1337 = vrot.lane.b32.xlu0 %v1323, 62
        %v1338 = vpop.permute.xlu0 %1337
        %v1339 = vsel %vm1110, %v1330, %v1332
        %v1340 = vsel %vm1110, %v1332, %v1334
        %v1341 = vsel %vm1110, %v1334, %v1336
        %v1342 = vsel %vm1110, %v1336, %v1338
        %1347 = vst [vmem:[#allocation4 + $0x100] sm:$0xff] %v1339
        %1348 = vst [vmem:[#allocation4 + $0x108] sm:$0xff] %v1340
        %1349 = vst [vmem:[#allocation4 + $0x110] sm:$0xff] %v1341
        %1350 = vst [vmem:[#allocation4 + $0x118] sm:$0xff] %v1342
        %s1351 = scalar_lea.vmem %s2, 16
        %v1352 = vld [vmem:[%s1351] sm:$0xff]
        %v1353 = vld [vmem:[%s1351 + $0x8] sm:$0xff]
        %v1354 = vld [vmem:[#allocation4] sm:$0xff]
        %v1355 = vld [vmem:[#allocation4 + $0x8] sm:$0xff]
        %v1356 = vld [vmem:[#allocation4 + $0x10] sm:$0xff]
        %v1357 = vld [vmem:[#allocation4 + $0x18] sm:$0xff]
        %v1358 = vld [vmem:[#allocation4 + $0x20] sm:$0xff]
        %v1359 = vld [vmem:[#allocation4 + $0x28] sm:$0xff]
        %v1360 = vld [vmem:[#allocation4 + $0x30] sm:$0xff]
        %v1361 = vld [vmem:[#allocation4 + $0x38] sm:$0xff]
        %v1362 = vld [vmem:[#allocation4 + $0x40] sm:$0xff]
        %v1363 = vld [vmem:[#allocation4 + $0x48] sm:$0xff]
        %v1364 = vld [vmem:[#allocation4 + $0x50] sm:$0xff]
        %v1365 = vld [vmem:[#allocation4 + $0x58] sm:$0xff]
        %v1366 = vld [vmem:[#allocation4 + $0x60] sm:$0xff]
        %v1367 = vld [vmem:[#allocation4 + $0x68] sm:$0xff]
        %v1368 = vld [vmem:[#allocation4 + $0x70] sm:$0xff]
        %v1369 = vld [vmem:[#allocation4 + $0x78] sm:$0xff]
        %v1370 = vld [vmem:[#allocation4 + $0x80] sm:$0xff]
        %v1371 = vld [vmem:[#allocation4 + $0x88] sm:$0xff]
        %v1372 = vld [vmem:[#allocation4 + $0x90] sm:$0xff]
        %v1373 = vld [vmem:[#allocation4 + $0x98] sm:$0xff]
        %v1374 = vld [vmem:[#allocation4 + $0xa0] sm:$0xff]
        %v1375 = vld [vmem:[#allocation4 + $0xa8] sm:$0xff]
        %v1376 = vld [vmem:[#allocation4 + $0xb0] sm:$0xff]
        %v1377 = vld [vmem:[#allocation4 + $0xb8] sm:$0xff]
        %v1378 = vld [vmem:[#allocation4 + $0xc0] sm:$0xff]
        %v1379 = vld [vmem:[#allocation4 + $0xc8] sm:$0xff]
        %v1380 = vld [vmem:[#allocation4 + $0xd0] sm:$0xff]
        %v1381 = vld [vmem:[#allocation4 + $0xd8] sm:$0xff]
        %v1382 = vld [vmem:[#allocation4 + $0xe0] sm:$0xff]
        %v1383 = vld [vmem:[#allocation4 + $0xe8] sm:$0xff]
        %v1384 = vld [vmem:[#allocation4 + $0xf0] sm:$0xff]
        %v1385 = vld [vmem:[#allocation4 + $0xf8] sm:$0xff]
        %v1386 = vld [vmem:[#allocation4 + $0x100] sm:$0xff]
        %v1387 = vld [vmem:[#allocation4 + $0x108] sm:$0xff]
        %v1388 = vld [vmem:[#allocation4 + $0x110] sm:$0xff]
        %v1389 = vld [vmem:[#allocation4 + $0x118] sm:$0xff]
        %s1390 = scalar_lea.vmem %s3, 16
        %v1391 = vld [vmem:[%s1390] sm:$0xff]
        %v1392 = vld [vmem:[%s1390 + $0x8] sm:$0xff]
        %1394 = vset.pattern.permute.xlu0 0
        %1395 = vperm.xlu0 %1394, %v1391
        %v1396 = vpop.permute.xlu0 %1395
        %1399 = vset.pattern.permute.xlu0 0
        %1400 = vperm.xlu0 %1399, %v1392
        %v1401 = vpop.permute.xlu0 %1400
        %v1405 = vunpack.c.l.b16 %v1352
        %v1406 = vunpack.c.h.b16 %v1352
        %v1407 = vunpack.c.l.b16 %v1353
        %v1408 = vunpack.c.h.b16 %v1353
        %v1409 = vpack.c.b16 %v1407, %v1405
        %v1410 = vpack.c.b16 %v1408, %v1406
        %v1413 = vsel %vm880, %v1410, 0
        %1415 = vmatprep.subr.bf16.mxu0 %v1355
        %1416 = vmatpush1.bf16.msra.mxu0 %v1354
        %1417 = vmatprep.subr.bf16.mxu0 %v1359
        %1418 = vmatpush1.bf16.msra.mxu0 %v1358
        %1419 = vmatprep.subr.bf16.mxu0 %v1363
        %1420 = vmatpush1.bf16.msra.mxu0 %v1362
        %1421 = vmatprep.subr.bf16.mxu0 %v1367
        %1422 = vmatpush1.bf16.msra.mxu0 %v1366
        %1423 = vmatprep.subr.bf16.mxu0 %v1371
        %1424 = vmatpush1.bf16.msra.mxu0 %v1370
        %1425 = vmatprep.subr.bf16.mxu0 %v1375
        %1426 = vmatpush1.bf16.msra.mxu0 %v1374
        %1427 = vmatprep.subr.bf16.mxu0 %v1379
        %1428 = vmatpush1.bf16.msra.mxu0 %v1378
        %1429 = vmatprep.subr.bf16.mxu0 %v1383
        %1430 = vmatpush1.bf16.msra.mxu0 %v1382
        %1431 = vmatprep.subr.bf16.mxu0 %v1387
        %1432 = vmatpush1.bf16.msra.mxu0 %v1386
        %1433 = vmatprep.subr.bf16.mxu0 0
        %1434 = vmatpush1.bf16.msra.mxu0 0
        %1435 = vmatprep.subr.bf16.mxu0 0
        %1436 = vmatpush1.bf16.msra.mxu0 0
        %1437 = vmatprep.subr.bf16.mxu0 0
        %1438 = vmatpush1.bf16.msra.mxu0 0
        %1439 = vmatprep.subr.bf16.mxu0 0
        %1440 = vmatpush1.bf16.msra.mxu0 0
        %1441 = vmatprep.subr.bf16.mxu0 0
        %1442 = vmatpush1.bf16.msra.mxu0 0
        %1443 = vmatprep.subr.bf16.mxu0 0
        %1444 = vmatpush1.bf16.msra.mxu0 0
        %1445 = vmatprep.subr.bf16.mxu0 0
        %1446 = vmatpush1.bf16.msra.mxu0 0
        %1447 = vmatprep.mubr.bf16.mxu0 %v1413
        %1448 = vmatmul.mubr.bf16.gmra.mrb[0].mxu0 %v1409
        %v1449 = vpop.f32.mrb[0].mxu0
        %v1450 = vadd.f32 %v1396, %v1449
        %v1451 = vpop.f32.mrb[0].mxu0
        %v1452 = vadd.f32 %v1396, %v1451
        %v1453 = vpop.f32.mrb[0].mxu0
        %v1454 = vadd.f32 %v1401, %v1453
        %v1455 = vpop.f32.mrb[0].mxu0
        %v1456 = vadd.f32 %v1401, %v1455
        %1457 = vdwg.mxu0
        %1458 = vmatprep.subr.bf16.mxu0 %v1357
        %1459 = vmatpush1.bf16.msra.mxu0 %v1356
        %1460 = vmatprep.subr.bf16.mxu0 %v1361
        %1461 = vmatpush1.bf16.msra.mxu0 %v1360
        %1462 = vmatprep.subr.bf16.mxu0 %v1365
        %1463 = vmatpush1.bf16.msra.mxu0 %v1364
        %1464 = vmatprep.subr.bf16.mxu0 %v1369
        %1465 = vmatpush1.bf16.msra.mxu0 %v1368
        %1466 = vmatprep.subr.bf16.mxu0 %v1373
        %1467 = vmatpush1.bf16.msra.mxu0 %v1372
        %1468 = vmatprep.subr.bf16.mxu0 %v1377
        %1469 = vmatpush1.bf16.msra.mxu0 %v1376
        %1470 = vmatprep.subr.bf16.mxu0 %v1381
        %1471 = vmatpush1.bf16.msra.mxu0 %v1380
        %1472 = vmatprep.subr.bf16.mxu0 %v1385
        %1473 = vmatpush1.bf16.msra.mxu0 %v1384
        %1474 = vmatprep.subr.bf16.mxu0 %v1389
        %1475 = vmatpush1.bf16.msra.mxu0 %v1388
        %1476 = vmatprep.subr.bf16.mxu0 0
        %1477 = vmatpush1.bf16.msra.mxu0 0
        %1478 = vmatprep.subr.bf16.mxu0 0
        %1479 = vmatpush1.bf16.msra.mxu0 0
        %1480 = vmatprep.subr.bf16.mxu0 0
        %1481 = vmatpush1.bf16.msra.mxu0 0
        %1482 = vmatprep.subr.bf16.mxu0 0
        %1483 = vmatpush1.bf16.msra.mxu0 0
        %1484 = vmatprep.subr.bf16.mxu0 0
        %1485 = vmatpush1.bf16.msra.mxu0 0
        %1486 = vmatprep.subr.bf16.mxu0 0
        %1487 = vmatpush1.bf16.msra.mxu0 0
        %1488 = vmatprep.subr.bf16.mxu0 0
        %1489 = vmatpush1.bf16.msra.mxu0 0
        %1490 = vmatprep.mubr.bf16.mxu0 %v1413
        %1491 = vmatmul.mubr.bf16.gmra.mrb[0].mxu0 %v1409
        %v1492 = vpop.f32.mrb[0].mxu0
        %v1493 = vadd.f32 %v1396, %v1492
        %v1494 = vpop.f32.mrb[0].mxu0
        %v1495 = vadd.f32 %v1396, %v1494
        %v1496 = vpop.f32.mrb[0].mxu0
        %v1497 = vadd.f32 %v1401, %v1496
        %v1498 = vpop.f32.mrb[0].mxu0
        %v1499 = vadd.f32 %v1401, %v1498
        %1500 = vdwg.mxu0
        %v1501 = vmax.f32 %v1450, 0.0
        %v1502 = vmax.f32 %v1452, 0.0
        %v1503 = vmax.f32 %v1493, 0.0
        %v1504 = vmax.f32 %v1495, 0.0
        %v1505 = vmax.f32 %v1454, 0.0
        %v1506 = vmax.f32 %v1456, 0.0
        %v1507 = vmax.f32 %v1497, 0.0
        %v1508 = vmax.f32 %v1499, 0.0
        %v1509 = vmul.f32 %v1501, %v457
        %v1510 = vmul.f32 %v1502, %v458
        %v1511 = vmul.f32 %v1503, %v459
        %v1512 = vmul.f32 %v1504, %v460
        %v1513 = vmul.f32 %v1505, %v457
        %v1514 = vmul.f32 %v1506, %v458
        %v1515 = vmul.f32 %v1507, %v459
        %v1516 = vmul.f32 %v1508, %v460
        %1517 = vst [vmem:[#allocation2 + $0x28] sm:$0xff] %v1509
        %1518 = vst [vmem:[#allocation2 + $0x30] sm:$0xff] %v1510
        %1519 = vst [vmem:[#allocation2 + $0x38] sm:$0xff] %v1511
        %1520 = vst [vmem:[#allocation2 + $0x40] sm:$0xff] %v1512
        %1521 = vst [vmem:[#allocation2 + $0x98] sm:$0xff] %v1513
        %1522 = vst [vmem:[#allocation2 + $0xa0] sm:$0xff] %v1514
        %1523 = vst [vmem:[#allocation2 + $0xa8] sm:$0xff] %v1515
        %1524 = vst [vmem:[#allocation2 + $0xb0] sm:$0xff] %v1516
        %v1525 = vld [vmem:[#allocation2 + $0x18] sm:$0xff]
        %v1526 = vld [vmem:[#allocation2 + $0x20] sm:$0xff]
        %v1527 = vld [vmem:[#allocation2 + $0x28] sm:$0xff]
        %v1528 = vld [vmem:[#allocation2 + $0x30] sm:$0xff]
        %v1529 = vld [vmem:[#allocation2 + $0x38] sm:$0xff]
        %v1530 = vld [vmem:[#allocation2 + $0x88] sm:$0xff]
        %v1531 = vld [vmem:[#allocation2 + $0x90] sm:$0xff]
        %v1532 = vld [vmem:[#allocation2 + $0x98] sm:$0xff]
        %v1533 = vld [vmem:[#allocation2 + $0xa0] sm:$0xff]
        %v1534 = vld [vmem:[#allocation2 + $0xa8] sm:$0xff]
        %v1535 = vpack.c.bf16 %v1530, %v1525
        %v1536 = vpack.c.bf16 %v1531, %v1526
        %v1537 = vpack.c.bf16 %v1532, %v1527
        %v1538 = vpack.c.bf16 %v1533, %v1528
        %v1539 = vpack.c.bf16 %v1534, %v1529
        %1545 = vrot.lane.b32.xlu0 %v1535, 4
        %v1546 = vpop.permute.xlu0 %1545
        %1547 = vrot.lane.b32.xlu0 %v1536, 4
        %v1548 = vpop.permute.xlu0 %1547
        %1549 = vrot.lane.b32.xlu0 %v1537, 4
        %v1550 = vpop.permute.xlu0 %1549
        %1551 = vrot.lane.b32.xlu0 %v1538, 4
        %v1552 = vpop.permute.xlu0 %1551
        %1553 = vrot.lane.b32.xlu0 %v1539, 4
        %v1554 = vpop.permute.xlu0 %1553
        %vm1555 = vcmask 31744
        %v1556 = vsel %vm1555, %v1546, %v1548
        %v1557 = vsel %vm1555, %v1548, %v1550
        %v1558 = vsel %vm1555, %v1550, %v1552
        %v1559 = vsel %vm1555, %v1552, %v1554
        %1564 = vst [vmem:[#allocation4] sm:$0xff] %v1556
        %1565 = vst [vmem:[#allocation4 + $0x8] sm:$0xff] %v1557
        %1566 = vst [vmem:[#allocation4 + $0x10] sm:$0xff] %v1558
        %1567 = vst [vmem:[#allocation4 + $0x18] sm:$0xff] %v1559
        %v1568 = vld [vmem:[#allocation2 + $0x20] sm:$0xff]
        %v1569 = vld [vmem:[#allocation2 + $0x28] sm:$0xff]
        %v1570 = vld [vmem:[#allocation2 + $0x30] sm:$0xff]
        %v1571 = vld [vmem:[#allocation2 + $0x38] sm:$0xff]
        %v1572 = vld [vmem:[#allocation2 + $0x90] sm:$0xff]
        %v1573 = vld [vmem:[#allocation2 + $0x98] sm:$0xff]
        %v1574 = vld [vmem:[#allocation2 + $0xa0] sm:$0xff]
        %v1575 = vld [vmem:[#allocation2 + $0xa8] sm:$0xff]
        %v1576 = vpack.c.bf16 %v1572, %v1568
        %v1577 = vpack.c.bf16 %v1573, %v1569
        %v1578 = vpack.c.bf16 %v1574, %v1570
        %v1579 = vpack.c.bf16 %v1575, %v1571
        %1580 = vst [vmem:[#allocation4 + $0x20] sm:$0xff] %v1576
        %1581 = vst [vmem:[#allocation4 + $0x28] sm:$0xff] %v1577
        %1582 = vst [vmem:[#allocation4 + $0x30] sm:$0xff] %v1578
        %1583 = vst [vmem:[#allocation4 + $0x38] sm:$0xff] %v1579
        %v1584 = vld [vmem:[#allocation2 + $0x20] sm:$0xff]
        %v1585 = vld [vmem:[#allocation2 + $0x28] sm:$0xff]
        %v1586 = vld [vmem:[#allocation2 + $0x30] sm:$0xff]
        %v1587 = vld [vmem:[#allocation2 + $0x38] sm:$0xff]
        %v1588 = vld [vmem:[#allocation2 + $0x40] sm:$0xff]
        %v1589 = vld [vmem:[#allocation2 + $0x90] sm:$0xff]
        %v1590 = vld [vmem:[#allocation2 + $0x98] sm:$0xff]
        %v1591 = vld [vmem:[#allocation2 + $0xa0] sm:$0xff]
        %v1592 = vld [vmem:[#allocation2 + $0xa8] sm:$0xff]
        %v1593 = vld [vmem:[#allocation2 + $0xb0] sm:$0xff]
        %v1594 = vpack.c.bf16 %v1589, %v1584
        %v1595 = vpack.c.bf16 %v1590, %v1585
        %v1596 = vpack.c.bf16 %v1591, %v1586
        %v1597 = vpack.c.bf16 %v1592, %v1587
        %v1598 = vpack.c.bf16 %v1593, %v1588
        %1604 = vrot.lane.b32.xlu0 %v1594, 124
        %v1605 = vpop.permute.xlu0 %1604
        %1606 = vrot.lane.b32.xlu0 %v1595, 124
        %v1607 = vpop.permute.xlu0 %1606
        %1608 = vrot.lane.b32.xlu0 %v1596, 124
        %v1609 = vpop.permute.xlu0 %1608
        %1610 = vrot.lane.b32.xlu0 %v1597, 124
        %v1611 = vpop.permute.xlu0 %1610
        %1612 = vrot.lane.b32.xlu0 %v1598, 124
        %v1613 = vpop.permute.xlu0 %1612
        %vm1614 = vcmask 1014784
        %v1615 = vsel %vm1614, %v1605, %v1607
        %v1616 = vsel %vm1614, %v1607, %v1609
        %v1617 = vsel %vm1614, %v1609, %v1611
        %v1618 = vsel %vm1614, %v1611, %v1613
        %1623 = vst [vmem:[#allocation4 + $0x40] sm:$0xff] %v1615
        %1624 = vst [vmem:[#allocation4 + $0x48] sm:$0xff] %v1616
        %1625 = vst [vmem:[#allocation4 + $0x50] sm:$0xff] %v1617
        %1626 = vst [vmem:[#allocation4 + $0x58] sm:$0xff] %v1618
        %v1627 = vld [vmem:[#allocation2 + $0x20] sm:$0xff]
        %v1628 = vld [vmem:[#allocation2 + $0x28] sm:$0xff]
        %v1629 = vld [vmem:[#allocation2 + $0x30] sm:$0xff]
        %v1630 = vld [vmem:[#allocation2 + $0x38] sm:$0xff]
        %v1631 = vld [vmem:[#allocation2 + $0x40] sm:$0xff]
        %v1632 = vld [vmem:[#allocation2 + $0x90] sm:$0xff]
        %v1633 = vld [vmem:[#allocation2 + $0x98] sm:$0xff]
        %v1634 = vld [vmem:[#allocation2 + $0xa0] sm:$0xff]
        %v1635 = vld [vmem:[#allocation2 + $0xa8] sm:$0xff]
        %v1636 = vld [vmem:[#allocation2 + $0xb0] sm:$0xff]
        %v1637 = vpack.c.bf16 %v1632, %v1627
        %v1638 = vpack.c.bf16 %v1633, %v1628
        %v1639 = vpack.c.bf16 %v1634, %v1629
        %v1640 = vpack.c.bf16 %v1635, %v1630
        %v1641 = vpack.c.bf16 %v1636, %v1631
        %1647 = vrot.lane.b32.xlu0 %v1637, 4
        %v1648 = vpop.permute.xlu0 %1647
        %1649 = vrot.lane.b32.xlu0 %v1638, 4
        %v1650 = vpop.permute.xlu0 %1649
        %1651 = vrot.lane.b32.xlu0 %v1639, 4
        %v1652 = vpop.permute.xlu0 %1651
        %1653 = vrot.lane.b32.xlu0 %v1640, 4
        %v1654 = vpop.permute.xlu0 %1653
        %1655 = vrot.lane.b32.xlu0 %v1641, 4
        %v1656 = vpop.permute.xlu0 %1655
        %v1657 = vsel %vm1555, %v1648, %v1650
        %v1658 = vsel %vm1555, %v1650, %v1652
        %v1659 = vsel %vm1555, %v1652, %v1654
        %v1660 = vsel %vm1555, %v1654, %v1656
        %1665 = vst [vmem:[#allocation4 + $0x60] sm:$0xff] %v1657
        %1666 = vst [vmem:[#allocation4 + $0x68] sm:$0xff] %v1658
        %1667 = vst [vmem:[#allocation4 + $0x70] sm:$0xff] %v1659
        %1668 = vst [vmem:[#allocation4 + $0x78] sm:$0xff] %v1660
        %v1669 = vld [vmem:[#allocation2 + $0x28] sm:$0xff]
        %v1670 = vld [vmem:[#allocation2 + $0x30] sm:$0xff]
        %v1671 = vld [vmem:[#allocation2 + $0x38] sm:$0xff]
        %v1672 = vld [vmem:[#allocation2 + $0x40] sm:$0xff]
        %v1673 = vld [vmem:[#allocation2 + $0x98] sm:$0xff]
        %v1674 = vld [vmem:[#allocation2 + $0xa0] sm:$0xff]
        %v1675 = vld [vmem:[#allocation2 + $0xa8] sm:$0xff]
        %v1676 = vld [vmem:[#allocation2 + $0xb0] sm:$0xff]
        %v1677 = vpack.c.bf16 %v1673, %v1669
        %v1678 = vpack.c.bf16 %v1674, %v1670
        %v1679 = vpack.c.bf16 %v1675, %v1671
        %v1680 = vpack.c.bf16 %v1676, %v1672
        %1681 = vst [vmem:[#allocation4 + $0x80] sm:$0xff] %v1677
        %1682 = vst [vmem:[#allocation4 + $0x88] sm:$0xff] %v1678
        %1683 = vst [vmem:[#allocation4 + $0x90] sm:$0xff] %v1679
        %1684 = vst [vmem:[#allocation4 + $0x98] sm:$0xff] %v1680
        %v1685 = vld [vmem:[#allocation2 + $0x28] sm:$0xff]
        %v1686 = vld [vmem:[#allocation2 + $0x30] sm:$0xff]
        %v1687 = vld [vmem:[#allocation2 + $0x38] sm:$0xff]
        %v1688 = vld [vmem:[#allocation2 + $0x40] sm:$0xff]
        %v1689 = vld [vmem:[#allocation2 + $0x48] sm:$0xff]
        %v1690 = vld [vmem:[#allocation2 + $0x98] sm:$0xff]
        %v1691 = vld [vmem:[#allocation2 + $0xa0] sm:$0xff]
        %v1692 = vld [vmem:[#allocation2 + $0xa8] sm:$0xff]
        %v1693 = vld [vmem:[#allocation2 + $0xb0] sm:$0xff]
        %v1694 = vld [vmem:[#allocation2 + $0xb8] sm:$0xff]
        %v1695 = vpack.c.bf16 %v1690, %v1685
        %v1696 = vpack.c.bf16 %v1691, %v1686
        %v1697 = vpack.c.bf16 %v1692, %v1687
        %v1698 = vpack.c.bf16 %v1693, %v1688
        %v1699 = vpack.c.bf16 %v1694, %v1689
        %1705 = vrot.lane.b32.xlu0 %v1695, 124
        %v1706 = vpop.permute.xlu0 %1705
        %1707 = vrot.lane.b32.xlu0 %v1696, 124
        %v1708 = vpop.permute.xlu0 %1707
        %1709 = vrot.lane.b32.xlu0 %v1697, 124
        %v1710 = vpop.permute.xlu0 %1709
        %1711 = vrot.lane.b32.xlu0 %v1698, 124
        %v1712 = vpop.permute.xlu0 %1711
        %1713 = vrot.lane.b32.xlu0 %v1699, 124
        %v1714 = vpop.permute.xlu0 %1713
        %v1715 = vsel %vm1614, %v1706, %v1708
        %v1716 = vsel %vm1614, %v1708, %v1710
        %v1717 = vsel %vm1614, %v1710, %v1712
        %v1718 = vsel %vm1614, %v1712, %v1714
        %1723 = vst [vmem:[#allocation4 + $0xa0] sm:$0xff] %v1715
        %1724 = vst [vmem:[#allocation4 + $0xa8] sm:$0xff] %v1716
        %1725 = vst [vmem:[#allocation4 + $0xb0] sm:$0xff] %v1717
        %1726 = vst [vmem:[#allocation4 + $0xb8] sm:$0xff] %v1718
        %v1727 = vld [vmem:[#allocation2 + $0x28] sm:$0xff]
        %v1728 = vld [vmem:[#allocation2 + $0x30] sm:$0xff]
        %v1729 = vld [vmem:[#allocation2 + $0x38] sm:$0xff]
        %v1730 = vld [vmem:[#allocation2 + $0x40] sm:$0xff]
        %v1731 = vld [vmem:[#allocation2 + $0x48] sm:$0xff]
        %v1732 = vld [vmem:[#allocation2 + $0x98] sm:$0xff]
        %v1733 = vld [vmem:[#allocation2 + $0xa0] sm:$0xff]
        %v1734 = vld [vmem:[#allocation2 + $0xa8] sm:$0xff]
        %v1735 = vld [vmem:[#allocation2 + $0xb0] sm:$0xff]
        %v1736 = vld [vmem:[#allocation2 + $0xb8] sm:$0xff]
        %v1737 = vpack.c.bf16 %v1732, %v1727
        %v1738 = vpack.c.bf16 %v1733, %v1728
        %v1739 = vpack.c.bf16 %v1734, %v1729
        %v1740 = vpack.c.bf16 %v1735, %v1730
        %v1741 = vpack.c.bf16 %v1736, %v1731
        %1747 = vrot.lane.b32.xlu0 %v1737, 4
        %v1748 = vpop.permute.xlu0 %1747
        %1749 = vrot.lane.b32.xlu0 %v1738, 4
        %v1750 = vpop.permute.xlu0 %1749
        %1751 = vrot.lane.b32.xlu0 %v1739, 4
        %v1752 = vpop.permute.xlu0 %1751
        %1753 = vrot.lane.b32.xlu0 %v1740, 4
        %v1754 = vpop.permute.xlu0 %1753
        %1755 = vrot.lane.b32.xlu0 %v1741, 4
        %v1756 = vpop.permute.xlu0 %1755
        %v1757 = vsel %vm1555, %v1748, %v1750
        %v1758 = vsel %vm1555, %v1750, %v1752
        %v1759 = vsel %vm1555, %v1752, %v1754
        %v1760 = vsel %vm1555, %v1754, %v1756
        %1765 = vst [vmem:[#allocation4 + $0xc0] sm:$0xff] %v1757
        %1766 = vst [vmem:[#allocation4 + $0xc8] sm:$0xff] %v1758
        %1767 = vst [vmem:[#allocation4 + $0xd0] sm:$0xff] %v1759
        %1768 = vst [vmem:[#allocation4 + $0xd8] sm:$0xff] %v1760
        %v1769 = vld [vmem:[#allocation2 + $0x30] sm:$0xff]
        %v1770 = vld [vmem:[#allocation2 + $0x38] sm:$0xff]
        %v1771 = vld [vmem:[#allocation2 + $0x40] sm:$0xff]
        %v1772 = vld [vmem:[#allocation2 + $0x48] sm:$0xff]
        %v1773 = vld [vmem:[#allocation2 + $0xa0] sm:$0xff]
        %v1774 = vld [vmem:[#allocation2 + $0xa8] sm:$0xff]
        %v1775 = vld [vmem:[#allocation2 + $0xb0] sm:$0xff]
        %v1776 = vld [vmem:[#allocation2 + $0xb8] sm:$0xff]
        %v1777 = vpack.c.bf16 %v1773, %v1769
        %v1778 = vpack.c.bf16 %v1774, %v1770
        %v1779 = vpack.c.bf16 %v1775, %v1771
        %v1780 = vpack.c.bf16 %v1776, %v1772
        %1781 = vst [vmem:[#allocation4 + $0xe0] sm:$0xff] %v1777
        %1782 = vst [vmem:[#allocation4 + $0xe8] sm:$0xff] %v1778
        %1783 = vst [vmem:[#allocation4 + $0xf0] sm:$0xff] %v1779
        %1784 = vst [vmem:[#allocation4 + $0xf8] sm:$0xff] %v1780
        %v1785 = vld [vmem:[#allocation2 + $0x30] sm:$0xff]
        %v1786 = vld [vmem:[#allocation2 + $0x38] sm:$0xff]
        %v1787 = vld [vmem:[#allocation2 + $0x40] sm:$0xff]
        %v1788 = vld [vmem:[#allocation2 + $0x48] sm:$0xff]
        %v1789 = vld [vmem:[#allocation2 + $0x50] sm:$0xff]
        %v1790 = vld [vmem:[#allocation2 + $0xa0] sm:$0xff]
        %v1791 = vld [vmem:[#allocation2 + $0xa8] sm:$0xff]
        %v1792 = vld [vmem:[#allocation2 + $0xb0] sm:$0xff]
        %v1793 = vld [vmem:[#allocation2 + $0xb8] sm:$0xff]
        %v1794 = vld [vmem:[#allocation2 + $0xc0] sm:$0xff]
        %v1795 = vpack.c.bf16 %v1790, %v1785
        %v1796 = vpack.c.bf16 %v1791, %v1786
        %v1797 = vpack.c.bf16 %v1792, %v1787
        %v1798 = vpack.c.bf16 %v1793, %v1788
        %v1799 = vpack.c.bf16 %v1794, %v1789
        %1805 = vrot.lane.b32.xlu0 %v1795, 124
        %v1806 = vpop.permute.xlu0 %1805
        %1807 = vrot.lane.b32.xlu0 %v1796, 124
        %v1808 = vpop.permute.xlu0 %1807
        %1809 = vrot.lane.b32.xlu0 %v1797, 124
        %v1810 = vpop.permute.xlu0 %1809
        %1811 = vrot.lane.b32.xlu0 %v1798, 124
        %v1812 = vpop.permute.xlu0 %1811
        %1813 = vrot.lane.b32.xlu0 %v1799, 124
        %v1814 = vpop.permute.xlu0 %1813
        %v1815 = vsel %vm1614, %v1806, %v1808
        %v1816 = vsel %vm1614, %v1808, %v1810
        %v1817 = vsel %vm1614, %v1810, %v1812
        %v1818 = vsel %vm1614, %v1812, %v1814
        %1823 = vst [vmem:[#allocation4 + $0x100] sm:$0xff] %v1815
        %1824 = vst [vmem:[#allocation4 + $0x108] sm:$0xff] %v1816
        %1825 = vst [vmem:[#allocation4 + $0x110] sm:$0xff] %v1817
        %1826 = vst [vmem:[#allocation4 + $0x118] sm:$0xff] %v1818
        %s1827 = scalar_lea.vmem %s2, 32
        %v1828 = vld [vmem:[%s1827] sm:$0xff]
        %v1829 = vld [vmem:[%s1827 + $0x8] sm:$0xff]
        %v1830 = vld [vmem:[#allocation4] sm:$0xff]
        %v1831 = vld [vmem:[#allocation4 + $0x8] sm:$0xff]
        %v1832 = vld [vmem:[#allocation4 + $0x10] sm:$0xff]
        %v1833 = vld [vmem:[#allocation4 + $0x18] sm:$0xff]
        %v1834 = vld [vmem:[#allocation4 + $0x20] sm:$0xff]
        %v1835 = vld [vmem:[#allocation4 + $0x28] sm:$0xff]
        %v1836 = vld [vmem:[#allocation4 + $0x30] sm:$0xff]
        %v1837 = vld [vmem:[#allocation4 + $0x38] sm:$0xff]
        %v1838 = vld [vmem:[#allocation4 + $0x40] sm:$0xff]
        %v1839 = vld [vmem:[#allocation4 + $0x48] sm:$0xff]
        %v1840 = vld [vmem:[#allocation4 + $0x50] sm:$0xff]
        %v1841 = vld [vmem:[#allocation4 + $0x58] sm:$0xff]
        %v1842 = vld [vmem:[#allocation4 + $0x60] sm:$0xff]
        %v1843 = vld [vmem:[#allocation4 + $0x68] sm:$0xff]
        %v1844 = vld [vmem:[#allocation4 + $0x70] sm:$0xff]
        %v1845 = vld [vmem:[#allocation4 + $0x78] sm:$0xff]
        %v1846 = vld [vmem:[#allocation4 + $0x80] sm:$0xff]
        %v1847 = vld [vmem:[#allocation4 + $0x88] sm:$0xff]
        %v1848 = vld [vmem:[#allocation4 + $0x90] sm:$0xff]
        %v1849 = vld [vmem:[#allocation4 + $0x98] sm:$0xff]
        %v1850 = vld [vmem:[#allocation4 + $0xa0] sm:$0xff]
        %v1851 = vld [vmem:[#allocation4 + $0xa8] sm:$0xff]
        %v1852 = vld [vmem:[#allocation4 + $0xb0] sm:$0xff]
        %v1853 = vld [vmem:[#allocation4 + $0xb8] sm:$0xff]
        %v1854 = vld [vmem:[#allocation4 + $0xc0] sm:$0xff]
        %v1855 = vld [vmem:[#allocation4 + $0xc8] sm:$0xff]
        %v1856 = vld [vmem:[#allocation4 + $0xd0] sm:$0xff]
        %v1857 = vld [vmem:[#allocation4 + $0xd8] sm:$0xff]
        %v1858 = vld [vmem:[#allocation4 + $0xe0] sm:$0xff]
        %v1859 = vld [vmem:[#allocation4 + $0xe8] sm:$0xff]
        %v1860 = vld [vmem:[#allocation4 + $0xf0] sm:$0xff]
        %v1861 = vld [vmem:[#allocation4 + $0xf8] sm:$0xff]
        %v1862 = vld [vmem:[#allocation4 + $0x100] sm:$0xff]
        %v1863 = vld [vmem:[#allocation4 + $0x108] sm:$0xff]
        %v1864 = vld [vmem:[#allocation4 + $0x110] sm:$0xff]
        %v1865 = vld [vmem:[#allocation4 + $0x118] sm:$0xff]
        %s1866 = scalar_lea.vmem %s3, 32
        %v1867 = vld [vmem:[%s1866] sm:$0xff]
        %v1868 = vld [vmem:[%s1866 + $0x8] sm:$0xff]
        %1870 = vset.pattern.permute.xlu0 0
        %1871 = vperm.xlu0 %1870, %v1867
        %v1872 = vpop.permute.xlu0 %1871
        %1875 = vset.pattern.permute.xlu0 0
        %1876 = vperm.xlu0 %1875, %v1868
        %v1877 = vpop.permute.xlu0 %1876
        %v1881 = vunpack.c.l.b16 %v1828
        %v1882 = vunpack.c.h.b16 %v1828
        %v1883 = vunpack.c.l.b16 %v1829
        %v1884 = vunpack.c.h.b16 %v1829
        %v1885 = vpack.c.b16 %v1883, %v1881
        %v1886 = vpack.c.b16 %v1884, %v1882
        %v1889 = vsel %vm880, %v1886, 0
        %1891 = vmatprep.subr.bf16.mxu0 %v1831
        %1892 = vmatpush1.bf16.msra.mxu0 %v1830
        %1893 = vmatprep.subr.bf16.mxu0 %v1835
        %1894 = vmatpush1.bf16.msra.mxu0 %v1834
        %1895 = vmatprep.subr.bf16.mxu0 %v1839
        %1896 = vmatpush1.bf16.msra.mxu0 %v1838
        %1897 = vmatprep.subr.bf16.mxu0 %v1843
        %1898 = vmatpush1.bf16.msra.mxu0 %v1842
        %1899 = vmatprep.subr.bf16.mxu0 %v1847
        %1900 = vmatpush1.bf16.msra.mxu0 %v1846
        %1901 = vmatprep.subr.bf16.mxu0 %v1851
        %1902 = vmatpush1.bf16.msra.mxu0 %v1850
        %1903 = vmatprep.subr.bf16.mxu0 %v1855
        %1904 = vmatpush1.bf16.msra.mxu0 %v1854
        %1905 = vmatprep.subr.bf16.mxu0 %v1859
        %1906 = vmatpush1.bf16.msra.mxu0 %v1858
        %1907 = vmatprep.subr.bf16.mxu0 %v1863
        %1908 = vmatpush1.bf16.msra.mxu0 %v1862
        %1909 = vmatprep.subr.bf16.mxu0 0
        %1910 = vmatpush1.bf16.msra.mxu0 0
        %1911 = vmatprep.subr.bf16.mxu0 0
        %1912 = vmatpush1.bf16.msra.mxu0 0
        %1913 = vmatprep.subr.bf16.mxu0 0
        %1914 = vmatpush1.bf16.msra.mxu0 0
        %1915 = vmatprep.subr.bf16.mxu0 0
        %1916 = vmatpush1.bf16.msra.mxu0 0
        %1917 = vmatprep.subr.bf16.mxu0 0
        %1918 = vmatpush1.bf16.msra.mxu0 0
        %1919 = vmatprep.subr.bf16.mxu0 0
        %1920 = vmatpush1.bf16.msra.mxu0 0
        %1921 = vmatprep.subr.bf16.mxu0 0
        %1922 = vmatpush1.bf16.msra.mxu0 0
        %1923 = vmatprep.mubr.bf16.mxu0 %v1889
        %1924 = vmatmul.mubr.bf16.gmra.mrb[0].mxu0 %v1885
        %v1925 = vpop.f32.mrb[0].mxu0
        %v1926 = vadd.f32 %v1872, %v1925
        %v1927 = vpop.f32.mrb[0].mxu0
        %v1928 = vadd.f32 %v1872, %v1927
        %v1929 = vpop.f32.mrb[0].mxu0
        %v1930 = vadd.f32 %v1877, %v1929
        %v1931 = vpop.f32.mrb[0].mxu0
        %v1932 = vadd.f32 %v1877, %v1931
        %1933 = vdwg.mxu0
        %1934 = vmatprep.subr.bf16.mxu0 %v1833
        %1935 = vmatpush1.bf16.msra.mxu0 %v1832
        %1936 = vmatprep.subr.bf16.mxu0 %v1837
        %1937 = vmatpush1.bf16.msra.mxu0 %v1836
        %1938 = vmatprep.subr.bf16.mxu0 %v1841
        %1939 = vmatpush1.bf16.msra.mxu0 %v1840
        %1940 = vmatprep.subr.bf16.mxu0 %v1845
        %1941 = vmatpush1.bf16.msra.mxu0 %v1844
        %1942 = vmatprep.subr.bf16.mxu0 %v1849
        %1943 = vmatpush1.bf16.msra.mxu0 %v1848
        %1944 = vmatprep.subr.bf16.mxu0 %v1853
        %1945 = vmatpush1.bf16.msra.mxu0 %v1852
        %1946 = vmatprep.subr.bf16.mxu0 %v1857
        %1947 = vmatpush1.bf16.msra.mxu0 %v1856
        %1948 = vmatprep.subr.bf16.mxu0 %v1861
        %1949 = vmatpush1.bf16.msra.mxu0 %v1860
        %1950 = vmatprep.subr.bf16.mxu0 %v1865
        %1951 = vmatpush1.bf16.msra.mxu0 %v1864
        %1952 = vmatprep.subr.bf16.mxu0 0
        %1953 = vmatpush1.bf16.msra.mxu0 0
        %1954 = vmatprep.subr.bf16.mxu0 0
        %1955 = vmatpush1.bf16.msra.mxu0 0
        %1956 = vmatprep.subr.bf16.mxu0 0
        %1957 = vmatpush1.bf16.msra.mxu0 0
        %1958 = vmatprep.subr.bf16.mxu0 0
        %1959 = vmatpush1.bf16.msra.mxu0 0
        %1960 = vmatprep.subr.bf16.mxu0 0
        %1961 = vmatpush1.bf16.msra.mxu0 0
        %1962 = vmatprep.subr.bf16.mxu0 0
        %1963 = vmatpush1.bf16.msra.mxu0 0
        %1964 = vmatprep.subr.bf16.mxu0 0
        %1965 = vmatpush1.bf16.msra.mxu0 0
        %1966 = vmatprep.mubr.bf16.mxu0 %v1889
        %1967 = vmatmul.mubr.bf16.gmra.mrb[0].mxu0 %v1885
        %v1968 = vpop.f32.mrb[0].mxu0
        %v1969 = vadd.f32 %v1872, %v1968
        %v1970 = vpop.f32.mrb[0].mxu0
        %v1971 = vadd.f32 %v1872, %v1970
        %v1972 = vpop.f32.mrb[0].mxu0
        %v1973 = vadd.f32 %v1877, %v1972
        %v1974 = vpop.f32.mrb[0].mxu0
        %v1975 = vadd.f32 %v1877, %v1974
        %1976 = vdwg.mxu0
        %v1977 = vmax.f32 %v1926, 0.0
        %v1978 = vmax.f32 %v1928, 0.0
        %v1979 = vmax.f32 %v1969, 0.0
        %v1980 = vmax.f32 %v1971, 0.0
        %v1981 = vmax.f32 %v1930, 0.0
        %v1982 = vmax.f32 %v1932, 0.0
        %v1983 = vmax.f32 %v1973, 0.0
        %v1984 = vmax.f32 %v1975, 0.0
        %v1985 = vmul.f32 %v1977, %v457
        %v1986 = vmul.f32 %v1978, %v458
        %v1987 = vmul.f32 %v1979, %v459
        %v1988 = vmul.f32 %v1980, %v460
        %v1989 = vmul.f32 %v1981, %v457
        %v1990 = vmul.f32 %v1982, %v458
        %v1991 = vmul.f32 %v1983, %v459
        %v1992 = vmul.f32 %v1984, %v460
        %1993 = vst [vmem:[#allocation3 + $0x28] sm:$0xff] %v1985
        %1994 = vst [vmem:[#allocation3 + $0x30] sm:$0xff] %v1986
        %1995 = vst [vmem:[#allocation3 + $0x38] sm:$0xff] %v1987
        %1996 = vst [vmem:[#allocation3 + $0x40] sm:$0xff] %v1988
        %1997 = vst [vmem:[#allocation3 + $0x98] sm:$0xff] %v1989
        %1998 = vst [vmem:[#allocation3 + $0xa0] sm:$0xff] %v1990
        %1999 = vst [vmem:[#allocation3 + $0xa8] sm:$0xff] %v1991
        %2000 = vst [vmem:[#allocation3 + $0xb0] sm:$0xff] %v1992
        %v2001 = vld [vmem:[#allocation3 + $0x10] sm:$0xff]
        %v2002 = vld [vmem:[#allocation3 + $0x18] sm:$0xff]
        %v2003 = vld [vmem:[#allocation3 + $0x20] sm:$0xff]
        %v2004 = vld [vmem:[#allocation3 + $0x28] sm:$0xff]
        %v2005 = vld [vmem:[#allocation3 + $0x30] sm:$0xff]
        %v2006 = vld [vmem:[#allocation3 + $0x80] sm:$0xff]
        %v2007 = vld [vmem:[#allocation3 + $0x88] sm:$0xff]
        %v2008 = vld [vmem:[#allocation3 + $0x90] sm:$0xff]
        %v2009 = vld [vmem:[#allocation3 + $0x98] sm:$0xff]
        %v2010 = vld [vmem:[#allocation3 + $0xa0] sm:$0xff]
        %v2011 = vpack.c.bf16 %v2006, %v2001
        %v2012 = vpack.c.bf16 %v2007, %v2002
        %v2013 = vpack.c.bf16 %v2008, %v2003
        %v2014 = vpack.c.bf16 %v2009, %v2004
        %v2015 = vpack.c.bf16 %v2010, %v2005
        %2021 = vrot.lane.b32.xlu0 %v2011, 8
        %v2022 = vpop.permute.xlu0 %2021
        %2023 = vrot.lane.b32.xlu0 %v2012, 8
        %v2024 = vpop.permute.xlu0 %2023
        %2025 = vrot.lane.b32.xlu0 %v2013, 8
        %v2026 = vpop.permute.xlu0 %2025
        %2027 = vrot.lane.b32.xlu0 %v2014, 8
        %v2028 = vpop.permute.xlu0 %2027
        %2029 = vrot.lane.b32.xlu0 %v2015, 8
        %v2030 = vpop.permute.xlu0 %2029
        %vm2031 = vcmask 64512
        %v2032 = vsel %vm2031, %v2022, %v2024
        %v2033 = vsel %vm2031, %v2024, %v2026
        %v2034 = vsel %vm2031, %v2026, %v2028
        %v2035 = vsel %vm2031, %v2028, %v2030
        %2040 = vst [vmem:[#allocation4] sm:$0xff] %v2032
        %2041 = vst [vmem:[#allocation4 + $0x8] sm:$0xff] %v2033
        %2042 = vst [vmem:[#allocation4 + $0x10] sm:$0xff] %v2034
        %2043 = vst [vmem:[#allocation4 + $0x18] sm:$0xff] %v2035
        %v2044 = vld [vmem:[#allocation3 + $0x18] sm:$0xff]
        %v2045 = vld [vmem:[#allocation3 + $0x20] sm:$0xff]
        %v2046 = vld [vmem:[#allocation3 + $0x28] sm:$0xff]
        %v2047 = vld [vmem:[#allocation3 + $0x30] sm:$0xff]
        %v2048 = vld [vmem:[#allocation3 + $0x88] sm:$0xff]
        %v2049 = vld [vmem:[#allocation3 + $0x90] sm:$0xff]
        %v2050 = vld [vmem:[#allocation3 + $0x98] sm:$0xff]
        %v2051 = vld [vmem:[#allocation3 + $0xa0] sm:$0xff]
        %v2052 = vpack.c.bf16 %v2048, %v2044
        %v2053 = vpack.c.bf16 %v2049, %v2045
        %v2054 = vpack.c.bf16 %v2050, %v2046
        %v2055 = vpack.c.bf16 %v2051, %v2047
        %2056 = vst [vmem:[#allocation4 + $0x20] sm:$0xff] %v2052
        %2057 = vst [vmem:[#allocation4 + $0x28] sm:$0xff] %v2053
        %2058 = vst [vmem:[#allocation4 + $0x30] sm:$0xff] %v2054
        %2059 = vst [vmem:[#allocation4 + $0x38] sm:$0xff] %v2055
        %v2060 = vld [vmem:[#allocation3 + $0x18] sm:$0xff]
        %v2061 = vld [vmem:[#allocation3 + $0x20] sm:$0xff]
        %v2062 = vld [vmem:[#allocation3 + $0x28] sm:$0xff]
        %v2063 = vld [vmem:[#allocation3 + $0x30] sm:$0xff]
        %v2064 = vld [vmem:[#allocation3 + $0x38] sm:$0xff]
        %v2065 = vld [vmem:[#allocation3 + $0x88] sm:$0xff]
        %v2066 = vld [vmem:[#allocation3 + $0x90] sm:$0xff]
        %v2067 = vld [vmem:[#allocation3 + $0x98] sm:$0xff]
        %v2068 = vld [vmem:[#allocation3 + $0xa0] sm:$0xff]
        %v2069 = vld [vmem:[#allocation3 + $0xa8] sm:$0xff]
        %v2070 = vpack.c.bf16 %v2065, %v2060
        %v2071 = vpack.c.bf16 %v2066, %v2061
        %v2072 = vpack.c.bf16 %v2067, %v2062
        %v2073 = vpack.c.bf16 %v2068, %v2063
        %v2074 = vpack.c.bf16 %v2069, %v2064
        %2080 = vrot.lane.b32.xlu0 %v2070, 120
        %v2081 = vpop.permute.xlu0 %2080
        %2082 = vrot.lane.b32.xlu0 %v2071, 120
        %v2083 = vpop.permute.xlu0 %2082
        %2084 = vrot.lane.b32.xlu0 %v2072, 120
        %v2085 = vpop.permute.xlu0 %2084
        %2086 = vrot.lane.b32.xlu0 %v2073, 120
        %v2087 = vpop.permute.xlu0 %2086
        %2088 = vrot.lane.b32.xlu0 %v2074, 120
        %v2089 = vpop.permute.xlu0 %2088
        %vm2090 = vcmask 982016
        %v2091 = vsel %vm2090, %v2081, %v2083
        %v2092 = vsel %vm2090, %v2083, %v2085
        %v2093 = vsel %vm2090, %v2085, %v2087
        %v2094 = vsel %vm2090, %v2087, %v2089
        %2099 = vst [vmem:[#allocation4 + $0x40] sm:$0xff] %v2091
        %2100 = vst [vmem:[#allocation4 + $0x48] sm:$0xff] %v2092
        %2101 = vst [vmem:[#allocation4 + $0x50] sm:$0xff] %v2093
        %2102 = vst [vmem:[#allocation4 + $0x58] sm:$0xff] %v2094
        %v2103 = vld [vmem:[#allocation3 + $0x20] sm:$0xff]
        %v2104 = vld [vmem:[#allocation3 + $0x28] sm:$0xff]
        %v2105 = vld [vmem:[#allocation3 + $0x30] sm:$0xff]
        %v2106 = vld [vmem:[#allocation3 + $0x38] sm:$0xff]
        %v2107 = vld [vmem:[#allocation3 + $0x40] sm:$0xff]
        %v2108 = vld [vmem:[#allocation3 + $0x90] sm:$0xff]
        %v2109 = vld [vmem:[#allocation3 + $0x98] sm:$0xff]
        %v2110 = vld [vmem:[#allocation3 + $0xa0] sm:$0xff]
        %v2111 = vld [vmem:[#allocation3 + $0xa8] sm:$0xff]
        %v2112 = vld [vmem:[#allocation3 + $0xb0] sm:$0xff]
        %v2113 = vpack.c.bf16 %v2108, %v2103
        %v2114 = vpack.c.bf16 %v2109, %v2104
        %v2115 = vpack.c.bf16 %v2110, %v2105
        %v2116 = vpack.c.bf16 %v2111, %v2106
        %v2117 = vpack.c.bf16 %v2112, %v2107
        %2123 = vrot.lane.b32.xlu0 %v2113, 8
        %v2124 = vpop.permute.xlu0 %2123
        %2125 = vrot.lane.b32.xlu0 %v2114, 8
        %v2126 = vpop.permute.xlu0 %2125
        %2127 = vrot.lane.b32.xlu0 %v2115, 8
        %v2128 = vpop.permute.xlu0 %2127
        %2129 = vrot.lane.b32.xlu0 %v2116, 8
        %v2130 = vpop.permute.xlu0 %2129
        %2131 = vrot.lane.b32.xlu0 %v2117, 8
        %v2132 = vpop.permute.xlu0 %2131
        %v2133 = vsel %vm2031, %v2124, %v2126
        %v2134 = vsel %vm2031, %v2126, %v2128
        %v2135 = vsel %vm2031, %v2128, %v2130
        %v2136 = vsel %vm2031, %v2130, %v2132
        %2141 = vst [vmem:[#allocation4 + $0x60] sm:$0xff] %v2133
        %2142 = vst [vmem:[#allocation4 + $0x68] sm:$0xff] %v2134
        %2143 = vst [vmem:[#allocation4 + $0x70] sm:$0xff] %v2135
        %2144 = vst [vmem:[#allocation4 + $0x78] sm:$0xff] %v2136
        %v2145 = vld [vmem:[#allocation3 + $0x28] sm:$0xff]
        %v2146 = vld [vmem:[#allocation3 + $0x30] sm:$0xff]
        %v2147 = vld [vmem:[#allocation3 + $0x38] sm:$0xff]
        %v2148 = vld [vmem:[#allocation3 + $0x40] sm:$0xff]
        %v2149 = vld [vmem:[#allocation3 + $0x98] sm:$0xff]
        %v2150 = vld [vmem:[#allocation3 + $0xa0] sm:$0xff]
        %v2151 = vld [vmem:[#allocation3 + $0xa8] sm:$0xff]
        %v2152 = vld [vmem:[#allocation3 + $0xb0] sm:$0xff]
        %v2153 = vpack.c.bf16 %v2149, %v2145
        %v2154 = vpack.c.bf16 %v2150, %v2146
        %v2155 = vpack.c.bf16 %v2151, %v2147
        %v2156 = vpack.c.bf16 %v2152, %v2148
        %2157 = vst [vmem:[#allocation4 + $0x80] sm:$0xff] %v2153
        %2158 = vst [vmem:[#allocation4 + $0x88] sm:$0xff] %v2154
        %2159 = vst [vmem:[#allocation4 + $0x90] sm:$0xff] %v2155
        %2160 = vst [vmem:[#allocation4 + $0x98] sm:$0xff] %v2156
        %v2161 = vld [vmem:[#allocation3 + $0x28] sm:$0xff]
        %v2162 = vld [vmem:[#allocation3 + $0x30] sm:$0xff]
        %v2163 = vld [vmem:[#allocation3 + $0x38] sm:$0xff]
        %v2164 = vld [vmem:[#allocation3 + $0x40] sm:$0xff]
        %v2165 = vld [vmem:[#allocation3 + $0x48] sm:$0xff]
        %v2166 = vld [vmem:[#allocation3 + $0x98] sm:$0xff]
        %v2167 = vld [vmem:[#allocation3 + $0xa0] sm:$0xff]
        %v2168 = vld [vmem:[#allocation3 + $0xa8] sm:$0xff]
        %v2169 = vld [vmem:[#allocation3 + $0xb0] sm:$0xff]
        %v2170 = vld [vmem:[#allocation3 + $0xb8] sm:$0xff]
        %v2171 = vpack.c.bf16 %v2166, %v2161
        %v2172 = vpack.c.bf16 %v2167, %v2162
        %v2173 = vpack.c.bf16 %v2168, %v2163
        %v2174 = vpack.c.bf16 %v2169, %v2164
        %v2175 = vpack.c.bf16 %v2170, %v2165
        %2181 = vrot.lane.b32.xlu0 %v2171, 120
        %v2182 = vpop.permute.xlu0 %2181
        %2183 = vrot.lane.b32.xlu0 %v2172, 120
        %v2184 = vpop.permute.xlu0 %2183
        %2185 = vrot.lane.b32.xlu0 %v2173, 120
        %v2186 = vpop.permute.xlu0 %2185
        %2187 = vrot.lane.b32.xlu0 %v2174, 120
        %v2188 = vpop.permute.xlu0 %2187
        %2189 = vrot.lane.b32.xlu0 %v2175, 120
        %v2190 = vpop.permute.xlu0 %2189
        %v2191 = vsel %vm2090, %v2182, %v2184
        %v2192 = vsel %vm2090, %v2184, %v2186
        %v2193 = vsel %vm2090, %v2186, %v2188
        %v2194 = vsel %vm2090, %v2188, %v2190
        %2199 = vst [vmem:[#allocation4 + $0xa0] sm:$0xff] %v2191
        %2200 = vst [vmem:[#allocation4 + $0xa8] sm:$0xff] %v2192
        %2201 = vst [vmem:[#allocation4 + $0xb0] sm:$0xff] %v2193
        %2202 = vst [vmem:[#allocation4 + $0xb8] sm:$0xff] %v2194
        %v2203 = vld [vmem:[#allocation3 + $0x30] sm:$0xff]
        %v2204 = vld [vmem:[#allocation3 + $0x38] sm:$0xff]
        %v2205 = vld [vmem:[#allocation3 + $0x40] sm:$0xff]
        %v2206 = vld [vmem:[#allocation3 + $0x48] sm:$0xff]
        %v2207 = vld [vmem:[#allocation3 + $0x50] sm:$0xff]
        %v2208 = vld [vmem:[#allocation3 + $0xa0] sm:$0xff]
        %v2209 = vld [vmem:[#allocation3 + $0xa8] sm:$0xff]
        %v2210 = vld [vmem:[#allocation3 + $0xb0] sm:$0xff]
        %v2211 = vld [vmem:[#allocation3 + $0xb8] sm:$0xff]
        %v2212 = vld [vmem:[#allocation3 + $0xc0] sm:$0xff]
        %v2213 = vpack.c.bf16 %v2208, %v2203
        %v2214 = vpack.c.bf16 %v2209, %v2204
        %v2215 = vpack.c.bf16 %v2210, %v2205
        %v2216 = vpack.c.bf16 %v2211, %v2206
        %v2217 = vpack.c.bf16 %v2212, %v2207
        %2223 = vrot.lane.b32.xlu0 %v2213, 8
        %v2224 = vpop.permute.xlu0 %2223
        %2225 = vrot.lane.b32.xlu0 %v2214, 8
        %v2226 = vpop.permute.xlu0 %2225
        %2227 = vrot.lane.b32.xlu0 %v2215, 8
        %v2228 = vpop.permute.xlu0 %2227
        %2229 = vrot.lane.b32.xlu0 %v2216, 8
        %v2230 = vpop.permute.xlu0 %2229
        %2231 = vrot.lane.b32.xlu0 %v2217, 8
        %v2232 = vpop.permute.xlu0 %2231
        %v2233 = vsel %vm2031, %v2224, %v2226
        %v2234 = vsel %vm2031, %v2226, %v2228
        %v2235 = vsel %vm2031, %v2228, %v2230
        %v2236 = vsel %vm2031, %v2230, %v2232
        %2241 = vst [vmem:[#allocation4 + $0xc0] sm:$0xff] %v2233
        %2242 = vst [vmem:[#allocation4 + $0xc8] sm:$0xff] %v2234
        %2243 = vst [vmem:[#allocation4 + $0xd0] sm:$0xff] %v2235
        %2244 = vst [vmem:[#allocation4 + $0xd8] sm:$0xff] %v2236
        %v2245 = vld [vmem:[#allocation3 + $0x38] sm:$0xff]
        %v2246 = vld [vmem:[#allocation3 + $0x40] sm:$0xff]
        %v2247 = vld [vmem:[#allocation3 + $0x48] sm:$0xff]
        %v2248 = vld [vmem:[#allocation3 + $0x50] sm:$0xff]
        %v2249 = vld [vmem:[#allocation3 + $0xa8] sm:$0xff]
        %v2250 = vld [vmem:[#allocation3 + $0xb0] sm:$0xff]
        %v2251 = vld [vmem:[#allocation3 + $0xb8] sm:$0xff]
        %v2252 = vld [vmem:[#allocation3 + $0xc0] sm:$0xff]
        %v2253 = vpack.c.bf16 %v2249, %v2245
        %v2254 = vpack.c.bf16 %v2250, %v2246
        %v2255 = vpack.c.bf16 %v2251, %v2247
        %v2256 = vpack.c.bf16 %v2252, %v2248
        %2257 = vst [vmem:[#allocation4 + $0xe0] sm:$0xff] %v2253
        %2258 = vst [vmem:[#allocation4 + $0xe8] sm:$0xff] %v2254
        %2259 = vst [vmem:[#allocation4 + $0xf0] sm:$0xff] %v2255
        %2260 = vst [vmem:[#allocation4 + $0xf8] sm:$0xff] %v2256
        %v2261 = vld [vmem:[#allocation3 + $0x38] sm:$0xff]
        %v2262 = vld [vmem:[#allocation3 + $0x40] sm:$0xff]
        %v2263 = vld [vmem:[#allocation3 + $0x48] sm:$0xff]
        %v2264 = vld [vmem:[#allocation3 + $0x50] sm:$0xff]
        %v2265 = vld [vmem:[#allocation3 + $0x58] sm:$0xff]
        %v2266 = vld [vmem:[#allocation3 + $0xa8] sm:$0xff]
        %v2267 = vld [vmem:[#allocation3 + $0xb0] sm:$0xff]
        %v2268 = vld [vmem:[#allocation3 + $0xb8] sm:$0xff]
        %v2269 = vld [vmem:[#allocation3 + $0xc0] sm:$0xff]
        %v2270 = vld [vmem:[#allocation3 + $0xc8] sm:$0xff]
        %v2271 = vpack.c.bf16 %v2266, %v2261
        %v2272 = vpack.c.bf16 %v2267, %v2262
        %v2273 = vpack.c.bf16 %v2268, %v2263
        %v2274 = vpack.c.bf16 %v2269, %v2264
        %v2275 = vpack.c.bf16 %v2270, %v2265
        %2281 = vrot.lane.b32.xlu0 %v2271, 120
        %v2282 = vpop.permute.xlu0 %2281
        %2283 = vrot.lane.b32.xlu0 %v2272, 120
        %v2284 = vpop.permute.xlu0 %2283
        %2285 = vrot.lane.b32.xlu0 %v2273, 120
        %v2286 = vpop.permute.xlu0 %2285
        %2287 = vrot.lane.b32.xlu0 %v2274, 120
        %v2288 = vpop.permute.xlu0 %2287
        %2289 = vrot.lane.b32.xlu0 %v2275, 120
        %v2290 = vpop.permute.xlu0 %2289
        %v2291 = vsel %vm2090, %v2282, %v2284
        %v2292 = vsel %vm2090, %v2284, %v2286
        %v2293 = vsel %vm2090, %v2286, %v2288
        %v2294 = vsel %vm2090, %v2288, %v2290
        %2299 = vst [vmem:[#allocation4 + $0x100] sm:$0xff] %v2291
        %2300 = vst [vmem:[#allocation4 + $0x108] sm:$0xff] %v2292
        %2301 = vst [vmem:[#allocation4 + $0x110] sm:$0xff] %v2293
        %2302 = vst [vmem:[#allocation4 + $0x118] sm:$0xff] %v2294
        %s2303 = scalar_lea.vmem %s2, 48
        %v2304 = vld [vmem:[%s2303] sm:$0xff]
        %v2305 = vld [vmem:[%s2303 + $0x8] sm:$0xff]
        %v2306 = vld [vmem:[#allocation4] sm:$0xff]
        %v2307 = vld [vmem:[#allocation4 + $0x8] sm:$0xff]
        %v2308 = vld [vmem:[#allocation4 + $0x10] sm:$0xff]
        %v2309 = vld [vmem:[#allocation4 + $0x18] sm:$0xff]
        %v2310 = vld [vmem:[#allocation4 + $0x20] sm:$0xff]
        %v2311 = vld [vmem:[#allocation4 + $0x28] sm:$0xff]
        %v2312 = vld [vmem:[#allocation4 + $0x30] sm:$0xff]
        %v2313 = vld [vmem:[#allocation4 + $0x38] sm:$0xff]
        %v2314 = vld [vmem:[#allocation4 + $0x40] sm:$0xff]
        %v2315 = vld [vmem:[#allocation4 + $0x48] sm:$0xff]
        %v2316 = vld [vmem:[#allocation4 + $0x50] sm:$0xff]
        %v2317 = vld [vmem:[#allocation4 + $0x58] sm:$0xff]
        %v2318 = vld [vmem:[#allocation4 + $0x60] sm:$0xff]
        %v2319 = vld [vmem:[#allocation4 + $0x68] sm:$0xff]
        %v2320 = vld [vmem:[#allocation4 + $0x70] sm:$0xff]
        %v2321 = vld [vmem:[#allocation4 + $0x78] sm:$0xff]
        %v2322 = vld [vmem:[#allocation4 + $0x80] sm:$0xff]
        %v2323 = vld [vmem:[#allocation4 + $0x88] sm:$0xff]
        %v2324 = vld [vmem:[#allocation4 + $0x90] sm:$0xff]
        %v2325 = vld [vmem:[#allocation4 + $0x98] sm:$0xff]
        %v2326 = vld [vmem:[#allocation4 + $0xa0] sm:$0xff]
        %v2327 = vld [vmem:[#allocation4 + $0xa8] sm:$0xff]
        %v2328 = vld [vmem:[#allocation4 + $0xb0] sm:$0xff]
        %v2329 = vld [vmem:[#allocation4 + $0xb8] sm:$0xff]
        %v2330 = vld [vmem:[#allocation4 + $0xc0] sm:$0xff]
        %v2331 = vld [vmem:[#allocation4 + $0xc8] sm:$0xff]
        %v2332 = vld [vmem:[#allocation4 + $0xd0] sm:$0xff]
        %v2333 = vld [vmem:[#allocation4 + $0xd8] sm:$0xff]
        %v2334 = vld [vmem:[#allocation4 + $0xe0] sm:$0xff]
        %v2335 = vld [vmem:[#allocation4 + $0xe8] sm:$0xff]
        %v2336 = vld [vmem:[#allocation4 + $0xf0] sm:$0xff]
        %v2337 = vld [vmem:[#allocation4 + $0xf8] sm:$0xff]
        %v2338 = vld [vmem:[#allocation4 + $0x100] sm:$0xff]
        %v2339 = vld [vmem:[#allocation4 + $0x108] sm:$0xff]
        %v2340 = vld [vmem:[#allocation4 + $0x110] sm:$0xff]
        %v2341 = vld [vmem:[#allocation4 + $0x118] sm:$0xff]
        %s2342 = scalar_lea.vmem %s3, 48
        %v2343 = vld [vmem:[%s2342] sm:$0xff]
        %v2344 = vld [vmem:[%s2342 + $0x8] sm:$0xff]
        %2346 = vset.pattern.permute.xlu0 0
        %2347 = vperm.xlu0 %2346, %v2343
        %v2348 = vpop.permute.xlu0 %2347
        %2351 = vset.pattern.permute.xlu0 0
        %2352 = vperm.xlu0 %2351, %v2344
        %v2353 = vpop.permute.xlu0 %2352
        %v2357 = vunpack.c.l.b16 %v2304
        %v2358 = vunpack.c.h.b16 %v2304
        %v2359 = vunpack.c.l.b16 %v2305
        %v2360 = vunpack.c.h.b16 %v2305
        %v2361 = vpack.c.b16 %v2359, %v2357
        %v2362 = vpack.c.b16 %v2360, %v2358
        %v2365 = vsel %vm880, %v2362, 0
        %2367 = vmatprep.subr.bf16.mxu0 %v2307
        %2368 = vmatpush1.bf16.msra.mxu0 %v2306
        %2369 = vmatprep.subr.bf16.mxu0 %v2311
        %2370 = vmatpush1.bf16.msra.mxu0 %v2310
        %2371 = vmatprep.subr.bf16.mxu0 %v2315
        %2372 = vmatpush1.bf16.msra.mxu0 %v2314
        %2373 = vmatprep.subr.bf16.mxu0 %v2319
        %2374 = vmatpush1.bf16.msra.mxu0 %v2318
        %2375 = vmatprep.subr.bf16.mxu0 %v2323
        %2376 = vmatpush1.bf16.msra.mxu0 %v2322
        %2377 = vmatprep.subr.bf16.mxu0 %v2327
        %2378 = vmatpush1.bf16.msra.mxu0 %v2326
        %2379 = vmatprep.subr.bf16.mxu0 %v2331
        %2380 = vmatpush1.bf16.msra.mxu0 %v2330
        %2381 = vmatprep.subr.bf16.mxu0 %v2335
        %2382 = vmatpush1.bf16.msra.mxu0 %v2334
        %2383 = vmatprep.subr.bf16.mxu0 %v2339
        %2384 = vmatpush1.bf16.msra.mxu0 %v2338
        %2385 = vmatprep.subr.bf16.mxu0 0
        %2386 = vmatpush1.bf16.msra.mxu0 0
        %2387 = vmatprep.subr.bf16.mxu0 0
        %2388 = vmatpush1.bf16.msra.mxu0 0
        %2389 = vmatprep.subr.bf16.mxu0 0
        %2390 = vmatpush1.bf16.msra.mxu0 0
        %2391 = vmatprep.subr.bf16.mxu0 0
        %2392 = vmatpush1.bf16.msra.mxu0 0
        %2393 = vmatprep.subr.bf16.mxu0 0
        %2394 = vmatpush1.bf16.msra.mxu0 0
        %2395 = vmatprep.subr.bf16.mxu0 0
        %2396 = vmatpush1.bf16.msra.mxu0 0
        %2397 = vmatprep.subr.bf16.mxu0 0
        %2398 = vmatpush1.bf16.msra.mxu0 0
        %2399 = vmatprep.mubr.bf16.mxu0 %v2365
        %2400 = vmatmul.mubr.bf16.gmra.mrb[0].mxu0 %v2361
        %v2401 = vpop.f32.mrb[0].mxu0
        %v2402 = vadd.f32 %v2348, %v2401
        %v2403 = vpop.f32.mrb[0].mxu0
        %v2404 = vadd.f32 %v2348, %v2403
        %v2405 = vpop.f32.mrb[0].mxu0
        %v2406 = vadd.f32 %v2353, %v2405
        %v2407 = vpop.f32.mrb[0].mxu0
        %v2408 = vadd.f32 %v2353, %v2407
        %2409 = vdwg.mxu0
        %2410 = vmatprep.subr.bf16.mxu0 %v2309
        %2411 = vmatpush1.bf16.msra.mxu0 %v2308
        %2412 = vmatprep.subr.bf16.mxu0 %v2313
        %2413 = vmatpush1.bf16.msra.mxu0 %v2312
        %2414 = vmatprep.subr.bf16.mxu0 %v2317
        %2415 = vmatpush1.bf16.msra.mxu0 %v2316
        %2416 = vmatprep.subr.bf16.mxu0 %v2321
        %2417 = vmatpush1.bf16.msra.mxu0 %v2320
        %2418 = vmatprep.subr.bf16.mxu0 %v2325
        %2419 = vmatpush1.bf16.msra.mxu0 %v2324
        %2420 = vmatprep.subr.bf16.mxu0 %v2329
        %2421 = vmatpush1.bf16.msra.mxu0 %v2328
        %2422 = vmatprep.subr.bf16.mxu0 %v2333
        %2423 = vmatpush1.bf16.msra.mxu0 %v2332
        %2424 = vmatprep.subr.bf16.mxu0 %v2337
        %2425 = vmatpush1.bf16.msra.mxu0 %v2336
        %2426 = vmatprep.subr.bf16.mxu0 %v2341
        %2427 = vmatpush1.bf16.msra.mxu0 %v2340
        %2428 = vmatprep.subr.bf16.mxu0 0
        %2429 = vmatpush1.bf16.msra.mxu0 0
        %2430 = vmatprep.subr.bf16.mxu0 0
        %2431 = vmatpush1.bf16.msra.mxu0 0
        %2432 = vmatprep.subr.bf16.mxu0 0
        %2433 = vmatpush1.bf16.msra.mxu0 0
        %2434 = vmatprep.subr.bf16.mxu0 0
        %2435 = vmatpush1.bf16.msra.mxu0 0
        %2436 = vmatprep.subr.bf16.mxu0 0
        %2437 = vmatpush1.bf16.msra.mxu0 0
        %2438 = vmatprep.subr.bf16.mxu0 0
        %2439 = vmatpush1.bf16.msra.mxu0 0
        %2440 = vmatprep.subr.bf16.mxu0 0
        %2441 = vmatpush1.bf16.msra.mxu0 0
        %2442 = vmatprep.mubr.bf16.mxu0 %v2365
        %2443 = vmatmul.mubr.bf16.gmra.mrb[0].mxu0 %v2361
        %v2444 = vpop.f32.mrb[0].mxu0
        %v2445 = vadd.f32 %v2348, %v2444
        %v2446 = vpop.f32.mrb[0].mxu0
        %v2447 = vadd.f32 %v2348, %v2446
        %v2448 = vpop.f32.mrb[0].mxu0
        %v2449 = vadd.f32 %v2353, %v2448
        %v2450 = vpop.f32.mrb[0].mxu0
        %v2451 = vadd.f32 %v2353, %v2450
        %2452 = vdwg.mxu0
        %v2453 = vmax.f32 %v2402, 0.0
        %v2454 = vmax.f32 %v2404, 0.0
        %v2455 = vmax.f32 %v2445, 0.0
        %v2456 = vmax.f32 %v2447, 0.0
        %v2457 = vmax.f32 %v2406, 0.0
        %v2458 = vmax.f32 %v2408, 0.0
        %v2459 = vmax.f32 %v2449, 0.0
        %v2460 = vmax.f32 %v2451, 0.0
        %v2461 = vmul.f32 %v2453, %v457
        %v2462 = vmul.f32 %v2454, %v458
        %v2463 = vmul.f32 %v2455, %v459
        %v2464 = vmul.f32 %v2456, %v460
        %v2465 = vmul.f32 %v2457, %v457
        %v2466 = vmul.f32 %v2458, %v458
        %v2467 = vmul.f32 %v2459, %v459
        %v2468 = vmul.f32 %v2460, %v460
        %2469 = vst [vmem:[#allocation2 + $0x28] sm:$0xff] %v2461
        %2470 = vst [vmem:[#allocation2 + $0x30] sm:$0xff] %v2462
        %2471 = vst [vmem:[#allocation2 + $0x38] sm:$0xff] %v2463
        %2472 = vst [vmem:[#allocation2 + $0x40] sm:$0xff] %v2464
        %2473 = vst [vmem:[#allocation2 + $0x98] sm:$0xff] %v2465
        %2474 = vst [vmem:[#allocation2 + $0xa0] sm:$0xff] %v2466
        %2475 = vst [vmem:[#allocation2 + $0xa8] sm:$0xff] %v2467
        %2476 = vst [vmem:[#allocation2 + $0xb0] sm:$0xff] %v2468
        %v2477 = vld [vmem:[#allocation2] sm:$0xff]
        %v2478 = vld [vmem:[#allocation2 + $0x8] sm:$0xff]
        %v2479 = vld [vmem:[#allocation2 + $0x10] sm:$0xff]
        %v2480 = vld [vmem:[#allocation2 + $0x18] sm:$0xff]
        %v2481 = vld [vmem:[#allocation2 + $0x20] sm:$0xff]
        %v2482 = vld [vmem:[#allocation2 + $0x70] sm:$0xff]
        %v2483 = vld [vmem:[#allocation2 + $0x78] sm:$0xff]
        %v2484 = vld [vmem:[#allocation2 + $0x80] sm:$0xff]
        %v2485 = vld [vmem:[#allocation2 + $0x88] sm:$0xff]
        %v2486 = vld [vmem:[#allocation2 + $0x90] sm:$0xff]
        %v2487 = vpack.c.bf16 %v2482, %v2477
        %v2488 = vpack.c.bf16 %v2483, %v2478
        %v2489 = vpack.c.bf16 %v2484, %v2479
        %v2490 = vpack.c.bf16 %v2485, %v2480
        %v2491 = vpack.c.bf16 %v2486, %v2481
        %2497 = vrot.lane.b32.xlu0 %v2487, 16
        %v2498 = vpop.permute.xlu0 %2497
        %2499 = vrot.lane.b32.xlu0 %v2488, 16
        %v2500 = vpop.permute.xlu0 %2499
        %2501 = vrot.lane.b32.xlu0 %v2489, 16
        %v2502 = vpop.permute.xlu0 %2501
        %2503 = vrot.lane.b32.xlu0 %v2490, 16
        %v2504 = vpop.permute.xlu0 %2503
        %2505 = vrot.lane.b32.xlu0 %v2491, 16
        %v2506 = vpop.permute.xlu0 %2505
        %vm2507 = vcmask 130048
        %v2508 = vsel %vm2507, %v2498, %v2500
        %v2509 = vsel %vm2507, %v2500, %v2502
        %v2510 = vsel %vm2507, %v2502, %v2504
        %v2511 = vsel %vm2507, %v2504, %v2506
        %2516 = vst [vmem:[#allocation4] sm:$0xff] %v2508
        %2517 = vst [vmem:[#allocation4 + $0x8] sm:$0xff] %v2509
        %2518 = vst [vmem:[#allocation4 + $0x10] sm:$0xff] %v2510
        %2519 = vst [vmem:[#allocation4 + $0x18] sm:$0xff] %v2511
        %v2520 = vld [vmem:[#allocation2 + $0x8] sm:$0xff]
        %v2521 = vld [vmem:[#allocation2 + $0x10] sm:$0xff]
        %v2522 = vld [vmem:[#allocation2 + $0x18] sm:$0xff]
        %v2523 = vld [vmem:[#allocation2 + $0x20] sm:$0xff]
        %v2524 = vld [vmem:[#allocation2 + $0x78] sm:$0xff]
        %v2525 = vld [vmem:[#allocation2 + $0x80] sm:$0xff]
        %v2526 = vld [vmem:[#allocation2 + $0x88] sm:$0xff]
        %v2527 = vld [vmem:[#allocation2 + $0x90] sm:$0xff]
        %v2528 = vpack.c.bf16 %v2524, %v2520
        %v2529 = vpack.c.bf16 %v2525, %v2521
        %v2530 = vpack.c.bf16 %v2526, %v2522
        %v2531 = vpack.c.bf16 %v2527, %v2523
        %2532 = vst [vmem:[#allocation4 + $0x20] sm:$0xff] %v2528
        %2533 = vst [vmem:[#allocation4 + $0x28] sm:$0xff] %v2529
        %2534 = vst [vmem:[#allocation4 + $0x30] sm:$0xff] %v2530
        %2535 = vst [vmem:[#allocation4 + $0x38] sm:$0xff] %v2531
        %v2536 = vld [vmem:[#allocation2 + $0x8] sm:$0xff]
        %v2537 = vld [vmem:[#allocation2 + $0x10] sm:$0xff]
        %v2538 = vld [vmem:[#allocation2 + $0x18] sm:$0xff]
        %v2539 = vld [vmem:[#allocation2 + $0x20] sm:$0xff]
        %v2540 = vld [vmem:[#allocation2 + $0x28] sm:$0xff]
        %v2541 = vld [vmem:[#allocation2 + $0x78] sm:$0xff]
        %v2542 = vld [vmem:[#allocation2 + $0x80] sm:$0xff]
        %v2543 = vld [vmem:[#allocation2 + $0x88] sm:$0xff]
        %v2544 = vld [vmem:[#allocation2 + $0x90] sm:$0xff]
        %v2545 = vld [vmem:[#allocation2 + $0x98] sm:$0xff]
        %v2546 = vpack.c.bf16 %v2541, %v2536
        %v2547 = vpack.c.bf16 %v2542, %v2537
        %v2548 = vpack.c.bf16 %v2543, %v2538
        %v2549 = vpack.c.bf16 %v2544, %v2539
        %v2550 = vpack.c.bf16 %v2545, %v2540
        %2556 = vrot.lane.b32.xlu0 %v2546, 112
        %v2557 = vpop.permute.xlu0 %2556
        %2558 = vrot.lane.b32.xlu0 %v2547, 112
        %v2559 = vpop.permute.xlu0 %2558
        %2560 = vrot.lane.b32.xlu0 %v2548, 112
        %v2561 = vpop.permute.xlu0 %2560
        %2562 = vrot.lane.b32.xlu0 %v2549, 112
        %v2563 = vpop.permute.xlu0 %2562
        %2564 = vrot.lane.b32.xlu0 %v2550, 112
        %v2565 = vpop.permute.xlu0 %2564
        %vm2566 = vcmask 916480
        %v2567 = vsel %vm2566, %v2557, %v2559
        %v2568 = vsel %vm2566, %v2559, %v2561
        %v2569 = vsel %vm2566, %v2561, %v2563
        %v2570 = vsel %vm2566, %v2563, %v2565
        %2575 = vst [vmem:[#allocation4 + $0x40] sm:$0xff] %v2567
        %2576 = vst [vmem:[#allocation4 + $0x48] sm:$0xff] %v2568
        %2577 = vst [vmem:[#allocation4 + $0x50] sm:$0xff] %v2569
        %2578 = vst [vmem:[#allocation4 + $0x58] sm:$0xff] %v2570
        %v2579 = vld [vmem:[#allocation2 + $0x20] sm:$0xff]
        %v2580 = vld [vmem:[#allocation2 + $0x28] sm:$0xff]
        %v2581 = vld [vmem:[#allocation2 + $0x30] sm:$0xff]
        %v2582 = vld [vmem:[#allocation2 + $0x38] sm:$0xff]
        %v2583 = vld [vmem:[#allocation2 + $0x40] sm:$0xff]
        %v2584 = vld [vmem:[#allocation2 + $0x90] sm:$0xff]
        %v2585 = vld [vmem:[#allocation2 + $0x98] sm:$0xff]
        %v2586 = vld [vmem:[#allocation2 + $0xa0] sm:$0xff]
        %v2587 = vld [vmem:[#allocation2 + $0xa8] sm:$0xff]
        %v2588 = vld [vmem:[#allocation2 + $0xb0] sm:$0xff]
        %v2589 = vpack.c.bf16 %v2584, %v2579
        %v2590 = vpack.c.bf16 %v2585, %v2580
        %v2591 = vpack.c.bf16 %v2586, %v2581
        %v2592 = vpack.c.bf16 %v2587, %v2582
        %v2593 = vpack.c.bf16 %v2588, %v2583
        %2599 = vrot.lane.b32.xlu0 %v2589, 16
        %v2600 = vpop.permute.xlu0 %2599
        %2601 = vrot.lane.b32.xlu0 %v2590, 16
        %v2602 = vpop.permute.xlu0 %2601
        %2603 = vrot.lane.b32.xlu0 %v2591, 16
        %v2604 = vpop.permute.xlu0 %2603
        %2605 = vrot.lane.b32.xlu0 %v2592, 16
        %v2606 = vpop.permute.xlu0 %2605
        %2607 = vrot.lane.b32.xlu0 %v2593, 16
        %v2608 = vpop.permute.xlu0 %2607
        %v2609 = vsel %vm2507, %v2600, %v2602
        %v2610 = vsel %vm2507, %v2602, %v2604
        %v2611 = vsel %vm2507, %v2604, %v2606
        %v2612 = vsel %vm2507, %v2606, %v2608
        %2617 = vst [vmem:[#allocation4 + $0x60] sm:$0xff] %v2609
        %2618 = vst [vmem:[#allocation4 + $0x68] sm:$0xff] %v2610
        %2619 = vst [vmem:[#allocation4 + $0x70] sm:$0xff] %v2611
        %2620 = vst [vmem:[#allocation4 + $0x78] sm:$0xff] %v2612
        %v2621 = vld [vmem:[#allocation2 + $0x28] sm:$0xff]
        %v2622 = vld [vmem:[#allocation2 + $0x30] sm:$0xff]
        %v2623 = vld [vmem:[#allocation2 + $0x38] sm:$0xff]
        %v2624 = vld [vmem:[#allocation2 + $0x40] sm:$0xff]
        %v2625 = vld [vmem:[#allocation2 + $0x98] sm:$0xff]
        %v2626 = vld [vmem:[#allocation2 + $0xa0] sm:$0xff]
        %v2627 = vld [vmem:[#allocation2 + $0xa8] sm:$0xff]
        %v2628 = vld [vmem:[#allocation2 + $0xb0] sm:$0xff]
        %v2629 = vpack.c.bf16 %v2625, %v2621
        %v2630 = vpack.c.bf16 %v2626, %v2622
        %v2631 = vpack.c.bf16 %v2627, %v2623
        %v2632 = vpack.c.bf16 %v2628, %v2624
        %2633 = vst [vmem:[#allocation4 + $0x80] sm:$0xff] %v2629
        %2634 = vst [vmem:[#allocation4 + $0x88] sm:$0xff] %v2630
        %2635 = vst [vmem:[#allocation4 + $0x90] sm:$0xff] %v2631
        %2636 = vst [vmem:[#allocation4 + $0x98] sm:$0xff] %v2632
        %v2637 = vld [vmem:[#allocation2 + $0x28] sm:$0xff]
        %v2638 = vld [vmem:[#allocation2 + $0x30] sm:$0xff]
        %v2639 = vld [vmem:[#allocation2 + $0x38] sm:$0xff]
        %v2640 = vld [vmem:[#allocation2 + $0x40] sm:$0xff]
        %v2641 = vld [vmem:[#allocation2 + $0x48] sm:$0xff]
        %v2642 = vld [vmem:[#allocation2 + $0x98] sm:$0xff]
        %v2643 = vld [vmem:[#allocation2 + $0xa0] sm:$0xff]
        %v2644 = vld [vmem:[#allocation2 + $0xa8] sm:$0xff]
        %v2645 = vld [vmem:[#allocation2 + $0xb0] sm:$0xff]
        %v2646 = vld [vmem:[#allocation2 + $0xb8] sm:$0xff]
        %v2647 = vpack.c.bf16 %v2642, %v2637
        %v2648 = vpack.c.bf16 %v2643, %v2638
        %v2649 = vpack.c.bf16 %v2644, %v2639
        %v2650 = vpack.c.bf16 %v2645, %v2640
        %v2651 = vpack.c.bf16 %v2646, %v2641
        %2657 = vrot.lane.b32.xlu0 %v2647, 112
        %v2658 = vpop.permute.xlu0 %2657
        %2659 = vrot.lane.b32.xlu0 %v2648, 112
        %v2660 = vpop.permute.xlu0 %2659
        %2661 = vrot.lane.b32.xlu0 %v2649, 112
        %v2662 = vpop.permute.xlu0 %2661
        %2663 = vrot.lane.b32.xlu0 %v2650, 112
        %v2664 = vpop.permute.xlu0 %2663
        %2665 = vrot.lane.b32.xlu0 %v2651, 112
        %v2666 = vpop.permute.xlu0 %2665
        %v2667 = vsel %vm2566, %v2658, %v2660
        %v2668 = vsel %vm2566, %v2660, %v2662
        %v2669 = vsel %vm2566, %v2662, %v2664
        %v2670 = vsel %vm2566, %v2664, %v2666
        %2675 = vst [vmem:[#allocation4 + $0xa0] sm:$0xff] %v2667
        %2676 = vst [vmem:[#allocation4 + $0xa8] sm:$0xff] %v2668
        %2677 = vst [vmem:[#allocation4 + $0xb0] sm:$0xff] %v2669
        %2678 = vst [vmem:[#allocation4 + $0xb8] sm:$0xff] %v2670
        %v2679 = vld [vmem:[#allocation2 + $0x40] sm:$0xff]
        %v2680 = vld [vmem:[#allocation2 + $0x48] sm:$0xff]
        %v2681 = vld [vmem:[#allocation2 + $0x50] sm:$0xff]
        %v2682 = vld [vmem:[#allocation2 + $0x58] sm:$0xff]
        %v2683 = vld [vmem:[#allocation2 + $0x60] sm:$0xff]
        %v2684 = vld [vmem:[#allocation2 + $0xb0] sm:$0xff]
        %v2685 = vld [vmem:[#allocation2 + $0xb8] sm:$0xff]
        %v2686 = vld [vmem:[#allocation2 + $0xc0] sm:$0xff]
        %v2687 = vld [vmem:[#allocation2 + $0xc8] sm:$0xff]
        %v2688 = vld [vmem:[#allocation2 + $0xd0] sm:$0xff]
        %v2689 = vpack.c.bf16 %v2684, %v2679
        %v2690 = vpack.c.bf16 %v2685, %v2680
        %v2691 = vpack.c.bf16 %v2686, %v2681
        %v2692 = vpack.c.bf16 %v2687, %v2682
        %v2693 = vpack.c.bf16 %v2688, %v2683
        %2699 = vrot.lane.b32.xlu0 %v2689, 16
        %v2700 = vpop.permute.xlu0 %2699
        %2701 = vrot.lane.b32.xlu0 %v2690, 16
        %v2702 = vpop.permute.xlu0 %2701
        %2703 = vrot.lane.b32.xlu0 %v2691, 16
        %v2704 = vpop.permute.xlu0 %2703
        %2705 = vrot.lane.b32.xlu0 %v2692, 16
        %v2706 = vpop.permute.xlu0 %2705
        %2707 = vrot.lane.b32.xlu0 %v2693, 16
        %v2708 = vpop.permute.xlu0 %2707
        %v2709 = vsel %vm2507, %v2700, %v2702
        %v2710 = vsel %vm2507, %v2702, %v2704
        %v2711 = vsel %vm2507, %v2704, %v2706
        %v2712 = vsel %vm2507, %v2706, %v2708
        %2717 = vst [vmem:[#allocation4 + $0xc0] sm:$0xff] %v2709
        %2718 = vst [vmem:[#allocation4 + $0xc8] sm:$0xff] %v2710
        %2719 = vst [vmem:[#allocation4 + $0xd0] sm:$0xff] %v2711
        %2720 = vst [vmem:[#allocation4 + $0xd8] sm:$0xff] %v2712
        %v2721 = vld [vmem:[#allocation2 + $0x48] sm:$0xff]
        %v2722 = vld [vmem:[#allocation2 + $0x50] sm:$0xff]
        %v2723 = vld [vmem:[#allocation2 + $0x58] sm:$0xff]
        %v2724 = vld [vmem:[#allocation2 + $0x60] sm:$0xff]
        %v2725 = vld [vmem:[#allocation2 + $0xb8] sm:$0xff]
        %v2726 = vld [vmem:[#allocation2 + $0xc0] sm:$0xff]
        %v2727 = vld [vmem:[#allocation2 + $0xc8] sm:$0xff]
        %v2728 = vld [vmem:[#allocation2 + $0xd0] sm:$0xff]
        %v2729 = vpack.c.bf16 %v2725, %v2721
        %v2730 = vpack.c.bf16 %v2726, %v2722
        %v2731 = vpack.c.bf16 %v2727, %v2723
        %v2732 = vpack.c.bf16 %v2728, %v2724
        %2733 = vst [vmem:[#allocation4 + $0xe0] sm:$0xff] %v2729
        %2734 = vst [vmem:[#allocation4 + $0xe8] sm:$0xff] %v2730
        %2735 = vst [vmem:[#allocation4 + $0xf0] sm:$0xff] %v2731
        %2736 = vst [vmem:[#allocation4 + $0xf8] sm:$0xff] %v2732
        %v2737 = vld [vmem:[#allocation2 + $0x48] sm:$0xff]
        %v2738 = vld [vmem:[#allocation2 + $0x50] sm:$0xff]
        %v2739 = vld [vmem:[#allocation2 + $0x58] sm:$0xff]
        %v2740 = vld [vmem:[#allocation2 + $0x60] sm:$0xff]
        %v2741 = vld [vmem:[#allocation2 + $0x68] sm:$0xff]
        %v2742 = vld [vmem:[#allocation2 + $0xb8] sm:$0xff]
        %v2743 = vld [vmem:[#allocation2 + $0xc0] sm:$0xff]
        %v2744 = vld [vmem:[#allocation2 + $0xc8] sm:$0xff]
        %v2745 = vld [vmem:[#allocation2 + $0xd0] sm:$0xff]
        %v2746 = vld [vmem:[#allocation2 + $0xd8] sm:$0xff]
        %v2747 = vpack.c.bf16 %v2742, %v2737
        %v2748 = vpack.c.bf16 %v2743, %v2738
        %v2749 = vpack.c.bf16 %v2744, %v2739
        %v2750 = vpack.c.bf16 %v2745, %v2740
        %v2751 = vpack.c.bf16 %v2746, %v2741
        %2757 = vrot.lane.b32.xlu0 %v2747, 112
        %v2758 = vpop.permute.xlu0 %2757
        %2759 = vrot.lane.b32.xlu0 %v2748, 112
        %v2760 = vpop.permute.xlu0 %2759
        %2761 = vrot.lane.b32.xlu0 %v2749, 112
        %v2762 = vpop.permute.xlu0 %2761
        %2763 = vrot.lane.b32.xlu0 %v2750, 112
        %v2764 = vpop.permute.xlu0 %2763
        %2765 = vrot.lane.b32.xlu0 %v2751, 112
        %v2766 = vpop.permute.xlu0 %2765
        %v2767 = vsel %vm2566, %v2758, %v2760
        %v2768 = vsel %vm2566, %v2760, %v2762
        %v2769 = vsel %vm2566, %v2762, %v2764
        %v2770 = vsel %vm2566, %v2764, %v2766
        %2775 = vst [vmem:[#allocation4 + $0x100] sm:$0xff] %v2767
        %2776 = vst [vmem:[#allocation4 + $0x108] sm:$0xff] %v2768
        %2777 = vst [vmem:[#allocation4 + $0x110] sm:$0xff] %v2769
        %2778 = vst [vmem:[#allocation4 + $0x118] sm:$0xff] %v2770
        %s2779 = scalar_lea.vmem %s2, 64
        %v2780 = vld [vmem:[%s2779] sm:$0xff]
        %v2781 = vld [vmem:[%s2779 + $0x8] sm:$0xff]
        %v2782 = vld [vmem:[#allocation4] sm:$0xff]
        %v2783 = vld [vmem:[#allocation4 + $0x8] sm:$0xff]
        %v2784 = vld [vmem:[#allocation4 + $0x10] sm:$0xff]
        %v2785 = vld [vmem:[#allocation4 + $0x18] sm:$0xff]
        %v2786 = vld [vmem:[#allocation4 + $0x20] sm:$0xff]
        %v2787 = vld [vmem:[#allocation4 + $0x28] sm:$0xff]
        %v2788 = vld [vmem:[#allocation4 + $0x30] sm:$0xff]
        %v2789 = vld [vmem:[#allocation4 + $0x38] sm:$0xff]
        %v2790 = vld [vmem:[#allocation4 + $0x40] sm:$0xff]
        %v2791 = vld [vmem:[#allocation4 + $0x48] sm:$0xff]
        %v2792 = vld [vmem:[#allocation4 + $0x50] sm:$0xff]
        %v2793 = vld [vmem:[#allocation4 + $0x58] sm:$0xff]
        %v2794 = vld [vmem:[#allocation4 + $0x60] sm:$0xff]
        %v2795 = vld [vmem:[#allocation4 + $0x68] sm:$0xff]
        %v2796 = vld [vmem:[#allocation4 + $0x70] sm:$0xff]
        %v2797 = vld [vmem:[#allocation4 + $0x78] sm:$0xff]
        %v2798 = vld [vmem:[#allocation4 + $0x80] sm:$0xff]
        %v2799 = vld [vmem:[#allocation4 + $0x88] sm:$0xff]
        %v2800 = vld [vmem:[#allocation4 + $0x90] sm:$0xff]
        %v2801 = vld [vmem:[#allocation4 + $0x98] sm:$0xff]
        %v2802 = vld [vmem:[#allocation4 + $0xa0] sm:$0xff]
        %v2803 = vld [vmem:[#allocation4 + $0xa8] sm:$0xff]
        %v2804 = vld [vmem:[#allocation4 + $0xb0] sm:$0xff]
        %v2805 = vld [vmem:[#allocation4 + $0xb8] sm:$0xff]
        %v2806 = vld [vmem:[#allocation4 + $0xc0] sm:$0xff]
        %v2807 = vld [vmem:[#allocation4 + $0xc8] sm:$0xff]
        %v2808 = vld [vmem:[#allocation4 + $0xd0] sm:$0xff]
        %v2809 = vld [vmem:[#allocation4 + $0xd8] sm:$0xff]
        %v2810 = vld [vmem:[#allocation4 + $0xe0] sm:$0xff]
        %v2811 = vld [vmem:[#allocation4 + $0xe8] sm:$0xff]
        %v2812 = vld [vmem:[#allocation4 + $0xf0] sm:$0xff]
        %v2813 = vld [vmem:[#allocation4 + $0xf8] sm:$0xff]
        %v2814 = vld [vmem:[#allocation4 + $0x100] sm:$0xff]
        %v2815 = vld [vmem:[#allocation4 + $0x108] sm:$0xff]
        %v2816 = vld [vmem:[#allocation4 + $0x110] sm:$0xff]
        %v2817 = vld [vmem:[#allocation4 + $0x118] sm:$0xff]
        %s2818 = scalar_lea.vmem %s3, 64
        %v2819 = vld [vmem:[%s2818] sm:$0xff]
        %v2820 = vld [vmem:[%s2818 + $0x8] sm:$0xff]
        %2822 = vset.pattern.permute.xlu0 0
        %2823 = vperm.xlu0 %2822, %v2819
        %v2824 = vpop.permute.xlu0 %2823
        %2827 = vset.pattern.permute.xlu0 0
        %2828 = vperm.xlu0 %2827, %v2820
        %v2829 = vpop.permute.xlu0 %2828
        %v2833 = vunpack.c.l.b16 %v2780
        %v2834 = vunpack.c.h.b16 %v2780
        %v2835 = vunpack.c.l.b16 %v2781
        %v2836 = vunpack.c.h.b16 %v2781
        %v2837 = vpack.c.b16 %v2835, %v2833
        %v2838 = vpack.c.b16 %v2836, %v2834
        %v2841 = vsel %vm880, %v2838, 0
        %2843 = vmatprep.subr.bf16.mxu0 %v2783
        %2844 = vmatpush1.bf16.msra.mxu0 %v2782
        %2845 = vmatprep.subr.bf16.mxu0 %v2787
        %2846 = vmatpush1.bf16.msra.mxu0 %v2786
        %2847 = vmatprep.subr.bf16.mxu0 %v2791
        %2848 = vmatpush1.bf16.msra.mxu0 %v2790
        %2849 = vmatprep.subr.bf16.mxu0 %v2795
        %2850 = vmatpush1.bf16.msra.mxu0 %v2794
        %2851 = vmatprep.subr.bf16.mxu0 %v2799
        %2852 = vmatpush1.bf16.msra.mxu0 %v2798
        %2853 = vmatprep.subr.bf16.mxu0 %v2803
        %2854 = vmatpush1.bf16.msra.mxu0 %v2802
        %2855 = vmatprep.subr.bf16.mxu0 %v2807
        %2856 = vmatpush1.bf16.msra.mxu0 %v2806
        %2857 = vmatprep.subr.bf16.mxu0 %v2811
        %2858 = vmatpush1.bf16.msra.mxu0 %v2810
        %2859 = vmatprep.subr.bf16.mxu0 %v2815
        %2860 = vmatpush1.bf16.msra.mxu0 %v2814
        %2861 = vmatprep.subr.bf16.mxu0 0
        %2862 = vmatpush1.bf16.msra.mxu0 0
        %2863 = vmatprep.subr.bf16.mxu0 0
        %2864 = vmatpush1.bf16.msra.mxu0 0
        %2865 = vmatprep.subr.bf16.mxu0 0
        %2866 = vmatpush1.bf16.msra.mxu0 0
        %2867 = vmatprep.subr.bf16.mxu0 0
        %2868 = vmatpush1.bf16.msra.mxu0 0
        %2869 = vmatprep.subr.bf16.mxu0 0
        %2870 = vmatpush1.bf16.msra.mxu0 0
        %2871 = vmatprep.subr.bf16.mxu0 0
        %2872 = vmatpush1.bf16.msra.mxu0 0
        %2873 = vmatprep.subr.bf16.mxu0 0
        %2874 = vmatpush1.bf16.msra.mxu0 0
        %2875 = vmatprep.mubr.bf16.mxu0 %v2841
        %2876 = vmatmul.mubr.bf16.gmra.mrb[0].mxu0 %v2837
        %v2877 = vpop.f32.mrb[0].mxu0
        %v2878 = vadd.f32 %v2824, %v2877
        %v2879 = vpop.f32.mrb[0].mxu0
        %v2880 = vadd.f32 %v2824, %v2879
        %v2881 = vpop.f32.mrb[0].mxu0
        %v2882 = vadd.f32 %v2829, %v2881
        %v2883 = vpop.f32.mrb[0].mxu0
        %v2884 = vadd.f32 %v2829, %v2883
        %2885 = vdwg.mxu0
        %2886 = vmatprep.subr.bf16.mxu0 %v2785
        %2887 = vmatpush1.bf16.msra.mxu0 %v2784
        %2888 = vmatprep.subr.bf16.mxu0 %v2789
        %2889 = vmatpush1.bf16.msra.mxu0 %v2788
        %2890 = vmatprep.subr.bf16.mxu0 %v2793
        %2891 = vmatpush1.bf16.msra.mxu0 %v2792
        %2892 = vmatprep.subr.bf16.mxu0 %v2797
        %2893 = vmatpush1.bf16.msra.mxu0 %v2796
        %2894 = vmatprep.subr.bf16.mxu0 %v2801
        %2895 = vmatpush1.bf16.msra.mxu0 %v2800
        %2896 = vmatprep.subr.bf16.mxu0 %v2805
        %2897 = vmatpush1.bf16.msra.mxu0 %v2804
        %2898 = vmatprep.subr.bf16.mxu0 %v2809
        %2899 = vmatpush1.bf16.msra.mxu0 %v2808
        %2900 = vmatprep.subr.bf16.mxu0 %v2813
        %2901 = vmatpush1.bf16.msra.mxu0 %v2812
        %2902 = vmatprep.subr.bf16.mxu0 %v2817
        %2903 = vmatpush1.bf16.msra.mxu0 %v2816
        %2904 = vmatprep.subr.bf16.mxu0 0
        %2905 = vmatpush1.bf16.msra.mxu0 0
        %2906 = vmatprep.subr.bf16.mxu0 0
        %2907 = vmatpush1.bf16.msra.mxu0 0
        %2908 = vmatprep.subr.bf16.mxu0 0
        %2909 = vmatpush1.bf16.msra.mxu0 0
        %2910 = vmatprep.subr.bf16.mxu0 0
        %2911 = vmatpush1.bf16.msra.mxu0 0
        %2912 = vmatprep.subr.bf16.mxu0 0
        %2913 = vmatpush1.bf16.msra.mxu0 0
        %2914 = vmatprep.subr.bf16.mxu0 0
        %2915 = vmatpush1.bf16.msra.mxu0 0
        %2916 = vmatprep.subr.bf16.mxu0 0
        %2917 = vmatpush1.bf16.msra.mxu0 0
        %2918 = vmatprep.mubr.bf16.mxu0 %v2841
        %2919 = vmatmul.mubr.bf16.gmra.mrb[0].mxu0 %v2837
        %v2920 = vpop.f32.mrb[0].mxu0
        %v2921 = vadd.f32 %v2824, %v2920
        %v2922 = vpop.f32.mrb[0].mxu0
        %v2923 = vadd.f32 %v2824, %v2922
        %v2924 = vpop.f32.mrb[0].mxu0
        %v2925 = vadd.f32 %v2829, %v2924
        %v2926 = vpop.f32.mrb[0].mxu0
        %v2927 = vadd.f32 %v2829, %v2926
        %2928 = vdwg.mxu0
        %v2929 = vmax.f32 %v2878, 0.0
        %v2930 = vmax.f32 %v2880, 0.0
        %v2931 = vmax.f32 %v2921, 0.0
        %v2932 = vmax.f32 %v2923, 0.0
        %v2933 = vmax.f32 %v2882, 0.0
        %v2934 = vmax.f32 %v2884, 0.0
        %v2935 = vmax.f32 %v2925, 0.0
        %v2936 = vmax.f32 %v2927, 0.0
        %v2937 = vmul.f32 %v2929, %v457
        %v2938 = vmul.f32 %v2930, %v458
        %v2939 = vmul.f32 %v2931, %v459
        %v2940 = vmul.f32 %v2932, %v460
        %v2941 = vmul.f32 %v2933, %v457
        %v2942 = vmul.f32 %v2934, %v458
        %v2943 = vmul.f32 %v2935, %v459
        %v2944 = vmul.f32 %v2936, %v460
        %2945 = vst [vmem:[#allocation3 + $0x28] sm:$0xff] %v2937
        %2946 = vst [vmem:[#allocation3 + $0x30] sm:$0xff] %v2938
        %2947 = vst [vmem:[#allocation3 + $0x38] sm:$0xff] %v2939
        %2948 = vst [vmem:[#allocation3 + $0x40] sm:$0xff] %v2940
        %2949 = vst [vmem:[#allocation3 + $0x98] sm:$0xff] %v2941
        %2950 = vst [vmem:[#allocation3 + $0xa0] sm:$0xff] %v2942
        %2951 = vst [vmem:[#allocation3 + $0xa8] sm:$0xff] %v2943
        %2952 = vst [vmem:[#allocation3 + $0xb0] sm:$0xff] %v2944
        %v2953 = vld [vmem:[#allocation3 + $0x20] sm:$0xff]
        %v2954 = vld [vmem:[#allocation3 + $0x28] sm:$0xff]
        %v2955 = vld [vmem:[#allocation3 + $0x30] sm:$0xff]
        %v2956 = vld [vmem:[#allocation3 + $0x38] sm:$0xff]
        %v2957 = vld [vmem:[#allocation3 + $0x40] sm:$0xff]
        %v2958 = vld [vmem:[#allocation3 + $0x90] sm:$0xff]
        %v2959 = vld [vmem:[#allocation3 + $0x98] sm:$0xff]
        %v2960 = vld [vmem:[#allocation3 + $0xa0] sm:$0xff]
        %v2961 = vld [vmem:[#allocation3 + $0xa8] sm:$0xff]
        %v2962 = vld [vmem:[#allocation3 + $0xb0] sm:$0xff]
        %v2963 = vpack.c.bf16 %v2958, %v2953
        %v2964 = vpack.c.bf16 %v2959, %v2954
        %v2965 = vpack.c.bf16 %v2960, %v2955
        %v2966 = vpack.c.bf16 %v2961, %v2956
        %v2967 = vpack.c.bf16 %v2962, %v2957
        %2973 = vrot.lane.b32.xlu0 %v2963, 33
        %v2974 = vpop.permute.xlu0 %2973
        %2975 = vrot.lane.b32.xlu0 %v2964, 33
        %v2976 = vpop.permute.xlu0 %2975
        %2977 = vrot.lane.b32.xlu0 %v2965, 33
        %v2978 = vpop.permute.xlu0 %2977
        %2979 = vrot.lane.b32.xlu0 %v2966, 33
        %v2980 = vpop.permute.xlu0 %2979
        %2981 = vrot.lane.b32.xlu0 %v2967, 33
        %v2982 = vpop.permute.xlu0 %2981
        %v2983 = vsel %vm491, %v2974, %v2976
        %v2984 = vsel %vm491, %v2976, %v2978
        %v2985 = vsel %vm491, %v2978, %v2980
        %v2986 = vsel %vm491, %v2980, %v2982
        %2991 = vst [vmem:[#allocation4] sm:$0xff] %v2983
        %2992 = vst [vmem:[#allocation4 + $0x8] sm:$0xff] %v2984
        %2993 = vst [vmem:[#allocation4 + $0x10] sm:$0xff] %v2985
        %2994 = vst [vmem:[#allocation4 + $0x18] sm:$0xff] %v2986
        %v2995 = vld [vmem:[#allocation3 + $0x20] sm:$0xff]
        %v2996 = vld [vmem:[#allocation3 + $0x28] sm:$0xff]
        %v2997 = vld [vmem:[#allocation3 + $0x30] sm:$0xff]
        %v2998 = vld [vmem:[#allocation3 + $0x38] sm:$0xff]
        %v2999 = vld [vmem:[#allocation3 + $0x40] sm:$0xff]
        %v3000 = vld [vmem:[#allocation3 + $0x90] sm:$0xff]
        %v3001 = vld [vmem:[#allocation3 + $0x98] sm:$0xff]
        %v3002 = vld [vmem:[#allocation3 + $0xa0] sm:$0xff]
        %v3003 = vld [vmem:[#allocation3 + $0xa8] sm:$0xff]
        %v3004 = vld [vmem:[#allocation3 + $0xb0] sm:$0xff]
        %v3005 = vpack.c.bf16 %v3000, %v2995
        %v3006 = vpack.c.bf16 %v3001, %v2996
        %v3007 = vpack.c.bf16 %v3002, %v2997
        %v3008 = vpack.c.bf16 %v3003, %v2998
        %v3009 = vpack.c.bf16 %v3004, %v2999
        %3015 = vrot.lane.b32.xlu0 %v3005, 32
        %v3016 = vpop.permute.xlu0 %3015
        %3017 = vrot.lane.b32.xlu0 %v3006, 32
        %v3018 = vpop.permute.xlu0 %3017
        %3019 = vrot.lane.b32.xlu0 %v3007, 32
        %v3020 = vpop.permute.xlu0 %3019
        %3021 = vrot.lane.b32.xlu0 %v3008, 32
        %v3022 = vpop.permute.xlu0 %3021
        %3023 = vrot.lane.b32.xlu0 %v3009, 32
        %v3024 = vpop.permute.xlu0 %3023
        %v3025 = vsel %vm534, %v3016, %v3018
        %v3026 = vsel %vm534, %v3018, %v3020
        %v3027 = vsel %vm534, %v3020, %v3022
        %v3028 = vsel %vm534, %v3022, %v3024
        %3033 = vst [vmem:[#allocation4 + $0x20] sm:$0xff] %v3025
        %3034 = vst [vmem:[#allocation4 + $0x28] sm:$0xff] %v3026
        %3035 = vst [vmem:[#allocation4 + $0x30] sm:$0xff] %v3027
        %3036 = vst [vmem:[#allocation4 + $0x38] sm:$0xff] %v3028
        %v3037 = vld [vmem:[#allocation3 + $0x20] sm:$0xff]
        %v3038 = vld [vmem:[#allocation3 + $0x28] sm:$0xff]
        %v3039 = vld [vmem:[#allocation3 + $0x30] sm:$0xff]
        %v3040 = vld [vmem:[#allocation3 + $0x38] sm:$0xff]
        %v3041 = vld [vmem:[#allocation3 + $0x40] sm:$0xff]
        %v3042 = vld [vmem:[#allocation3 + $0x90] sm:$0xff]
        %v3043 = vld [vmem:[#allocation3 + $0x98] sm:$0xff]
        %v3044 = vld [vmem:[#allocation3 + $0xa0] sm:$0xff]
        %v3045 = vld [vmem:[#allocation3 + $0xa8] sm:$0xff]
        %v3046 = vld [vmem:[#allocation3 + $0xb0] sm:$0xff]
        %v3047 = vpack.c.bf16 %v3042, %v3037
        %v3048 = vpack.c.bf16 %v3043, %v3038
        %v3049 = vpack.c.bf16 %v3044, %v3039
        %v3050 = vpack.c.bf16 %v3045, %v3040
        %v3051 = vpack.c.bf16 %v3046, %v3041
        %3057 = vrot.lane.b32.xlu0 %v3047, 31
        %v3058 = vpop.permute.xlu0 %3057
        %3059 = vrot.lane.b32.xlu0 %v3048, 31
        %v3060 = vpop.permute.xlu0 %3059
        %3061 = vrot.lane.b32.xlu0 %v3049, 31
        %v3062 = vpop.permute.xlu0 %3061
        %3063 = vrot.lane.b32.xlu0 %v3050, 31
        %v3064 = vpop.permute.xlu0 %3063
        %3065 = vrot.lane.b32.xlu0 %v3051, 31
        %v3066 = vpop.permute.xlu0 %3065
        %v3067 = vsel %vm577, %v3058, %v3060
        %v3068 = vsel %vm577, %v3060, %v3062
        %v3069 = vsel %vm577, %v3062, %v3064
        %v3070 = vsel %vm577, %v3064, %v3066
        %3075 = vst [vmem:[#allocation4 + $0x40] sm:$0xff] %v3067
        %3076 = vst [vmem:[#allocation4 + $0x48] sm:$0xff] %v3068
        %3077 = vst [vmem:[#allocation4 + $0x50] sm:$0xff] %v3069
        %3078 = vst [vmem:[#allocation4 + $0x58] sm:$0xff] %v3070
        %v3079 = vld [vmem:[#allocation3 + $0x20] sm:$0xff]
        %v3080 = vld [vmem:[#allocation3 + $0x28] sm:$0xff]
        %v3081 = vld [vmem:[#allocation3 + $0x30] sm:$0xff]
        %v3082 = vld [vmem:[#allocation3 + $0x38] sm:$0xff]
        %v3083 = vld [vmem:[#allocation3 + $0x40] sm:$0xff]
        %v3084 = vld [vmem:[#allocation3 + $0x90] sm:$0xff]
        %v3085 = vld [vmem:[#allocation3 + $0x98] sm:$0xff]
        %v3086 = vld [vmem:[#allocation3 + $0xa0] sm:$0xff]
        %v3087 = vld [vmem:[#allocation3 + $0xa8] sm:$0xff]
        %v3088 = vld [vmem:[#allocation3 + $0xb0] sm:$0xff]
        %v3089 = vpack.c.bf16 %v3084, %v3079
        %v3090 = vpack.c.bf16 %v3085, %v3080
        %v3091 = vpack.c.bf16 %v3086, %v3081
        %v3092 = vpack.c.bf16 %v3087, %v3082
        %v3093 = vpack.c.bf16 %v3088, %v3083
        %3099 = vrot.lane.b32.xlu0 %v3089, 1
        %v3100 = vpop.permute.xlu0 %3099
        %3101 = vrot.lane.b32.xlu0 %v3090, 1
        %v3102 = vpop.permute.xlu0 %3101
        %3103 = vrot.lane.b32.xlu0 %v3091, 1
        %v3104 = vpop.permute.xlu0 %3103
        %3105 = vrot.lane.b32.xlu0 %v3092, 1
        %v3106 = vpop.permute.xlu0 %3105
        %3107 = vrot.lane.b32.xlu0 %v3093, 1
        %v3108 = vpop.permute.xlu0 %3107
        %v3109 = vsel %vm620, %v3100, %v3102
        %v3110 = vsel %vm620, %v3102, %v3104
        %v3111 = vsel %vm620, %v3104, %v3106
        %v3112 = vsel %vm620, %v3106, %v3108
        %3117 = vst [vmem:[#allocation4 + $0x60] sm:$0xff] %v3109
        %3118 = vst [vmem:[#allocation4 + $0x68] sm:$0xff] %v3110
        %3119 = vst [vmem:[#allocation4 + $0x70] sm:$0xff] %v3111
        %3120 = vst [vmem:[#allocation4 + $0x78] sm:$0xff] %v3112
        %v3121 = vld [vmem:[#allocation3 + $0x28] sm:$0xff]
        %v3122 = vld [vmem:[#allocation3 + $0x30] sm:$0xff]
        %v3123 = vld [vmem:[#allocation3 + $0x38] sm:$0xff]
        %v3124 = vld [vmem:[#allocation3 + $0x40] sm:$0xff]
        %v3125 = vld [vmem:[#allocation3 + $0x98] sm:$0xff]
        %v3126 = vld [vmem:[#allocation3 + $0xa0] sm:$0xff]
        %v3127 = vld [vmem:[#allocation3 + $0xa8] sm:$0xff]
        %v3128 = vld [vmem:[#allocation3 + $0xb0] sm:$0xff]
        %v3129 = vpack.c.bf16 %v3125, %v3121
        %v3130 = vpack.c.bf16 %v3126, %v3122
        %v3131 = vpack.c.bf16 %v3127, %v3123
        %v3132 = vpack.c.bf16 %v3128, %v3124
        %3133 = vst [vmem:[#allocation4 + $0x80] sm:$0xff] %v3129
        %3134 = vst [vmem:[#allocation4 + $0x88] sm:$0xff] %v3130
        %3135 = vst [vmem:[#allocation4 + $0x90] sm:$0xff] %v3131
        %3136 = vst [vmem:[#allocation4 + $0x98] sm:$0xff] %v3132
        %v3137 = vld [vmem:[#allocation3 + $0x28] sm:$0xff]
        %v3138 = vld [vmem:[#allocation3 + $0x30] sm:$0xff]
        %v3139 = vld [vmem:[#allocation3 + $0x38] sm:$0xff]
        %v3140 = vld [vmem:[#allocation3 + $0x40] sm:$0xff]
        %v3141 = vld [vmem:[#allocation3 + $0x48] sm:$0xff]
        %v3142 = vld [vmem:[#allocation3 + $0x98] sm:$0xff]
        %v3143 = vld [vmem:[#allocation3 + $0xa0] sm:$0xff]
        %v3144 = vld [vmem:[#allocation3 + $0xa8] sm:$0xff]
        %v3145 = vld [vmem:[#allocation3 + $0xb0] sm:$0xff]
        %v3146 = vld [vmem:[#allocation3 + $0xb8] sm:$0xff]
        %v3147 = vpack.c.bf16 %v3142, %v3137
        %v3148 = vpack.c.bf16 %v3143, %v3138
        %v3149 = vpack.c.bf16 %v3144, %v3139
        %v3150 = vpack.c.bf16 %v3145, %v3140
        %v3151 = vpack.c.bf16 %v3146, %v3141
        %3157 = vrot.lane.b32.xlu0 %v3147, 127
        %v3158 = vpop.permute.xlu0 %3157
        %3159 = vrot.lane.b32.xlu0 %v3148, 127
        %v3160 = vpop.permute.xlu0 %3159
        %3161 = vrot.lane.b32.xlu0 %v3149, 127
        %v3162 = vpop.permute.xlu0 %3161
        %3163 = vrot.lane.b32.xlu0 %v3150, 127
        %v3164 = vpop.permute.xlu0 %3163
        %3165 = vrot.lane.b32.xlu0 %v3151, 127
        %v3166 = vpop.permute.xlu0 %3165
        %v3167 = vsel %vm679, %v3158, %v3160
        %v3168 = vsel %vm679, %v3160, %v3162
        %v3169 = vsel %vm679, %v3162, %v3164
        %v3170 = vsel %vm679, %v3164, %v3166
        %3175 = vst [vmem:[#allocation4 + $0xa0] sm:$0xff] %v3167
        %3176 = vst [vmem:[#allocation4 + $0xa8] sm:$0xff] %v3168
        %3177 = vst [vmem:[#allocation4 + $0xb0] sm:$0xff] %v3169
        %3178 = vst [vmem:[#allocation4 + $0xb8] sm:$0xff] %v3170
        %v3179 = vld [vmem:[#allocation3 + $0x28] sm:$0xff]
        %v3180 = vld [vmem:[#allocation3 + $0x30] sm:$0xff]
        %v3181 = vld [vmem:[#allocation3 + $0x38] sm:$0xff]
        %v3182 = vld [vmem:[#allocation3 + $0x40] sm:$0xff]
        %v3183 = vld [vmem:[#allocation3 + $0x48] sm:$0xff]
        %v3184 = vld [vmem:[#allocation3 + $0x98] sm:$0xff]
        %v3185 = vld [vmem:[#allocation3 + $0xa0] sm:$0xff]
        %v3186 = vld [vmem:[#allocation3 + $0xa8] sm:$0xff]
        %v3187 = vld [vmem:[#allocation3 + $0xb0] sm:$0xff]
        %v3188 = vld [vmem:[#allocation3 + $0xb8] sm:$0xff]
        %v3189 = vpack.c.bf16 %v3184, %v3179
        %v3190 = vpack.c.bf16 %v3185, %v3180
        %v3191 = vpack.c.bf16 %v3186, %v3181
        %v3192 = vpack.c.bf16 %v3187, %v3182
        %v3193 = vpack.c.bf16 %v3188, %v3183
        %3199 = vrot.lane.b32.xlu0 %v3189, 97
        %v3200 = vpop.permute.xlu0 %3199
        %3201 = vrot.lane.b32.xlu0 %v3190, 97
        %v3202 = vpop.permute.xlu0 %3201
        %3203 = vrot.lane.b32.xlu0 %v3191, 97
        %v3204 = vpop.permute.xlu0 %3203
        %3205 = vrot.lane.b32.xlu0 %v3192, 97
        %v3206 = vpop.permute.xlu0 %3205
        %3207 = vrot.lane.b32.xlu0 %v3193, 97
        %v3208 = vpop.permute.xlu0 %3207
        %v3209 = vsel %vm722, %v3200, %v3202
        %v3210 = vsel %vm722, %v3202, %v3204
        %v3211 = vsel %vm722, %v3204, %v3206
        %v3212 = vsel %vm722, %v3206, %v3208
        %3217 = vst [vmem:[#allocation4 + $0xc0] sm:$0xff] %v3209
        %3218 = vst [vmem:[#allocation4 + $0xc8] sm:$0xff] %v3210
        %3219 = vst [vmem:[#allocation4 + $0xd0] sm:$0xff] %v3211
        %3220 = vst [vmem:[#allocation4 + $0xd8] sm:$0xff] %v3212
        %v3221 = vld [vmem:[#allocation3 + $0x28] sm:$0xff]
        %v3222 = vld [vmem:[#allocation3 + $0x30] sm:$0xff]
        %v3223 = vld [vmem:[#allocation3 + $0x38] sm:$0xff]
        %v3224 = vld [vmem:[#allocation3 + $0x40] sm:$0xff]
        %v3225 = vld [vmem:[#allocation3 + $0x48] sm:$0xff]
        %v3226 = vld [vmem:[#allocation3 + $0x98] sm:$0xff]
        %v3227 = vld [vmem:[#allocation3 + $0xa0] sm:$0xff]
        %v3228 = vld [vmem:[#allocation3 + $0xa8] sm:$0xff]
        %v3229 = vld [vmem:[#allocation3 + $0xb0] sm:$0xff]
        %v3230 = vld [vmem:[#allocation3 + $0xb8] sm:$0xff]
        %v3231 = vpack.c.bf16 %v3226, %v3221
        %v3232 = vpack.c.bf16 %v3227, %v3222
        %v3233 = vpack.c.bf16 %v3228, %v3223
        %v3234 = vpack.c.bf16 %v3229, %v3224
        %v3235 = vpack.c.bf16 %v3230, %v3225
        %3241 = vrot.lane.b32.xlu0 %v3231, 96
        %v3242 = vpop.permute.xlu0 %3241
        %3243 = vrot.lane.b32.xlu0 %v3232, 96
        %v3244 = vpop.permute.xlu0 %3243
        %3245 = vrot.lane.b32.xlu0 %v3233, 96
        %v3246 = vpop.permute.xlu0 %3245
        %3247 = vrot.lane.b32.xlu0 %v3234, 96
        %v3248 = vpop.permute.xlu0 %3247
        %3249 = vrot.lane.b32.xlu0 %v3235, 96
        %v3250 = vpop.permute.xlu0 %3249
        %v3251 = vsel %vm765, %v3242, %v3244
        %v3252 = vsel %vm765, %v3244, %v3246
        %v3253 = vsel %vm765, %v3246, %v3248
        %v3254 = vsel %vm765, %v3248, %v3250
        %3259 = vst [vmem:[#allocation4 + $0xe0] sm:$0xff] %v3251
        %3260 = vst [vmem:[#allocation4 + $0xe8] sm:$0xff] %v3252
        %3261 = vst [vmem:[#allocation4 + $0xf0] sm:$0xff] %v3253
        %3262 = vst [vmem:[#allocation4 + $0xf8] sm:$0xff] %v3254
        %v3263 = vld [vmem:[#allocation3 + $0x28] sm:$0xff]
        %v3264 = vld [vmem:[#allocation3 + $0x30] sm:$0xff]
        %v3265 = vld [vmem:[#allocation3 + $0x38] sm:$0xff]
        %v3266 = vld [vmem:[#allocation3 + $0x40] sm:$0xff]
        %v3267 = vld [vmem:[#allocation3 + $0x48] sm:$0xff]
        %v3268 = vld [vmem:[#allocation3 + $0x98] sm:$0xff]
        %v3269 = vld [vmem:[#allocation3 + $0xa0] sm:$0xff]
        %v3270 = vld [vmem:[#allocation3 + $0xa8] sm:$0xff]
        %v3271 = vld [vmem:[#allocation3 + $0xb0] sm:$0xff]
        %v3272 = vld [vmem:[#allocation3 + $0xb8] sm:$0xff]
        %v3273 = vpack.c.bf16 %v3268, %v3263
        %v3274 = vpack.c.bf16 %v3269, %v3264
        %v3275 = vpack.c.bf16 %v3270, %v3265
        %v3276 = vpack.c.bf16 %v3271, %v3266
        %v3277 = vpack.c.bf16 %v3272, %v3267
        %3283 = vrot.lane.b32.xlu0 %v3273, 95
        %v3284 = vpop.permute.xlu0 %3283
        %3285 = vrot.lane.b32.xlu0 %v3274, 95
        %v3286 = vpop.permute.xlu0 %3285
        %3287 = vrot.lane.b32.xlu0 %v3275, 95
        %v3288 = vpop.permute.xlu0 %3287
        %3289 = vrot.lane.b32.xlu0 %v3276, 95
        %v3290 = vpop.permute.xlu0 %3289
        %3291 = vrot.lane.b32.xlu0 %v3277, 95
        %v3292 = vpop.permute.xlu0 %3291
        %v3293 = vsel %vm808, %v3284, %v3286
        %v3294 = vsel %vm808, %v3286, %v3288
        %v3295 = vsel %vm808, %v3288, %v3290
        %v3296 = vsel %vm808, %v3290, %v3292
        %3301 = vst [vmem:[#allocation4 + $0x100] sm:$0xff] %v3293
        %3302 = vst [vmem:[#allocation4 + $0x108] sm:$0xff] %v3294
        %3303 = vst [vmem:[#allocation4 + $0x110] sm:$0xff] %v3295
        %3304 = vst [vmem:[#allocation4 + $0x118] sm:$0xff] %v3296
        %s3305 = scalar_lea.vmem %s2, 80
        %v3306 = vld [vmem:[%s3305] sm:$0xff]
        %v3307 = vld [vmem:[%s3305 + $0x8] sm:$0xff]
        %v3308 = vld [vmem:[#allocation4] sm:$0xff]
        %v3309 = vld [vmem:[#allocation4 + $0x8] sm:$0xff]
        %v3310 = vld [vmem:[#allocation4 + $0x10] sm:$0xff]
        %v3311 = vld [vmem:[#allocation4 + $0x18] sm:$0xff]
        %v3312 = vld [vmem:[#allocation4 + $0x20] sm:$0xff]
        %v3313 = vld [vmem:[#allocation4 + $0x28] sm:$0xff]
        %v3314 = vld [vmem:[#allocation4 + $0x30] sm:$0xff]
        %v3315 = vld [vmem:[#allocation4 + $0x38] sm:$0xff]
        %v3316 = vld [vmem:[#allocation4 + $0x40] sm:$0xff]
        %v3317 = vld [vmem:[#allocation4 + $0x48] sm:$0xff]
        %v3318 = vld [vmem:[#allocation4 + $0x50] sm:$0xff]
        %v3319 = vld [vmem:[#allocation4 + $0x58] sm:$0xff]
        %v3320 = vld [vmem:[#allocation4 + $0x60] sm:$0xff]
        %v3321 = vld [vmem:[#allocation4 + $0x68] sm:$0xff]
        %v3322 = vld [vmem:[#allocation4 + $0x70] sm:$0xff]
        %v3323 = vld [vmem:[#allocation4 + $0x78] sm:$0xff]
        %v3324 = vld [vmem:[#allocation4 + $0x80] sm:$0xff]
        %v3325 = vld [vmem:[#allocation4 + $0x88] sm:$0xff]
        %v3326 = vld [vmem:[#allocation4 + $0x90] sm:$0xff]
        %v3327 = vld [vmem:[#allocation4 + $0x98] sm:$0xff]
        %v3328 = vld [vmem:[#allocation4 + $0xa0] sm:$0xff]
        %v3329 = vld [vmem:[#allocation4 + $0xa8] sm:$0xff]
        %v3330 = vld [vmem:[#allocation4 + $0xb0] sm:$0xff]
        %v3331 = vld [vmem:[#allocation4 + $0xb8] sm:$0xff]
        %v3332 = vld [vmem:[#allocation4 + $0xc0] sm:$0xff]
        %v3333 = vld [vmem:[#allocation4 + $0xc8] sm:$0xff]
        %v3334 = vld [vmem:[#allocation4 + $0xd0] sm:$0xff]
        %v3335 = vld [vmem:[#allocation4 + $0xd8] sm:$0xff]
        %v3336 = vld [vmem:[#allocation4 + $0xe0] sm:$0xff]
        %v3337 = vld [vmem:[#allocation4 + $0xe8] sm:$0xff]
        %v3338 = vld [vmem:[#allocation4 + $0xf0] sm:$0xff]
        %v3339 = vld [vmem:[#allocation4 + $0xf8] sm:$0xff]
        %v3340 = vld [vmem:[#allocation4 + $0x100] sm:$0xff]
        %v3341 = vld [vmem:[#allocation4 + $0x108] sm:$0xff]
        %v3342 = vld [vmem:[#allocation4 + $0x110] sm:$0xff]
        %v3343 = vld [vmem:[#allocation4 + $0x118] sm:$0xff]
        %s3344 = scalar_lea.vmem %s3, 80
        %v3345 = vld [vmem:[%s3344] sm:$0xff]
        %v3346 = vld [vmem:[%s3344 + $0x8] sm:$0xff]
        %3348 = vset.pattern.permute.xlu0 0
        %3349 = vperm.xlu0 %3348, %v3345
        %v3350 = vpop.permute.xlu0 %3349
        %3353 = vset.pattern.permute.xlu0 0
        %3354 = vperm.xlu0 %3353, %v3346
        %v3355 = vpop.permute.xlu0 %3354
        %v3359 = vunpack.c.l.b16 %v3306
        %v3360 = vunpack.c.h.b16 %v3306
        %v3361 = vunpack.c.l.b16 %v3307
        %v3362 = vunpack.c.h.b16 %v3307
        %v3363 = vpack.c.b16 %v3361, %v3359
        %v3364 = vpack.c.b16 %v3362, %v3360
        %v3367 = vsel %vm880, %v3364, 0
        %3369 = vmatprep.subr.bf16.mxu0 %v3309
        %3370 = vmatpush1.bf16.msra.mxu0 %v3308
        %3371 = vmatprep.subr.bf16.mxu0 %v3313
        %3372 = vmatpush1.bf16.msra.mxu0 %v3312
        %3373 = vmatprep.subr.bf16.mxu0 %v3317
        %3374 = vmatpush1.bf16.msra.mxu0 %v3316
        %3375 = vmatprep.subr.bf16.mxu0 %v3321
        %3376 = vmatpush1.bf16.msra.mxu0 %v3320
        %3377 = vmatprep.subr.bf16.mxu0 %v3325
        %3378 = vmatpush1.bf16.msra.mxu0 %v3324
        %3379 = vmatprep.subr.bf16.mxu0 %v3329
        %3380 = vmatpush1.bf16.msra.mxu0 %v3328
        %3381 = vmatprep.subr.bf16.mxu0 %v3333
        %3382 = vmatpush1.bf16.msra.mxu0 %v3332
        %3383 = vmatprep.subr.bf16.mxu0 %v3337
        %3384 = vmatpush1.bf16.msra.mxu0 %v3336
        %3385 = vmatprep.subr.bf16.mxu0 %v3341
        %3386 = vmatpush1.bf16.msra.mxu0 %v3340
        %3387 = vmatprep.subr.bf16.mxu0 0
        %3388 = vmatpush1.bf16.msra.mxu0 0
        %3389 = vmatprep.subr.bf16.mxu0 0
        %3390 = vmatpush1.bf16.msra.mxu0 0
        %3391 = vmatprep.subr.bf16.mxu0 0
        %3392 = vmatpush1.bf16.msra.mxu0 0
        %3393 = vmatprep.subr.bf16.mxu0 0
        %3394 = vmatpush1.bf16.msra.mxu0 0
        %3395 = vmatprep.subr.bf16.mxu0 0
        %3396 = vmatpush1.bf16.msra.mxu0 0
        %3397 = vmatprep.subr.bf16.mxu0 0
        %3398 = vmatpush1.bf16.msra.mxu0 0
        %3399 = vmatprep.subr.bf16.mxu0 0
        %3400 = vmatpush1.bf16.msra.mxu0 0
        %3401 = vmatprep.mubr.bf16.mxu0 %v3367
        %3402 = vmatmul.mubr.bf16.gmra.mrb[0].mxu0 %v3363
        %v3403 = vpop.f32.mrb[0].mxu0
        %v3404 = vadd.f32 %v3350, %v3403
        %v3405 = vpop.f32.mrb[0].mxu0
        %v3406 = vadd.f32 %v3350, %v3405
        %v3407 = vpop.f32.mrb[0].mxu0
        %v3408 = vadd.f32 %v3355, %v3407
        %v3409 = vpop.f32.mrb[0].mxu0
        %v3410 = vadd.f32 %v3355, %v3409
        %3411 = vdwg.mxu0
        %3412 = vmatprep.subr.bf16.mxu0 %v3311
        %3413 = vmatpush1.bf16.msra.mxu0 %v3310
        %3414 = vmatprep.subr.bf16.mxu0 %v3315
        %3415 = vmatpush1.bf16.msra.mxu0 %v3314
        %3416 = vmatprep.subr.bf16.mxu0 %v3319
        %3417 = vmatpush1.bf16.msra.mxu0 %v3318
        %3418 = vmatprep.subr.bf16.mxu0 %v3323
        %3419 = vmatpush1.bf16.msra.mxu0 %v3322
        %3420 = vmatprep.subr.bf16.mxu0 %v3327
        %3421 = vmatpush1.bf16.msra.mxu0 %v3326
        %3422 = vmatprep.subr.bf16.mxu0 %v3331
        %3423 = vmatpush1.bf16.msra.mxu0 %v3330
        %3424 = vmatprep.subr.bf16.mxu0 %v3335
        %3425 = vmatpush1.bf16.msra.mxu0 %v3334
        %3426 = vmatprep.subr.bf16.mxu0 %v3339
        %3427 = vmatpush1.bf16.msra.mxu0 %v3338
        %3428 = vmatprep.subr.bf16.mxu0 %v3343
        %3429 = vmatpush1.bf16.msra.mxu0 %v3342
        %3430 = vmatprep.subr.bf16.mxu0 0
        %3431 = vmatpush1.bf16.msra.mxu0 0
        %3432 = vmatprep.subr.bf16.mxu0 0
        %3433 = vmatpush1.bf16.msra.mxu0 0
        %3434 = vmatprep.subr.bf16.mxu0 0
        %3435 = vmatpush1.bf16.msra.mxu0 0
        %3436 = vmatprep.subr.bf16.mxu0 0
        %3437 = vmatpush1.bf16.msra.mxu0 0
        %3438 = vmatprep.subr.bf16.mxu0 0
        %3439 = vmatpush1.bf16.msra.mxu0 0
        %3440 = vmatprep.subr.bf16.mxu0 0
        %3441 = vmatpush1.bf16.msra.mxu0 0
        %3442 = vmatprep.subr.bf16.mxu0 0
        %3443 = vmatpush1.bf16.msra.mxu0 0
        %3444 = vmatprep.mubr.bf16.mxu0 %v3367
        %3445 = vmatmul.mubr.bf16.gmra.mrb[0].mxu0 %v3363
        %v3446 = vpop.f32.mrb[0].mxu0
        %v3447 = vadd.f32 %v3350, %v3446
        %v3448 = vpop.f32.mrb[0].mxu0
        %v3449 = vadd.f32 %v3350, %v3448
        %v3450 = vpop.f32.mrb[0].mxu0
        %v3451 = vadd.f32 %v3355, %v3450
        %v3452 = vpop.f32.mrb[0].mxu0
        %v3453 = vadd.f32 %v3355, %v3452
        %3454 = vdwg.mxu0
        %v3455 = vmax.f32 %v3404, 0.0
        %v3456 = vmax.f32 %v3406, 0.0
        %v3457 = vmax.f32 %v3447, 0.0
        %v3458 = vmax.f32 %v3449, 0.0
        %v3459 = vmax.f32 %v3408, 0.0
        %v3460 = vmax.f32 %v3410, 0.0
        %v3461 = vmax.f32 %v3451, 0.0
        %v3462 = vmax.f32 %v3453, 0.0
        %v3463 = vmul.f32 %v3455, %v457
        %v3464 = vmul.f32 %v3456, %v458
        %v3465 = vmul.f32 %v3457, %v459
        %v3466 = vmul.f32 %v3458, %v460
        %v3467 = vmul.f32 %v3459, %v457
        %v3468 = vmul.f32 %v3460, %v458
        %v3469 = vmul.f32 %v3461, %v459
        %v3470 = vmul.f32 %v3462, %v460
        %3471 = vst [vmem:[#allocation2 + $0x28] sm:$0xff] %v3463
        %3472 = vst [vmem:[#allocation2 + $0x30] sm:$0xff] %v3464
        %3473 = vst [vmem:[#allocation2 + $0x38] sm:$0xff] %v3465
        %3474 = vst [vmem:[#allocation2 + $0x40] sm:$0xff] %v3466
        %3475 = vst [vmem:[#allocation2 + $0x98] sm:$0xff] %v3467
        %3476 = vst [vmem:[#allocation2 + $0xa0] sm:$0xff] %v3468
        %3477 = vst [vmem:[#allocation2 + $0xa8] sm:$0xff] %v3469
        %3478 = vst [vmem:[#allocation2 + $0xb0] sm:$0xff] %v3470
        %v3479 = vld [vmem:[#allocation2 + $0x28] sm:$0xff]
        %v3480 = vld [vmem:[#allocation2 + $0x30] sm:$0xff]
        %v3481 = vld [vmem:[#allocation2 + $0x38] sm:$0xff]
        %v3482 = vld [vmem:[#allocation2 + $0x40] sm:$0xff]
        %v3483 = vld [vmem:[#allocation2 + $0x98] sm:$0xff]
        %v3484 = vld [vmem:[#allocation2 + $0xa0] sm:$0xff]
        %v3485 = vld [vmem:[#allocation2 + $0xa8] sm:$0xff]
        %v3486 = vld [vmem:[#allocation2 + $0xb0] sm:$0xff]
        %v3487 = vld [vmem:[%s4] sm:$0xff]
        %v3488 = vld [vmem:[%s4 + $0x8] sm:$0xff]
        %3490 = vset.pattern.permute.xlu0 0
        %3491 = vperm.xlu0 %3490, %v3487
        %v3492 = vpop.permute.xlu0 %3491
        %3495 = vset.pattern.permute.xlu0 0
        %3496 = vperm.xlu0 %3495, %v3488
        %v3497 = vpop.permute.xlu0 %3496
        %v3499 = vmul.f32 %v3479, %v3492
        %v3500 = vmul.f32 %v3480, %v3492
        %v3501 = vmul.f32 %v3481, %v3492
        %v3502 = vmul.f32 %v3482, %v3492
        %v3503 = vmul.f32 %v3483, %v3497
        %v3504 = vmul.f32 %v3484, %v3497
        %v3505 = vmul.f32 %v3485, %v3497
        %v3506 = vmul.f32 %v3486, %v3497
        %v3507 = vadd.f32 %v3499, %v3503
        %v3508 = vrot.slane %v3507, 4
        %v3509 = vadd.f32 %v3507, %v3508
        %v3510 = vrot.slane %v3509, 2
        %v3511 = vadd.f32 %v3509, %v3510
        %v3512 = vrot.slane %v3511, 1
        %v3513 = vadd.f32 %v3511, %v3512
        %v3514 = vadd.f32 %v3500, %v3504
        %v3515 = vrot.slane %v3514, 4
        %v3516 = vadd.f32 %v3514, %v3515
        %v3517 = vrot.slane %v3516, 2
        %v3518 = vadd.f32 %v3516, %v3517
        %v3519 = vrot.slane %v3518, 1
        %v3520 = vadd.f32 %v3518, %v3519
        %v3521 = vadd.f32 %v3501, %v3505
        %v3522 = vrot.slane %v3521, 4
        %v3523 = vadd.f32 %v3521, %v3522
        %v3524 = vrot.slane %v3523, 2
        %v3525 = vadd.f32 %v3523, %v3524
        %v3526 = vrot.slane %v3525, 1
        %v3527 = vadd.f32 %v3525, %v3526
        %v3528 = vadd.f32 %v3502, %v3506
        %v3529 = vrot.slane %v3528, 4
        %v3530 = vadd.f32 %v3528, %v3529
        %v3531 = vrot.slane %v3530, 2
        %v3532 = vadd.f32 %v3530, %v3531
        %v3533 = vrot.slane %v3532, 1
        %v3534 = vadd.f32 %v3532, %v3533
        %v3535 = vld [vmem:[#allocation5] sm:$0x1]
        %3537 = vset.pattern.permute.xlu0 0
        %3538 = vperm.xlu0 %3537, %v3535
        %v3539 = vpop.permute.xlu0 %3538
        %v3541 = vlaneseq
        %v3542 = vshrl.u32 %v3541, 7
        %v3543 = vsub.s32 0, %v3542
        %v3544 = vrot.slane %v3539, %v3543
        %v3545 = vadd.f32 %v3513, %v3544
        %v3546 = vadd.f32 %v3520, %v3544
        %v3547 = vadd.f32 %v3527, %v3544
        %v3548 = vadd.f32 %v3534, %v3544
        %v3549 = vsub.f32 0.0, %v3545
        %v3550 = vsub.f32 0.0, %v3546
        %v3551 = vsub.f32 0.0, %v3547
        %v3552 = vsub.f32 0.0, %v3548
        %v3553 = vmul.f32 %v3549, 1.442695
        %v3554 = vpow.pop %v3553
        %v3555 = vmul.f32 %v3550, 1.442695
        %v3556 = vpow.pop %v3555
        %v3557 = vmul.f32 %v3551, 1.442695
        %v3558 = vpow.pop %v3557
        %v3559 = vmul.f32 %v3552, 1.442695
        %v3560 = vpow.pop %v3559
        %v3561 = vadd.f32 %v3554, 1.0
        %v3562 = vadd.f32 %v3556, 1.0
        %v3563 = vadd.f32 %v3558, 1.0
        %v3564 = vadd.f32 %v3560, 1.0
        %v3565 = vrcp.pop %v3561
        %v3566 = vmul.f32 1.0, %v3565
        %v3567 = vrcp.pop %v3562
        %v3568 = vmul.f32 1.0, %v3567
        %v3569 = vrcp.pop %v3563
        %v3570 = vmul.f32 1.0, %v3569
        %v3571 = vrcp.pop %v3564
        %v3572 = vmul.f32 1.0, %v3571
        %v3577 = vcombine.low %v3566, %v3568
        %v3578 = vcombine.low %v3570, %v3572
        %v3580 = vunpack.c.l.s4 1966171168
        %v3581 = vunpack.c.0.s8 %v3580
        %v3582 = vlaneseq
        %v3583 = vshrl.u32 %v3582, 7
        %v3584 = vsub.s32 %v3581, %v3583
        %v3585 = vrot.slane %v3577, %v3584
        %v3587 = vunpack.c.l.s4 1966171168
        %v3588 = vunpack.c.0.s8 %v3587
        %v3589 = vlaneseq
        %v3590 = vshrl.u32 %v3589, 7
        %v3591 = vsub.s32 %v3588, %v3590
        %v3592 = vrot.slane %v3578, %v3591
        %v3593 = vcombine.low %v3585, %v3592
        %v3595 = vunpack.c.l.s4 1966171168
        %v3596 = vunpack.c.0.s8 %v3595
        %v3597 = vlaneseq
        %v3598 = vshrl.u32 %v3597, 7
        %v3599 = vsub.s32 %v3596, %v3598
        %v3600 = vrot.slane %v3593, %v3599
        %v3602 = vlaneseq
        %vm3603 = vcmp.ge.s32.totalorder %v3602, 0
        %vm3604 = vcmp.lt.s32.totalorder %v3602, 512
        %vm3605 = vmand %vm3603, %vm3604
        %3606 = vst.msk [vmem:[%s284] sm:$0xf] %vm3605, %v3600
        %s3607 = sand.u32 %s169, 1
        %s3608 = scalar_lea.sflag [#allocation8], %s3607
        %s3609 = sand.u32 %s169, 1
        %s3610 = smul.addr %s3609, 4
        %s3611 = scalar_lea.vmem [#allocation9], %s3610
        // Predicated region
        $region49: #{tpu_custom_call.1} parent=43 // pred_check
          %p3612 = pneg %p179
        $region50: #{tpu_custom_call.1} parent=43 // pred_check_branch
          %3614 = sbr.rel (%p3612) target = $region52
        $region51: #{tpu_custom_call.1} parent=43 // pred_region
          %s3616 = ssub.s32 64, 64
          %3617 = vsyncadd %s3608, %s3616
          %s3618 = smul.addr %s25, 4
          %s3619 = smul.addr %s3618, 16
          %s3620 = scalar_lea.hbm %s6, %s3619
          %s3622 = sshll.u32 %s3611, 4
          %s3623 = int_to_ptr.vmem [resolvable:$true] %s3622
          %3625 = dma.vmem_to_hbm [thread:$0]  %s3623, 64, %s3620, %s3608
        $region52: #{tpu_custom_call.1} parent=43 // pred_fallthru
          _
      $region44: #{tpu_custom_call.1} parent=5 // pred_fallthru
        _
      %p3626 = scmp.le.s32.totalorder 2, %s20
      // Predicated region
      $region53: #{tpu_custom_call.1} parent=5 // pred_check
        %p3627 = pneg %p3626
      $region54: #{tpu_custom_call.1} parent=5 // pred_check_branch
        %3629 = sbr.rel (%p3627) target = $region56
      $region55: #{tpu_custom_call.1} parent=5 // pred_region
        %s3630 = ssub.s32 %s20, 2
        // Predicated region
        $region57: #{tpu_custom_call.1} parent=55 // pred_check
          %p3631 = pneg %p185
        $region58: #{tpu_custom_call.1} parent=55 // pred_check_branch
          %3633 = sbr.rel (%p3631) target = $region60
        $region59: #{tpu_custom_call.1} parent=55 // pred_region
          %s3634 = sand.u32 %s170, 1
          %s3635 = scalar_lea.sflag [#allocation8], %s3634
          %s3636 = sand.u32 %s170, 1
          %s3637 = smul.addr %s3636, 4
          %s3638 = scalar_lea.vmem [#allocation9], %s3637
          %3639 = dma.done %s3635, 64
        $region60: #{tpu_custom_call.1} parent=55 // pred_fallthru
          _
      $region56: #{tpu_custom_call.1} parent=5 // pred_fallthru
        _
    $region6: #{tpu_custom_call.1} parent=1 // loop_footer
      %s24 = sadd.s32 1, %s20
    $region7: #{tpu_custom_call.1} parent=1 // loop_footer_branch
      %19 = sbr.rel target = $region3
    $region8: #{tpu_custom_call.1} parent=1 // loop_exit
      _
    %3640 = vsyncpa [#allocation7], 1
    %s3641 = scalar_lea.sflag [#allocation7], 1
    %3642 = vsyncpa %s3641, 1
    %3643 = vsyncpa [#allocation8], 1
    %s3644 = scalar_lea.sflag [#allocation8], 1
    %3645 = vsyncpa %s3644, 1

</llo_original>
